<compile_context>
chip_gen: v5e
topology: v5e:2x2
jax: 0.10.0
libtpu: 0.0.40
codegen_flags: <defaults>
</compile_context>

<pallas_src>
import functools
import math

import jax
import jax.numpy as jnp
from jax import lax
from jax.experimental import pallas as pl
from jax.experimental.pallas import tpu as pltpu

PAD_IDX = 0
SOS_IDX = 1
EOS_IDX = 2

# ---- small shapes (scaled-down versions of EMBED_SIZE=300 / HIDDEN_SIZE=1000) ----
EMBED_SIZE = 32          # word embedding dim
HIDDEN_SIZE = 64         # total bi-LSTM hidden
NUM_DIRS = 2
NUM_LAYERS = 2
H = HIDDEN_SIZE // NUM_DIRS   # per-direction hidden = 32 (power of two) -> 8H = 256 lanes
NUM_TAGS = 8
WTI_SIZE = 100           # word vocab
CTI_SIZE = 20            # char vocab (unused: EMBED = {'lookup': ...})
B = 2
T = 8                    # word sequence length; y0 has length T+1 (leading SOS)


# =====================================================================================
# Fused kernel: 2-layer bi-LSTM (pack/pad semantics) + tag projection + CRF loss
# =====================================================================================
def rnn_crf_kernel(Tn, Bn,
                   x_ref, m_ref,
                   wih0_ref, whh0_ref, b0_ref,
                   wih1_ref, whh1_ref, b1_ref,
                   wout_ref, bout_ref, trans_ref,
                   ohn_ref, ohp_ref, ohlast_ref,
                   loss_ref,
                   l0_ref, l1_ref):
    # x_ref:   (T*B, E)    time-major rows: row t*B + b
    # m_ref:   (T*B, 1)    sequence mask
    # wih*:    (In, 8H)    fused fwd/bwd input weights, gate-lane layout
    #                      [i_f, i_b, f_f, f_b, o_f, o_b, g_f, g_b]
    # whh*:    (2H, 8H)    block-diagonal recurrent weights (rows = [h_fwd | h_bwd])
    # b*:      (1, 8H)
    # wout:    (2H, K)   bout: (1, K)   trans: (K, K)
    # ohn/ohp: (T*B, K)    one-hot of y0[:, t+1] / y0[:, t]
    # ohlast:  (B, K)      one-hot of y0[b, len_b]
    # loss_ref:(1, 1)
    # l0_ref/l1_ref: (T*B, 2H) scratch — per-layer outputs, time-aligned,
    #                lanes [:H] = forward direction, lanes [H:] = backward direction
    Hn = whh0_ref.shape[0] // 2
    Kn = trans_ref.shape[0]
    mask = m_ref[...]                                         # (T*B, 1)

    # 1.0 on backward-direction lanes (odd H-blocks of the 8H gate axis, upper half of
    # the 2H carry axis).  Hn is a power of two, so the H-bit selects odd blocks.
    lane8 = lax.broadcasted_iota(jnp.int32, (1, 8 * Hn), 1)
    bsel8 = jnp.where((lane8 & Hn) != 0, 1.0, 0.0)            # (1, 8H)
    lane2 = lax.broadcasted_iota(jnp.int32, (1, 2 * Hn), 1)
    bsel2 = jnp.where(lane2 >= Hn, 1.0, 0.0)                  # (1, 2H)

    def bilstm_layer(x_in, wih_c, b_c, whh_c, out_ref):
        # Hoisted input projection: one matmul covers every timestep + both directions.
        xg = jnp.dot(x_in, wih_c, preferred_element_type=jnp.float32) + b_c   # (T*B, 8H)
        h = jnp.zeros((Bn, 2 * Hn), jnp.float32)
        c = jnp.zeros((Bn, 2 * Hn), jnp.float32)
        # Fully-unrolled recurrence: forward walks t=i, backward walks t=T-1-i,
        # fused into one step through the block-diagonal whh.
        for i in range(Tn):
            r = Tn - 1 - i
            gx = xg[i * Bn:(i + 1) * Bn, :]                   # input gates at time i
            gr = xg[r * Bn:(r + 1) * Bn, :]                   # input gates at time r
            gates_x = gx + bsel8 * (gr - gx)                  # fwd lanes: t=i, bwd lanes: t=r
            gates = gates_x + jnp.dot(h, whh_c, preferred_element_type=jnp.float32)
            sig = jax.nn.sigmoid(gates[:, :6 * Hn])           # i/f/o of both dirs: one pass
            i_g = sig[:, 0:2 * Hn]
            f_g = sig[:, 2 * Hn:4 * Hn]
            o_g = sig[:, 4 * Hn:6 * Hn]
            g_g = jnp.tanh(gates[:, 6 * Hn:])
            c_new = f_g * c + i_g * g_g
            h_new = o_g * jnp.tanh(c_new)
            m_f = mask[i * Bn:(i + 1) * Bn, :]
            m_b = mask[r * Bn:(r + 1) * Bn, :]
            m = m_f + bsel2 * (m_b - m_f)                     # (B, 2H)
            h = h + m * (h_new - h)                           # pack/pad: freeze state on PAD
            c = c + m * (c_new - c)
            out_ref[i * Bn:(i + 1) * Bn, 0:Hn] = h[:, :Hn]    # fwd output belongs to time i
            out_ref[r * Bn:(r + 1) * Bn, Hn:2 * Hn] = h[:, Hn:]   # bwd output -> time r
        return out_ref[...]                                   # (T*B, 2H), no lane concat

    # ---- 2-layer bidirectional LSTM ----
    out0 = bilstm_layer(x_ref[...], wih0_ref[...], b0_ref[...], whh0_ref[...], l0_ref)
    out1 = bilstm_layer(out0, wih1_ref[...], b1_ref[...], whh1_ref[...], l1_ref)

    # ---- emissions for all timesteps in one matmul, mask applied once (h *= mask) ----
    emit = (jnp.dot(out1, wout_ref[...], preferred_element_type=jnp.float32)
            + bout_ref[...]) * mask                           # (T*B, K)

    trans = trans_ref[...]
    NEG = -10000.0

    # ---- CRF partition function Z (forward algorithm, unrolled) ----
    # new[b, j] = emit[b, j] + lse_k(score[b, k] + trans[j, k])   (emit is constant
    # over the reduced axis, so it is added AFTER the logsumexp)
    k_iota = lax.broadcasted_iota(jnp.int32, (Bn, Kn), 1)
    score = jnp.where(k_iota == SOS_IDX, 0.0, NEG).astype(jnp.float32)       # (B, K)
    for t in range(Tn):
        e_t = emit[t * Bn:(t + 1) * Bn, :]                    # (B, K)
        m_t = mask[t * Bn:(t + 1) * Bn, :]                    # (B, 1)
        z = score[:, None, :] + trans[None, :, :]             # (B, K, K)
        mx = jnp.max(z, axis=-1)
        new = e_t + mx + jnp.log(jnp.sum(jnp.exp(z - mx[:, :, None]), axis=-1))
        score = score + m_t * (new - score)
    fin = score + trans[EOS_IDX:EOS_IDX + 1, :]
    mx = jnp.max(fin, axis=-1, keepdims=True)
    Z = mx + jnp.log(jnp.sum(jnp.exp(fin - mx), axis=-1, keepdims=True))     # (B, 1)

    # ---- gold path score (fully vectorized over T) ----
    ohn = ohn_ref[...]                                        # (T*B, K)
    ohp = ohp_ref[...]
    e_all = jnp.sum(emit * ohn, axis=-1, keepdims=True)       # h[b, t, y_{t+1}]
    tr_all = jnp.sum(jnp.dot(ohn, trans, preferred_element_type=jnp.float32) * ohp,
                     axis=-1, keepdims=True)                  # trans[y_{t+1}, y_t]
    gterm = (e_all + tr_all) * mask                           # (T*B, 1)
    gold = gterm[0:Bn, :]
    for t in range(1, Tn):
        gold = gold + gterm[t * Bn:(t + 1) * Bn, :]
    gold = gold + jnp.sum(trans[EOS_IDX:EOS_IDX + 1, :] * ohlast_ref[...],
                          axis=-1, keepdims=True)             # + trans[EOS, last_tag]

    loss_ref[...] = jnp.sum(Z - gold, axis=0, keepdims=True) / Bn            # mean over batch


# =====================================================================================
# Wrapper (glue in plain JAX) + parameter init
# =====================================================================================
def _vmem_specs(n):
    return [pl.BlockSpec(memory_space=pltpu.MemorySpace.VMEM) for _ in range(n)]


def _combine_dir_weights(wih, whh, b):
    """Build fused-direction weights for one LSTM layer.

    Inputs use the per-direction layout (dir, In, 4H) with PyTorch gate order
    [i, f, g, o].  Output gate-lane layout (eight H-blocks):
        [i_f, i_b, f_f, f_b, o_f, o_b, g_f, g_b]
    so sigmoid covers lanes [:6H], tanh covers lanes [6H:], and every 2H gate slice
    is aligned with the fused carry layout [h_fwd | h_bwd].
    """
    def gates(a, d):   # -> (i, f, o, g) blocks of direction d
        return a[d][:, 0:H], a[d][:, H:2 * H], a[d][:, 3 * H:4 * H], a[d][:, 2 * H:3 * H]

    i_f, f_f, o_f, g_f = gates(wih, 0)
    i_b, f_b, o_b, g_b = gates(wih, 1)
    wih_c = jnp.concatenate([i_f, i_b, f_f, f_b, o_f, o_b, g_f, g_b], axis=1)   # (In, 8H)

    bi_f, bf_f, bo_f, bg_f = gates(b, 0)
    bi_b, bf_b, bo_b, bg_b = gates(b, 1)
    b_c = jnp.concatenate([bi_f, bi_b, bf_f, bf_b, bo_f, bo_b, bg_f, bg_b], axis=1)

    hi_f, hf_f, ho_f, hg_f = gates(whh, 0)
    hi_b, hf_b, ho_b, hg_b = gates(whh, 1)
    z = jnp.zeros((H, H), jnp.float32)
    whh_c = jnp.concatenate([
        jnp.concatenate([hi_f, z, hf_f, z, ho_f, z, hg_f, z], axis=1),   # rows: h_fwd
        jnp.concatenate([z, hi_b, z, hf_b, z, ho_b, z, hg_b], axis=1),   # rows: h_bwd
    ], axis=0)                                                           # (2H, 8H)
    return wih_c, whh_c, b_c


def rnn_crf_loss(params, xc, xw, y0):
    """Equivalent of rnn_crf.forward(xc, xw, y0) -> scalar mean(Z - score)."""
    del xc  # EMBED = {'lookup': ...}: char embedding branch is unused
    Bn, T1 = y0.shape
    Tn = T1 - 1
    K = params["trans"].shape[0]

    mask_bt = (y0[:, 1:] > PAD_IDX).astype(jnp.float32)                   # (B, T)
    mask2d = jnp.transpose(mask_bt).reshape(Tn * Bn, 1)                   # time-major rows

    # embedding lookup (glue)
    emb = params["word_embed"][xw]                                        # (B, T, E)
    x2d = jnp.transpose(emb, (1, 0, 2)).reshape(Tn * Bn, EMBED_SIZE)      # (T*B, E)

    # fused / block-diagonal LSTM weights (layout glue, outside the kernel)
    wih0_c, whh0_c, b0_c = _combine_dir_weights(params["wih0"], params["whh0"], params["b0"])
    wih1_c, whh1_c, b1_c = _combine_dir_weights(params["wih1"], params["whh1"], params["b1"])

    # one-hot index glue for the gold-score gathers
    ohn2d = jnp.transpose(jax.nn.one_hot(y0[:, 1:], K, dtype=jnp.float32),
                          (1, 0, 2)).reshape(Tn * Bn, K)
    ohp2d = jnp.transpose(jax.nn.one_hot(y0[:, :-1], K, dtype=jnp.float32),
                          (1, 0, 2)).reshape(Tn * Bn, K)
    lens = jnp.sum(mask_bt, axis=1).astype(jnp.int32)                     # (B,)
    last_tag = jnp.take_along_axis(y0, lens[:, None], axis=1)[:, 0]       # y0[b, lens[b]]
    ohlast = jax.nn.one_hot(last_tag, K, dtype=jnp.float32)               # (B, K)

    loss = pl.pallas_call(
        functools.partial(rnn_crf_kernel, Tn, Bn),
        out_shape=jax.ShapeDtypeStruct((1, 1), jnp.float32),
        in_specs=_vmem_specs(14),
        out_specs=pl.BlockSpec(memory_space=pltpu.MemorySpace.VMEM),
        scratch_shapes=[pltpu.VMEM((Tn * Bn, 2 * H), jnp.float32) for _ in range(2)],
    )(x2d, mask2d,
      wih0_c, whh0_c, b0_c, wih1_c, whh1_c, b1_c,
      params["wout"], params["bout"], params["trans"],
      ohn2d, ohp2d, ohlast)

    return loss[0, 0]


def make_params(key):
    ks = jax.random.split(key, 12)
    k = 1.0 / math.sqrt(H)
    ko = 1.0 / math.sqrt(2 * H)

    def u(kk, shape, s):
        return jax.random.uniform(kk, shape, jnp.float32, -s, s)

    word_embed = (jax.random.normal(ks[0], (WTI_SIZE, EMBED_SIZE), jnp.float32) * 0.1)
    word_embed = word_embed.at[PAD_IDX].set(0.0)      # nn.Embedding(padding_idx=PAD_IDX)

    trans = jax.random.normal(ks[9], (NUM_TAGS, NUM_TAGS), jnp.float32)
    trans = trans.at[SOS_IDX, :].set(-10000.0)
    trans = trans.at[:, EOS_IDX].set(-10000.0)
    trans = trans.at[:, PAD_IDX].set(-10000.0)
    trans = trans.at[PAD_IDX, :].set(-10000.0)
    trans = trans.at[PAD_IDX, EOS_IDX].set(0.0)
    trans = trans.at[PAD_IDX, PAD_IDX].set(0.0)

    return dict(
        word_embed=word_embed,
        # LSTM weights stored pre-transposed: (dir, input_dim, 4H); bias (dir, 1, 4H)
        wih0=u(ks[1], (2, EMBED_SIZE, 4 * H), k),
        whh0=u(ks[2], (2, H, 4 * H), k),
        b0=u(ks[3], (2, 1, 4 * H), k),
        wih1=u(ks[4], (2, 2 * H, 4 * H), k),
        whh1=u(ks[5], (2, H, 4 * H), k),
        b1=u(ks[6], (2, 1, 4 * H), k),
        wout=u(ks[7], (2 * H, NUM_TAGS), ko),
        bout=u(ks[8], (1, NUM_TAGS), ko),
        trans=trans,
    )


# =====================================================================================
# Pure-JAX reference (same math, no Pallas) for a correctness check
# =====================================================================================
def reference_forward(params, xw, y0):
    Bn, T1 = y0.shape
    Tn = T1 - 1
    K = params["trans"].shape[0]
    mask = (y0[:, 1:] > PAD_IDX).astype(jnp.float32)
    x = params["word_embed"][xw]                                          # (B, T, E)

    def run_layer(x_bt, wih, whh, b):
        outs = []
        for d, reverse in enumerate([False, True]):
            h = jnp.zeros((Bn, H), jnp.float32)
            c = jnp.zeros((Bn, H), jnp.float32)
            ys = [None] * Tn
            order = range(Tn - 1, -1, -1) if reverse else range(Tn)
            for t in order:
                xt = x_bt[:, t]
                m = mask[:, t][:, None]
                g = xt @ wih[d] + h @ whh[d] + b[d]
                i_g = jax.nn.sigmoid(g[:, :H]); f_g = jax.nn.sigmoid(g[:, H:2 * H])
                g_g = jnp.tanh(g[:, 2 * H:3 * H]); o_g = jax.nn.sigmoid(g[:, 3 * H:])
                c_new = f_g * c + i_g * g_g
                h_new = o_g * jnp.tanh(c_new)
                h = m * h_new + (1.0 - m) * h
                c = m * c_new + (1.0 - m) * c
                ys[t] = h
            outs.append(jnp.stack(ys, axis=1))
        return jnp.concatenate(outs, axis=-1)

    h1 = run_layer(x, params["wih0"], params["whh0"], params["b0"])
    h2 = run_layer(h1, params["wih1"], params["whh1"], params["b1"])
    h = h2 @ params["wout"] + params["bout"]
    h = h * mask[:, :, None]

    trans = params["trans"]

    def lse(v):
        m = jnp.max(v, -1)
        return m + jnp.log(jnp.sum(jnp.exp(v - m[..., None]), -1))

    score = jnp.full((Bn, K), -10000.0).at[:, SOS_IDX].set(0.0)
    for t in range(Tn):
        m = mask[:, t][:, None]
        z = score[:, None, :] + h[:, t][:, :, None] + trans[None]
        score = lse(z) * m + score * (1.0 - m)
    Z = lse(score + trans[EOS_IDX])

    gold = jnp.zeros((Bn,), jnp.float32)
    for t in range(Tn):
        yn = y0[:, t + 1]
        yp = y0[:, t]
        emit = h[jnp.arange(Bn), t, yn]
        gold = gold + (emit + trans[yn, yp]) * mask[:, t]
    lens = jnp.sum(mask, axis=1).astype(jnp.int32)
    last_tag = y0[jnp.arange(Bn), lens]
    gold = gold + trans[EOS_IDX, last_tag]
    return jnp.mean(Z - gold)


# =====================================================================================
if __name__ == "__main__":
    key = jax.random.PRNGKey(0)
    kp, k1, k2, k3 = jax.random.split(key, 4)
    params = make_params(kp)

    # build y0 = [SOS, tag_1..tag_len, PAD...]; lengths sorted descending (pack semantics)
    lengths = [T, T - 2]
    tags0 = jax.random.randint(k1, (T,), 3, NUM_TAGS)
    tags1 = jax.random.randint(k2, (T,), 3, NUM_TAGS)
    y0 = jnp.zeros((B, T + 1), jnp.int32)
    y0 = y0.at[0, 0].set(SOS_IDX).at[0, 1:1 + lengths[0]].set(tags0[:lengths[0]])
    y0 = y0.at[1, 0].set(SOS_IDX).at[1, 1:1 + lengths[1]].set(tags1[:lengths[1]])

    mask_bt = (y0[:, 1:] > PAD_IDX).astype(jnp.int32)
    words = jax.random.randint(k3, (B, T), 3, WTI_SIZE)
    xw = jnp.where(mask_bt > 0, words, 0).astype(jnp.int32)               # (B, T)
    xc = jnp.zeros((B, T, 4), jnp.int32)                                  # unused (lookup-only embed)

    loss_kernel = jax.jit(rnn_crf_loss)(params, xc, xw, y0)
    jax.block_until_ready(loss_kernel)

    loss_ref = jax.jit(reference_forward)(params, xw, y0)
    jax.block_until_ready(loss_ref)

    assert jnp.isfinite(loss_kernel), "kernel produced non-finite loss"
    assert abs(float(loss_kernel) - float(loss_ref)) < 5e-2, (
        f"mismatch: kernel={float(loss_kernel)} ref={float(loss_ref)}")

    print("KERNEL_OK")
</pallas_src>

<mosaic_0001>
module attributes {stable_mosaic.version = 11 : i64} {
  func.func @rnn_crf_kernel(%arg0: memref<16x32xf32, #tpu.memory_space<vmem>>, %arg1: memref<16x1xf32, #tpu.memory_space<vmem>>, %arg2: memref<32x256xf32, #tpu.memory_space<vmem>>, %arg3: memref<64x256xf32, #tpu.memory_space<vmem>>, %arg4: memref<1x256xf32, #tpu.memory_space<vmem>>, %arg5: memref<64x256xf32, #tpu.memory_space<vmem>>, %arg6: memref<64x256xf32, #tpu.memory_space<vmem>>, %arg7: memref<1x256xf32, #tpu.memory_space<vmem>>, %arg8: memref<64x8xf32, #tpu.memory_space<vmem>>, %arg9: memref<1x8xf32, #tpu.memory_space<vmem>>, %arg10: memref<8x8xf32, #tpu.memory_space<vmem>>, %arg11: memref<16x8xf32, #tpu.memory_space<vmem>>, %arg12: memref<16x8xf32, #tpu.memory_space<vmem>>, %arg13: memref<2x8xf32, #tpu.memory_space<vmem>>, %arg14: memref<1x1xf32, #tpu.memory_space<vmem>>, %arg15: memref<16x64xf32, #tpu.memory_space<vmem>>, %arg16: memref<16x64xf32, #tpu.memory_space<vmem>>) attributes {dimension_semantics = [], scalar_prefetch = 0 : i64, scratch_operands = 2 : i64, tpu.core_type = #tpu.core_type<tc>} {
    %c0 = arith.constant 0 : index
    %c0_0 = arith.constant 0 : index
    %0 = vector.load %arg1[%c0, %c0_0] : memref<16x1xf32, #tpu.memory_space<vmem>>, vector<16x1xf32>
    %1 = tpu.iota {dimensions = array<i32: 1>} : vector<1x256xi32>
    %c32_i32 = arith.constant 32 : i32
    %2 = vector.broadcast %c32_i32 : i32 to vector<1x256xi32>
    %3 = arith.andi %1, %2 : vector<1x256xi32>
    %c0_i32 = arith.constant 0 : i32
    %4 = vector.broadcast %c0_i32 : i32 to vector<1x256xi32>
    %5 = arith.cmpi ne, %3, %4 : vector<1x256xi32>
    %cst = arith.constant 1.000000e+00 : f32
    %cst_1 = arith.constant 0.000000e+00 : f32
    %6 = vector.broadcast %cst : f32 to vector<1x256xf32>
    %7 = vector.broadcast %cst_1 : f32 to vector<1x256xf32>
    %8 = arith.select %5, %6, %7 : vector<1x256xi1>, vector<1x256xf32>
    %9 = tpu.iota {dimensions = array<i32: 1>} : vector<1x64xi32>
    %c32_i32_2 = arith.constant 32 : i32
    %10 = vector.broadcast %c32_i32_2 : i32 to vector<1x64xi32>
    %11 = arith.cmpi sge, %9, %10 : vector<1x64xi32>
    %cst_3 = arith.constant 1.000000e+00 : f32
    %cst_4 = arith.constant 0.000000e+00 : f32
    %12 = vector.broadcast %cst_3 : f32 to vector<1x64xf32>
    %13 = vector.broadcast %cst_4 : f32 to vector<1x64xf32>
    %14 = arith.select %11, %12, %13 : vector<1x64xi1>, vector<1x64xf32>
    %c0_5 = arith.constant 0 : index
    %c0_6 = arith.constant 0 : index
    %15 = vector.load %arg0[%c0_5, %c0_6] : memref<16x32xf32, #tpu.memory_space<vmem>>, vector<16x32xf32>
    %c0_7 = arith.constant 0 : index
    %c0_8 = arith.constant 0 : index
    %16 = vector.load %arg2[%c0_7, %c0_8] : memref<32x256xf32, #tpu.memory_space<vmem>>, vector<32x256xf32>
    %c0_9 = arith.constant 0 : index
    %c0_10 = arith.constant 0 : index
    %17 = vector.load %arg4[%c0_9, %c0_10] : memref<1x256xf32, #tpu.memory_space<vmem>>, vector<1x256xf32>
    %c0_11 = arith.constant 0 : index
    %c0_12 = arith.constant 0 : index
    %18 = vector.load %arg3[%c0_11, %c0_12] : memref<64x256xf32, #tpu.memory_space<vmem>>, vector<64x256xf32>
    %cst_13 = arith.constant dense<0.000000e+00> : vector<16x256xf32>
    %19 = tpu.matmul %15, %16, %cst_13 {dimension_numbers = #tpu.dot_dimension_numbers<[1], [0], [0], [1], [0, 0, 1, 1], [], []>} : vector<16x32xf32>, vector<32x256xf32>, vector<16x256xf32> -> vector<16x256xf32>
    %20 = vector.broadcast %17 : vector<1x256xf32> to vector<16x256xf32>
    %21 = arith.addf %19, %20 : vector<16x256xf32>
    %cst_14 = arith.constant 0.000000e+00 : f32
    %22 = vector.broadcast %cst_14 : f32 to vector<2x64xf32>
    %cst_15 = arith.constant 0.000000e+00 : f32
    %23 = vector.broadcast %cst_15 : f32 to vector<2x64xf32>
    %24 = vector.extract_strided_slice %21 {offsets = [0, 0], sizes = [2, 256], strides = [1, 1]} : vector<16x256xf32> to vector<2x256xf32>
    %25 = vector.extract_strided_slice %21 {offsets = [14, 0], sizes = [2, 256], strides = [1, 1]} : vector<16x256xf32> to vector<2x256xf32>
    %26 = arith.subf %25, %24 : vector<2x256xf32>
    %27 = vector.broadcast %8 : vector<1x256xf32> to vector<2x256xf32>
    %28 = arith.mulf %27, %26 : vector<2x256xf32>
    %29 = arith.addf %24, %28 : vector<2x256xf32>
    %cst_16 = arith.constant dense<0.000000e+00> : vector<2x256xf32>
    %30 = tpu.matmul %22, %18, %cst_16 {dimension_numbers = #tpu.dot_dimension_numbers<[1], [0], [0], [1], [0, 0, 1, 1], [], []>} : vector<2x64xf32>, vector<64x256xf32>, vector<2x256xf32> -> vector<2x256xf32>
    %31 = arith.addf %29, %30 : vector<2x256xf32>
    %32 = vector.extract_strided_slice %31 {offsets = [0, 0], sizes = [2, 192], strides = [1, 1]} : vector<2x256xf32> to vector<2x192xf32>
    %33 = arith.negf %32 : vector<2x192xf32>
    %34 = math.exp %33 : vector<2x192xf32>
    %cst_17 = arith.constant 1.000000e+00 : f32
    %35 = vector.broadcast %cst_17 : f32 to vector<2x192xf32>
    %36 = arith.addf %35, %34 : vector<2x192xf32>
    %37 = arith.divf %35, %36 : vector<2x192xf32>
    %38 = vector.extract_strided_slice %37 {offsets = [0, 0], sizes = [2, 64], strides = [1, 1]} : vector<2x192xf32> to vector<2x64xf32>
    %39 = vector.extract_strided_slice %37 {offsets = [0, 64], sizes = [2, 64], strides = [1, 1]} : vector<2x192xf32> to vector<2x64xf32>
    %40 = vector.extract_strided_slice %37 {offsets = [0, 128], sizes = [2, 64], strides = [1, 1]} : vector<2x192xf32> to vector<2x64xf32>
    %41 = vector.extract_strided_slice %31 {offsets = [0, 192], sizes = [2, 64], strides = [1, 1]} : vector<2x256xf32> to vector<2x64xf32>
    %42 = math.tanh %41 : vector<2x64xf32>
    %43 = arith.mulf %39, %23 : vector<2x64xf32>
    %44 = arith.mulf %38, %42 : vector<2x64xf32>
    %45 = arith.addf %43, %44 : vector<2x64xf32>
    %46 = math.tanh %45 : vector<2x64xf32>
    %47 = arith.mulf %40, %46 : vector<2x64xf32>
    %48 = vector.extract_strided_slice %0 {offsets = [0, 0], sizes = [2, 1], strides = [1, 1]} : vector<16x1xf32> to vector<2x1xf32>
    %49 = vector.extract_strided_slice %0 {offsets = [14, 0], sizes = [2, 1], strides = [1, 1]} : vector<16x1xf32> to vector<2x1xf32>
    %50 = arith.subf %49, %48 : vector<2x1xf32>
    %51 = vector.broadcast %14 : vector<1x64xf32> to vector<2x64xf32>
    %52 = vector.broadcast %50 : vector<2x1xf32> to vector<2x64xf32>
    %53 = arith.mulf %51, %52 : vector<2x64xf32>
    %54 = vector.broadcast %48 : vector<2x1xf32> to vector<2x64xf32>
    %55 = arith.addf %54, %53 : vector<2x64xf32>
    %56 = arith.subf %47, %22 : vector<2x64xf32>
    %57 = arith.mulf %55, %56 : vector<2x64xf32>
    %58 = arith.addf %22, %57 : vector<2x64xf32>
    %59 = arith.subf %45, %23 : vector<2x64xf32>
    %60 = arith.mulf %55, %59 : vector<2x64xf32>
    %61 = arith.addf %23, %60 : vector<2x64xf32>
    %62 = vector.extract_strided_slice %58 {offsets = [0, 0], sizes = [2, 32], strides = [1, 1]} : vector<2x64xf32> to vector<2x32xf32>
    %c0_18 = arith.constant 0 : index
    %c0_19 = arith.constant 0 : index
    %63 = vector.load %arg15[%c0_18, %c0_19] : memref<16x64xf32, #tpu.memory_space<vmem>>, vector<2x32xf32>
    tpu.vector_store %arg15[%c0_18, %c0_19], %62 {strides = array<i32>} : memref<16x64xf32, #tpu.memory_space<vmem>>, vector<2x32xf32>,
    %64 = vector.extract_strided_slice %58 {offsets = [0, 32], sizes = [2, 32], strides = [1, 1]} : vector<2x64xf32> to vector<2x32xf32>
    %c14 = arith.constant 14 : index
    %c32 = arith.constant 32 : index
    %65 = vector.load %arg15[%c14, %c32] : memref<16x64xf32, #tpu.memory_space<vmem>>, vector<2x32xf32>
    tpu.vector_store %arg15[%c14, %c32], %64 {strides = array<i32>} : memref<16x64xf32, #tpu.memory_space<vmem>>, vector<2x32xf32>,
    %66 = vector.extract_strided_slice %21 {offsets = [2, 0], sizes = [2, 256], strides = [1, 1]} : vector<16x256xf32> to vector<2x256xf32>
    %67 = vector.extract_strided_slice %21 {offsets = [12, 0], sizes = [2, 256], strides = [1, 1]} : vector<16x256xf32> to vector<2x256xf32>
    %68 = arith.subf %67, %66 : vector<2x256xf32>
    %69 = vector.broadcast %8 : vector<1x256xf32> to vector<2x256xf32>
    %70 = arith.mulf %69, %68 : vector<2x256xf32>
    %71 = arith.addf %66, %70 : vector<2x256xf32>
    %cst_20 = arith.constant dense<0.000000e+00> : vector<2x256xf32>
    %72 = tpu.matmul %58, %18, %cst_20 {dimension_numbers = #tpu.dot_dimension_numbers<[1], [0], [0], [1], [0, 0, 1, 1], [], []>} : vector<2x64xf32>, vector<64x256xf32>, vector<2x256xf32> -> vector<2x256xf32>
    %73 = arith.addf %71, %72 : vector<2x256xf32>
    %74 = vector.extract_strided_slice %73 {offsets = [0, 0], sizes = [2, 192], strides = [1, 1]} : vector<2x256xf32> to vector<2x192xf32>
    %75 = arith.negf %74 : vector<2x192xf32>
    %76 = math.exp %75 : vector<2x192xf32>
    %cst_21 = arith.constant 1.000000e+00 : f32
    %77 = vector.broadcast %cst_21 : f32 to vector<2x192xf32>
    %78 = arith.addf %77, %76 : vector<2x192xf32>
    %79 = arith.divf %77, %78 : vector<2x192xf32>
    %80 = vector.extract_strided_slice %79 {offsets = [0, 0], sizes = [2, 64], strides = [1, 1]} : vector<2x192xf32> to vector<2x64xf32>
    %81 = vector.extract_strided_slice %79 {offsets = [0, 64], sizes = [2, 64], strides = [1, 1]} : vector<2x192xf32> to vector<2x64xf32>
    %82 = vector.extract_strided_slice %79 {offsets = [0, 128], sizes = [2, 64], strides = [1, 1]} : vector<2x192xf32> to vector<2x64xf32>
    %83 = vector.extract_strided_slice %73 {offsets = [0, 192], sizes = [2, 64], strides = [1, 1]} : vector<2x256xf32> to vector<2x64xf32>
    %84 = math.tanh %83 : vector<2x64xf32>
    %85 = arith.mulf %81, %61 : vector<2x64xf32>
    %86 = arith.mulf %80, %84 : vector<2x64xf32>
    %87 = arith.addf %85, %86 : vector<2x64xf32>
    %88 = math.tanh %87 : vector<2x64xf32>
    %89 = arith.mulf %82, %88 : vector<2x64xf32>
    %90 = vector.extract_strided_slice %0 {offsets = [2, 0], sizes = [2, 1], strides = [1, 1]} : vector<16x1xf32> to vector<2x1xf32>
    %91 = vector.extract_strided_slice %0 {offsets = [12, 0], sizes = [2, 1], strides = [1, 1]} : vector<16x1xf32> to vector<2x1xf32>
    %92 = arith.subf %91, %90 : vector<2x1xf32>
    %93 = vector.broadcast %14 : vector<1x64xf32> to vector<2x64xf32>
    %94 = vector.broadcast %92 : vector<2x1xf32> to vector<2x64xf32>
    %95 = arith.mulf %93, %94 : vector<2x64xf32>
    %96 = vector.broadcast %90 : vector<2x1xf32> to vector<2x64xf32>
    %97 = arith.addf %96, %95 : vector<2x64xf32>
    %98 = arith.subf %89, %58 : vector<2x64xf32>
    %99 = arith.mulf %97, %98 : vector<2x64xf32>
    %100 = arith.addf %58, %99 : vector<2x64xf32>
    %101 = arith.subf %87, %61 : vector<2x64xf32>
    %102 = arith.mulf %97, %101 : vector<2x64xf32>
    %103 = arith.addf %61, %102 : vector<2x64xf32>
    %104 = vector.extract_strided_slice %100 {offsets = [0, 0], sizes = [2, 32], strides = [1, 1]} : vector<2x64xf32> to vector<2x32xf32>
    %c2 = arith.constant 2 : index
    %c0_22 = arith.constant 0 : index
    %105 = vector.load %arg15[%c2, %c0_22] : memref<16x64xf32, #tpu.memory_space<vmem>>, vector<2x32xf32>
    tpu.vector_store %arg15[%c2, %c0_22], %104 {strides = array<i32>} : memref<16x64xf32, #tpu.memory_space<vmem>>, vector<2x32xf32>,
    %106 = vector.extract_strided_slice %100 {offsets = [0, 32], sizes = [2, 32], strides = [1, 1]} : vector<2x64xf32> to vector<2x32xf32>
    %c12 = arith.constant 12 : index
    %c32_23 = arith.constant 32 : index
    %107 = vector.load %arg15[%c12, %c32_23] : memref<16x64xf32, #tpu.memory_space<vmem>>, vector<2x32xf32>
    tpu.vector_store %arg15[%c12, %c32_23], %106 {strides = array<i32>} : memref<16x64xf32, #tpu.memory_space<vmem>>, vector<2x32xf32>,
    %108 = vector.extract_strided_slice %21 {offsets = [4, 0], sizes = [2, 256], strides = [1, 1]} : vector<16x256xf32> to vector<2x256xf32>
    %109 = vector.extract_strided_slice %21 {offsets = [10, 0], sizes = [2, 256], strides = [1, 1]} : vector<16x256xf32> to vector<2x256xf32>
    %110 = arith.subf %109, %108 : vector<2x256xf32>
    %111 = vector.broadcast %8 : vector<1x256xf32> to vector<2x256xf32>
    %112 = arith.mulf %111, %110 : vector<2x256xf32>
    %113 = arith.addf %108, %112 : vector<2x256xf32>
    %cst_24 = arith.constant dense<0.000000e+00> : vector<2x256xf32>
    %114 = tpu.matmul %100, %18, %cst_24 {dimension_numbers = #tpu.dot_dimension_numbers<[1], [0], [0], [1], [0, 0, 1, 1], [], []>} : vector<2x64xf32>, vector<64x256xf32>, vector<2x256xf32> -> vector<2x256xf32>
    %115 = arith.addf %113, %114 : vector<2x256xf32>
    %116 = vector.extract_strided_slice %115 {offsets = [0, 0], sizes = [2, 192], strides = [1, 1]} : vector<2x256xf32> to vector<2x192xf32>
    %117 = arith.negf %116 : vector<2x192xf32>
    %118 = math.exp %117 : vector<2x192xf32>
    %cst_25 = arith.constant 1.000000e+00 : f32
    %119 = vector.broadcast %cst_25 : f32 to vector<2x192xf32>
    %120 = arith.addf %119, %118 : vector<2x192xf32>
    %121 = arith.divf %119, %120 : vector<2x192xf32>
    %122 = vector.extract_strided_slice %121 {offsets = [0, 0], sizes = [2, 64], strides = [1, 1]} : vector<2x192xf32> to vector<2x64xf32>
    %123 = vector.extract_strided_slice %121 {offsets = [0, 64], sizes = [2, 64], strides = [1, 1]} : vector<2x192xf32> to vector<2x64xf32>
    %124 = vector.extract_strided_slice %121 {offsets = [0, 128], sizes = [2, 64], strides = [1, 1]} : vector<2x192xf32> to vector<2x64xf32>
    %125 = vector.extract_strided_slice %115 {offsets = [0, 192], sizes = [2, 64], strides = [1, 1]} : vector<2x256xf32> to vector<2x64xf32>
    %126 = math.tanh %125 : vector<2x64xf32>
    %127 = arith.mulf %123, %103 : vector<2x64xf32>
    %128 = arith.mulf %122, %126 : vector<2x64xf32>
    %129 = arith.addf %127, %128 : vector<2x64xf32>
    %130 = math.tanh %129 : vector<2x64xf32>
    %131 = arith.mulf %124, %130 : vector<2x64xf32>
    %132 = vector.extract_strided_slice %0 {offsets = [4, 0], sizes = [2, 1], strides = [1, 1]} : vector<16x1xf32> to vector<2x1xf32>
    %133 = vector.extract_strided_slice %0 {offsets = [10, 0], sizes = [2, 1], strides = [1, 1]} : vector<16x1xf32> to vector<2x1xf32>
    %134 = arith.subf %133, %132 : vector<2x1xf32>
    %135 = vector.broadcast %14 : vector<1x64xf32> to vector<2x64xf32>
    %136 = vector.broadcast %134 : vector<2x1xf32> to vector<2x64xf32>
    %137 = arith.mulf %135, %136 : vector<2x64xf32>
    %138 = vector.broadcast %132 : vector<2x1xf32> to vector<2x64xf32>
    %139 = arith.addf %138, %137 : vector<2x64xf32>
    %140 = arith.subf %131, %100 : vector<2x64xf32>
    %141 = arith.mulf %139, %140 : vector<2x64xf32>
    %142 = arith.addf %100, %141 : vector<2x64xf32>
    %143 = arith.subf %129, %103 : vector<2x64xf32>
    %144 = arith.mulf %139, %143 : vector<2x64xf32>
    %145 = arith.addf %103, %144 : vector<2x64xf32>
    %146 = vector.extract_strided_slice %142 {offsets = [0, 0], sizes = [2, 32], strides = [1, 1]} : vector<2x64xf32> to vector<2x32xf32>
    %c4 = arith.constant 4 : index
    %c0_26 = arith.constant 0 : index
    %147 = vector.load %arg15[%c4, %c0_26] : memref<16x64xf32, #tpu.memory_space<vmem>>, vector<2x32xf32>
    tpu.vector_store %arg15[%c4, %c0_26], %146 {strides = array<i32>} : memref<16x64xf32, #tpu.memory_space<vmem>>, vector<2x32xf32>,
    %148 = vector.extract_strided_slice %142 {offsets = [0, 32], sizes = [2, 32], strides = [1, 1]} : vector<2x64xf32> to vector<2x32xf32>
    %c10 = arith.constant 10 : index
    %c32_27 = arith.constant 32 : index
    %149 = vector.load %arg15[%c10, %c32_27] : memref<16x64xf32, #tpu.memory_space<vmem>>, vector<2x32xf32>
    tpu.vector_store %arg15[%c10, %c32_27], %148 {strides = array<i32>} : memref<16x64xf32, #tpu.memory_space<vmem>>, vector<2x32xf32>,
    %150 = vector.extract_strided_slice %21 {offsets = [6, 0], sizes = [2, 256], strides = [1, 1]} : vector<16x256xf32> to vector<2x256xf32>
    %151 = vector.extract_strided_slice %21 {offsets = [8, 0], sizes = [2, 256], strides = [1, 1]} : vector<16x256xf32> to vector<2x256xf32>
    %152 = arith.subf %151, %150 : vector<2x256xf32>
    %153 = vector.broadcast %8 : vector<1x256xf32> to vector<2x256xf32>
    %154 = arith.mulf %153, %152 : vector<2x256xf32>
    %155 = arith.addf %150, %154 : vector<2x256xf32>
    %cst_28 = arith.constant dense<0.000000e+00> : vector<2x256xf32>
    %156 = tpu.matmul %142, %18, %cst_28 {dimension_numbers = #tpu.dot_dimension_numbers<[1], [0], [0], [1], [0, 0, 1, 1], [], []>} : vector<2x64xf32>, vector<64x256xf32>, vector<2x256xf32> -> vector<2x256xf32>
    %157 = arith.addf %155, %156 : vector<2x256xf32>
    %158 = vector.extract_strided_slice %157 {offsets = [0, 0], sizes = [2, 192], strides = [1, 1]} : vector<2x256xf32> to vector<2x192xf32>
    %159 = arith.negf %158 : vector<2x192xf32>
    %160 = math.exp %159 : vector<2x192xf32>
    %cst_29 = arith.constant 1.000000e+00 : f32
    %161 = vector.broadcast %cst_29 : f32 to vector<2x192xf32>
    %162 = arith.addf %161, %160 : vector<2x192xf32>
    %163 = arith.divf %161, %162 : vector<2x192xf32>
    %164 = vector.extract_strided_slice %163 {offsets = [0, 0], sizes = [2, 64], strides = [1, 1]} : vector<2x192xf32> to vector<2x64xf32>
    %165 = vector.extract_strided_slice %163 {offsets = [0, 64], sizes = [2, 64], strides = [1, 1]} : vector<2x192xf32> to vector<2x64xf32>
    %166 = vector.extract_strided_slice %163 {offsets = [0, 128], sizes = [2, 64], strides = [1, 1]} : vector<2x192xf32> to vector<2x64xf32>
    %167 = vector.extract_strided_slice %157 {offsets = [0, 192], sizes = [2, 64], strides = [1, 1]} : vector<2x256xf32> to vector<2x64xf32>
    %168 = math.tanh %167 : vector<2x64xf32>
    %169 = arith.mulf %165, %145 : vector<2x64xf32>
    %170 = arith.mulf %164, %168 : vector<2x64xf32>
    %171 = arith.addf %169, %170 : vector<2x64xf32>
    %172 = math.tanh %171 : vector<2x64xf32>
    %173 = arith.mulf %166, %172 : vector<2x64xf32>
    %174 = vector.extract_strided_slice %0 {offsets = [6, 0], sizes = [2, 1], strides = [1, 1]} : vector<16x1xf32> to vector<2x1xf32>
    %175 = vector.extract_strided_slice %0 {offsets = [8, 0], sizes = [2, 1], strides = [1, 1]} : vector<16x1xf32> to vector<2x1xf32>
    %176 = arith.subf %175, %174 : vector<2x1xf32>
    %177 = vector.broadcast %14 : vector<1x64xf32> to vector<2x64xf32>
    %178 = vector.broadcast %176 : vector<2x1xf32> to vector<2x64xf32>
    %179 = arith.mulf %177, %178 : vector<2x64xf32>
    %180 = vector.broadcast %174 : vector<2x1xf32> to vector<2x64xf32>
    %181 = arith.addf %180, %179 : vector<2x64xf32>
    %182 = arith.subf %173, %142 : vector<2x64xf32>
    %183 = arith.mulf %181, %182 : vector<2x64xf32>
    %184 = arith.addf %142, %183 : vector<2x64xf32>
    %185 = arith.subf %171, %145 : vector<2x64xf32>
    %186 = arith.mulf %181, %185 : vector<2x64xf32>
    %187 = arith.addf %145, %186 : vector<2x64xf32>
    %188 = vector.extract_strided_slice %184 {offsets = [0, 0], sizes = [2, 32], strides = [1, 1]} : vector<2x64xf32> to vector<2x32xf32>
    %c6 = arith.constant 6 : index
    %c0_30 = arith.constant 0 : index
    %189 = vector.load %arg15[%c6, %c0_30] : memref<16x64xf32, #tpu.memory_space<vmem>>, vector<2x32xf32>
    tpu.vector_store %arg15[%c6, %c0_30], %188 {strides = array<i32>} : memref<16x64xf32, #tpu.memory_space<vmem>>, vector<2x32xf32>,
    %190 = vector.extract_strided_slice %184 {offsets = [0, 32], sizes = [2, 32], strides = [1, 1]} : vector<2x64xf32> to vector<2x32xf32>
    %c8 = arith.constant 8 : index
    %c32_31 = arith.constant 32 : index
    %191 = vector.load %arg15[%c8, %c32_31] : memref<16x64xf32, #tpu.memory_space<vmem>>, vector<2x32xf32>
    tpu.vector_store %arg15[%c8, %c32_31], %190 {strides = array<i32>} : memref<16x64xf32, #tpu.memory_space<vmem>>, vector<2x32xf32>,
    %192 = vector.extract_strided_slice %21 {offsets = [8, 0], sizes = [2, 256], strides = [1, 1]} : vector<16x256xf32> to vector<2x256xf32>
    %193 = vector.extract_strided_slice %21 {offsets = [6, 0], sizes = [2, 256], strides = [1, 1]} : vector<16x256xf32> to vector<2x256xf32>
    %194 = arith.subf %193, %192 : vector<2x256xf32>
    %195 = vector.broadcast %8 : vector<1x256xf32> to vector<2x256xf32>
    %196 = arith.mulf %195, %194 : vector<2x256xf32>
    %197 = arith.addf %192, %196 : vector<2x256xf32>
    %cst_32 = arith.constant dense<0.000000e+00> : vector<2x256xf32>
    %198 = tpu.matmul %184, %18, %cst_32 {dimension_numbers = #tpu.dot_dimension_numbers<[1], [0], [0], [1], [0, 0, 1, 1], [], []>} : vector<2x64xf32>, vector<64x256xf32>, vector<2x256xf32> -> vector<2x256xf32>
    %199 = arith.addf %197, %198 : vector<2x256xf32>
    %200 = vector.extract_strided_slice %199 {offsets = [0, 0], sizes = [2, 192], strides = [1, 1]} : vector<2x256xf32> to vector<2x192xf32>
    %201 = arith.negf %200 : vector<2x192xf32>
    %202 = math.exp %201 : vector<2x192xf32>
    %cst_33 = arith.constant 1.000000e+00 : f32
    %203 = vector.broadcast %cst_33 : f32 to vector<2x192xf32>
    %204 = arith.addf %203, %202 : vector<2x192xf32>
    %205 = arith.divf %203, %204 : vector<2x192xf32>
    %206 = vector.extract_strided_slice %205 {offsets = [0, 0], sizes = [2, 64], strides = [1, 1]} : vector<2x192xf32> to vector<2x64xf32>
    %207 = vector.extract_strided_slice %205 {offsets = [0, 64], sizes = [2, 64], strides = [1, 1]} : vector<2x192xf32> to vector<2x64xf32>
    %208 = vector.extract_strided_slice %205 {offsets = [0, 128], sizes = [2, 64], strides = [1, 1]} : vector<2x192xf32> to vector<2x64xf32>
    %209 = vector.extract_strided_slice %199 {offsets = [0, 192], sizes = [2, 64], strides = [1, 1]} : vector<2x256xf32> to vector<2x64xf32>
    %210 = math.tanh %209 : vector<2x64xf32>
    %211 = arith.mulf %207, %187 : vector<2x64xf32>
    %212 = arith.mulf %206, %210 : vector<2x64xf32>
    %213 = arith.addf %211, %212 : vector<2x64xf32>
    %214 = math.tanh %213 : vector<2x64xf32>
    %215 = arith.mulf %208, %214 : vector<2x64xf32>
    %216 = vector.extract_strided_slice %0 {offsets = [8, 0], sizes = [2, 1], strides = [1, 1]} : vector<16x1xf32> to vector<2x1xf32>
    %217 = vector.extract_strided_slice %0 {offsets = [6, 0], sizes = [2, 1], strides = [1, 1]} : vector<16x1xf32> to vector<2x1xf32>
    %218 = arith.subf %217, %216 : vector<2x1xf32>
    %219 = vector.broadcast %14 : vector<1x64xf32> to vector<2x64xf32>
    %220 = vector.broadcast %218 : vector<2x1xf32> to vector<2x64xf32>
    %221 = arith.mulf %219, %220 : vector<2x64xf32>
    %222 = vector.broadcast %216 : vector<2x1xf32> to vector<2x64xf32>
    %223 = arith.addf %222, %221 : vector<2x64xf32>
    %224 = arith.subf %215, %184 : vector<2x64xf32>
    %225 = arith.mulf %223, %224 : vector<2x64xf32>
    %226 = arith.addf %184, %225 : vector<2x64xf32>
    %227 = arith.subf %213, %187 : vector<2x64xf32>
    %228 = arith.mulf %223, %227 : vector<2x64xf32>
    %229 = arith.addf %187, %228 : vector<2x64xf32>
    %230 = vector.extract_strided_slice %226 {offsets = [0, 0], sizes = [2, 32], strides = [1, 1]} : vector<2x64xf32> to vector<2x32xf32>
    %c8_34 = arith.constant 8 : index
    %c0_35 = arith.constant 0 : index
    %231 = vector.load %arg15[%c8_34, %c0_35] : memref<16x64xf32, #tpu.memory_space<vmem>>, vector<2x32xf32>
    tpu.vector_store %arg15[%c8_34, %c0_35], %230 {strides = array<i32>} : memref<16x64xf32, #tpu.memory_space<vmem>>, vector<2x32xf32>,
    %232 = vector.extract_strided_slice %226 {offsets = [0, 32], sizes = [2, 32], strides = [1, 1]} : vector<2x64xf32> to vector<2x32xf32>
    %c6_36 = arith.constant 6 : index
    %c32_37 = arith.constant 32 : index
    %233 = vector.load %arg15[%c6_36, %c32_37] : memref<16x64xf32, #tpu.memory_space<vmem>>, vector<2x32xf32>
    tpu.vector_store %arg15[%c6_36, %c32_37], %232 {strides = array<i32>} : memref<16x64xf32, #tpu.memory_space<vmem>>, vector<2x32xf32>,
    %234 = vector.extract_strided_slice %21 {offsets = [10, 0], sizes = [2, 256], strides = [1, 1]} : vector<16x256xf32> to vector<2x256xf32>
    %235 = vector.extract_strided_slice %21 {offsets = [4, 0], sizes = [2, 256], strides = [1, 1]} : vector<16x256xf32> to vector<2x256xf32>
    %236 = arith.subf %235, %234 : vector<2x256xf32>
    %237 = vector.broadcast %8 : vector<1x256xf32> to vector<2x256xf32>
    %238 = arith.mulf %237, %236 : vector<2x256xf32>
    %239 = arith.addf %234, %238 : vector<2x256xf32>
    %cst_38 = arith.constant dense<0.000000e+00> : vector<2x256xf32>
    %240 = tpu.matmul %226, %18, %cst_38 {dimension_numbers = #tpu.dot_dimension_numbers<[1], [0], [0], [1], [0, 0, 1, 1], [], []>} : vector<2x64xf32>, vector<64x256xf32>, vector<2x256xf32> -> vector<2x256xf32>
    %241 = arith.addf %239, %240 : vector<2x256xf32>
    %242 = vector.extract_strided_slice %241 {offsets = [0, 0], sizes = [2, 192], strides = [1, 1]} : vector<2x256xf32> to vector<2x192xf32>
    %243 = arith.negf %242 : vector<2x192xf32>
    %244 = math.exp %243 : vector<2x192xf32>
    %cst_39 = arith.constant 1.000000e+00 : f32
    %245 = vector.broadcast %cst_39 : f32 to vector<2x192xf32>
    %246 = arith.addf %245, %244 : vector<2x192xf32>
    %247 = arith.divf %245, %246 : vector<2x192xf32>
    %248 = vector.extract_strided_slice %247 {offsets = [0, 0], sizes = [2, 64], strides = [1, 1]} : vector<2x192xf32> to vector<2x64xf32>
    %249 = vector.extract_strided_slice %247 {offsets = [0, 64], sizes = [2, 64], strides = [1, 1]} : vector<2x192xf32> to vector<2x64xf32>
    %250 = vector.extract_strided_slice %247 {offsets = [0, 128], sizes = [2, 64], strides = [1, 1]} : vector<2x192xf32> to vector<2x64xf32>
    %251 = vector.extract_strided_slice %241 {offsets = [0, 192], sizes = [2, 64], strides = [1, 1]} : vector<2x256xf32> to vector<2x64xf32>
    %252 = math.tanh %251 : vector<2x64xf32>
    %253 = arith.mulf %249, %229 : vector<2x64xf32>
    %254 = arith.mulf %248, %252 : vector<2x64xf32>
    %255 = arith.addf %253, %254 : vector<2x64xf32>
    %256 = math.tanh %255 : vector<2x64xf32>
    %257 = arith.mulf %250, %256 : vector<2x64xf32>
    %258 = vector.extract_strided_slice %0 {offsets = [10, 0], sizes = [2, 1], strides = [1, 1]} : vector<16x1xf32> to vector<2x1xf32>
    %259 = vector.extract_strided_slice %0 {offsets = [4, 0], sizes = [2, 1], strides = [1, 1]} : vector<16x1xf32> to vector<2x1xf32>
    %260 = arith.subf %259, %258 : vector<2x1xf32>
    %261 = vector.broadcast %14 : vector<1x64xf32> to vector<2x64xf32>
    %262 = vector.broadcast %260 : vector<2x1xf32> to vector<2x64xf32>
    %263 = arith.mulf %261, %262 : vector<2x64xf32>
    %264 = vector.broadcast %258 : vector<2x1xf32> to vector<2x64xf32>
    %265 = arith.addf %264, %263 : vector<2x64xf32>
    %266 = arith.subf %257, %226 : vector<2x64xf32>
    %267 = arith.mulf %265, %266 : vector<2x64xf32>
    %268 = arith.addf %226, %267 : vector<2x64xf32>
    %269 = arith.subf %255, %229 : vector<2x64xf32>
    %270 = arith.mulf %265, %269 : vector<2x64xf32>
    %271 = arith.addf %229, %270 : vector<2x64xf32>
    %272 = vector.extract_strided_slice %268 {offsets = [0, 0], sizes = [2, 32], strides = [1, 1]} : vector<2x64xf32> to vector<2x32xf32>
    %c10_40 = arith.constant 10 : index
    %c0_41 = arith.constant 0 : index
    %273 = vector.load %arg15[%c10_40, %c0_41] : memref<16x64xf32, #tpu.memory_space<vmem>>, vector<2x32xf32>
    tpu.vector_store %arg15[%c10_40, %c0_41], %272 {strides = array<i32>} : memref<16x64xf32, #tpu.memory_space<vmem>>, vector<2x32xf32>,
    %274 = vector.extract_strided_slice %268 {offsets = [0, 32], sizes = [2, 32], strides = [1, 1]} : vector<2x64xf32> to vector<2x32xf32>
    %c4_42 = arith.constant 4 : index
    %c32_43 = arith.constant 32 : index
    %275 = vector.load %arg15[%c4_42, %c32_43] : memref<16x64xf32, #tpu.memory_space<vmem>>, vector<2x32xf32>
    tpu.vector_store %arg15[%c4_42, %c32_43], %274 {strides = array<i32>} : memref<16x64xf32, #tpu.memory_space<vmem>>, vector<2x32xf32>,
    %276 = vector.extract_strided_slice %21 {offsets = [12, 0], sizes = [2, 256], strides = [1, 1]} : vector<16x256xf32> to vector<2x256xf32>
    %277 = vector.extract_strided_slice %21 {offsets = [2, 0], sizes = [2, 256], strides = [1, 1]} : vector<16x256xf32> to vector<2x256xf32>
    %278 = arith.subf %277, %276 : vector<2x256xf32>
    %279 = vector.broadcast %8 : vector<1x256xf32> to vector<2x256xf32>
    %280 = arith.mulf %279, %278 : vector<2x256xf32>
    %281 = arith.addf %276, %280 : vector<2x256xf32>
    %cst_44 = arith.constant dense<0.000000e+00> : vector<2x256xf32>
    %282 = tpu.matmul %268, %18, %cst_44 {dimension_numbers = #tpu.dot_dimension_numbers<[1], [0], [0], [1], [0, 0, 1, 1], [], []>} : vector<2x64xf32>, vector<64x256xf32>, vector<2x256xf32> -> vector<2x256xf32>
    %283 = arith.addf %281, %282 : vector<2x256xf32>
    %284 = vector.extract_strided_slice %283 {offsets = [0, 0], sizes = [2, 192], strides = [1, 1]} : vector<2x256xf32> to vector<2x192xf32>
    %285 = arith.negf %284 : vector<2x192xf32>
    %286 = math.exp %285 : vector<2x192xf32>
    %cst_45 = arith.constant 1.000000e+00 : f32
    %287 = vector.broadcast %cst_45 : f32 to vector<2x192xf32>
    %288 = arith.addf %287, %286 : vector<2x192xf32>
    %289 = arith.divf %287, %288 : vector<2x192xf32>
    %290 = vector.extract_strided_slice %289 {offsets = [0, 0], sizes = [2, 64], strides = [1, 1]} : vector<2x192xf32> to vector<2x64xf32>
    %291 = vector.extract_strided_slice %289 {offsets = [0, 64], sizes = [2, 64], strides = [1, 1]} : vector<2x192xf32> to vector<2x64xf32>
    %292 = vector.extract_strided_slice %289 {offsets = [0, 128], sizes = [2, 64], strides = [1, 1]} : vector<2x192xf32> to vector<2x64xf32>
    %293 = vector.extract_strided_slice %283 {offsets = [0, 192], sizes = [2, 64], strides = [1, 1]} : vector<2x256xf32> to vector<2x64xf32>
    %294 = math.tanh %293 : vector<2x64xf32>
    %295 = arith.mulf %291, %271 : vector<2x64xf32>
    %296 = arith.mulf %290, %294 : vector<2x64xf32>
    %297 = arith.addf %295, %296 : vector<2x64xf32>
    %298 = math.tanh %297 : vector<2x64xf32>
    %299 = arith.mulf %292, %298 : vector<2x64xf32>
    %300 = vector.extract_strided_slice %0 {offsets = [12, 0], sizes = [2, 1], strides = [1, 1]} : vector<16x1xf32> to vector<2x1xf32>
    %301 = vector.extract_strided_slice %0 {offsets = [2, 0], sizes = [2, 1], strides = [1, 1]} : vector<16x1xf32> to vector<2x1xf32>
    %302 = arith.subf %301, %300 : vector<2x1xf32>
    %303 = vector.broadcast %14 : vector<1x64xf32> to vector<2x64xf32>
    %304 = vector.broadcast %302 : vector<2x1xf32> to vector<2x64xf32>
    %305 = arith.mulf %303, %304 : vector<2x64xf32>
    %306 = vector.broadcast %300 : vector<2x1xf32> to vector<2x64xf32>
    %307 = arith.addf %306, %305 : vector<2x64xf32>
    %308 = arith.subf %299, %268 : vector<2x64xf32>
    %309 = arith.mulf %307, %308 : vector<2x64xf32>
    %310 = arith.addf %268, %309 : vector<2x64xf32>
    %311 = arith.subf %297, %271 : vector<2x64xf32>
    %312 = arith.mulf %307, %311 : vector<2x64xf32>
    %313 = arith.addf %271, %312 : vector<2x64xf32>
    %314 = vector.extract_strided_slice %310 {offsets = [0, 0], sizes = [2, 32], strides = [1, 1]} : vector<2x64xf32> to vector<2x32xf32>
    %c12_46 = arith.constant 12 : index
    %c0_47 = arith.constant 0 : index
    %315 = vector.load %arg15[%c12_46, %c0_47] : memref<16x64xf32, #tpu.memory_space<vmem>>, vector<2x32xf32>
    tpu.vector_store %arg15[%c12_46, %c0_47], %314 {strides = array<i32>} : memref<16x64xf32, #tpu.memory_space<vmem>>, vector<2x32xf32>,
    %316 = vector.extract_strided_slice %310 {offsets = [0, 32], sizes = [2, 32], strides = [1, 1]} : vector<2x64xf32> to vector<2x32xf32>
    %c2_48 = arith.constant 2 : index
    %c32_49 = arith.constant 32 : index
    %317 = vector.load %arg15[%c2_48, %c32_49] : memref<16x64xf32, #tpu.memory_space<vmem>>, vector<2x32xf32>
    tpu.vector_store %arg15[%c2_48, %c32_49], %316 {strides = array<i32>} : memref<16x64xf32, #tpu.memory_space<vmem>>, vector<2x32xf32>,
    %318 = vector.extract_strided_slice %21 {offsets = [14, 0], sizes = [2, 256], strides = [1, 1]} : vector<16x256xf32> to vector<2x256xf32>
    %319 = vector.extract_strided_slice %21 {offsets = [0, 0], sizes = [2, 256], strides = [1, 1]} : vector<16x256xf32> to vector<2x256xf32>
    %320 = arith.subf %319, %318 : vector<2x256xf32>
    %321 = vector.broadcast %8 : vector<1x256xf32> to vector<2x256xf32>
    %322 = arith.mulf %321, %320 : vector<2x256xf32>
    %323 = arith.addf %318, %322 : vector<2x256xf32>
    %cst_50 = arith.constant dense<0.000000e+00> : vector<2x256xf32>
    %324 = tpu.matmul %310, %18, %cst_50 {dimension_numbers = #tpu.dot_dimension_numbers<[1], [0], [0], [1], [0, 0, 1, 1], [], []>} : vector<2x64xf32>, vector<64x256xf32>, vector<2x256xf32> -> vector<2x256xf32>
    %325 = arith.addf %323, %324 : vector<2x256xf32>
    %326 = vector.extract_strided_slice %325 {offsets = [0, 0], sizes = [2, 192], strides = [1, 1]} : vector<2x256xf32> to vector<2x192xf32>
    %327 = arith.negf %326 : vector<2x192xf32>
    %328 = math.exp %327 : vector<2x192xf32>
    %cst_51 = arith.constant 1.000000e+00 : f32
    %329 = vector.broadcast %cst_51 : f32 to vector<2x192xf32>
    %330 = arith.addf %329, %328 : vector<2x192xf32>
    %331 = arith.divf %329, %330 : vector<2x192xf32>
    %332 = vector.extract_strided_slice %331 {offsets = [0, 0], sizes = [2, 64], strides = [1, 1]} : vector<2x192xf32> to vector<2x64xf32>
    %333 = vector.extract_strided_slice %331 {offsets = [0, 64], sizes = [2, 64], strides = [1, 1]} : vector<2x192xf32> to vector<2x64xf32>
    %334 = vector.extract_strided_slice %331 {offsets = [0, 128], sizes = [2, 64], strides = [1, 1]} : vector<2x192xf32> to vector<2x64xf32>
    %335 = vector.extract_strided_slice %325 {offsets = [0, 192], sizes = [2, 64], strides = [1, 1]} : vector<2x256xf32> to vector<2x64xf32>
    %336 = math.tanh %335 : vector<2x64xf32>
    %337 = arith.mulf %333, %313 : vector<2x64xf32>
    %338 = arith.mulf %332, %336 : vector<2x64xf32>
    %339 = arith.addf %337, %338 : vector<2x64xf32>
    %340 = math.tanh %339 : vector<2x64xf32>
    %341 = arith.mulf %334, %340 : vector<2x64xf32>
    %342 = vector.extract_strided_slice %0 {offsets = [14, 0], sizes = [2, 1], strides = [1, 1]} : vector<16x1xf32> to vector<2x1xf32>
    %343 = vector.extract_strided_slice %0 {offsets = [0, 0], sizes = [2, 1], strides = [1, 1]} : vector<16x1xf32> to vector<2x1xf32>
    %344 = arith.subf %343, %342 : vector<2x1xf32>
    %345 = vector.broadcast %14 : vector<1x64xf32> to vector<2x64xf32>
    %346 = vector.broadcast %344 : vector<2x1xf32> to vector<2x64xf32>
    %347 = arith.mulf %345, %346 : vector<2x64xf32>
    %348 = vector.broadcast %342 : vector<2x1xf32> to vector<2x64xf32>
    %349 = arith.addf %348, %347 : vector<2x64xf32>
    %350 = arith.subf %341, %310 : vector<2x64xf32>
    %351 = arith.mulf %349, %350 : vector<2x64xf32>
    %352 = arith.addf %310, %351 : vector<2x64xf32>
    %353 = vector.extract_strided_slice %352 {offsets = [0, 0], sizes = [2, 32], strides = [1, 1]} : vector<2x64xf32> to vector<2x32xf32>
    %c14_52 = arith.constant 14 : index
    %c0_53 = arith.constant 0 : index
    %354 = vector.load %arg15[%c14_52, %c0_53] : memref<16x64xf32, #tpu.memory_space<vmem>>, vector<2x32xf32>
    tpu.vector_store %arg15[%c14_52, %c0_53], %353 {strides = array<i32>} : memref<16x64xf32, #tpu.memory_space<vmem>>, vector<2x32xf32>,
    %355 = vector.extract_strided_slice %352 {offsets = [0, 32], sizes = [2, 32], strides = [1, 1]} : vector<2x64xf32> to vector<2x32xf32>
    %c0_54 = arith.constant 0 : index
    %c32_55 = arith.constant 32 : index
    %356 = vector.load %arg15[%c0_54, %c32_55] : memref<16x64xf32, #tpu.memory_space<vmem>>, vector<2x32xf32>
    tpu.vector_store %arg15[%c0_54, %c32_55], %355 {strides = array<i32>} : memref<16x64xf32, #tpu.memory_space<vmem>>, vector<2x32xf32>,
    %c0_56 = arith.constant 0 : index
    %c0_57 = arith.constant 0 : index
    %357 = vector.load %arg15[%c0_56, %c0_57] : memref<16x64xf32, #tpu.memory_space<vmem>>, vector<16x64xf32>
    %c0_58 = arith.constant 0 : index
    %c0_59 = arith.constant 0 : index
    %358 = vector.load %arg5[%c0_58, %c0_59] : memref<64x256xf32, #tpu.memory_space<vmem>>, vector<64x256xf32>
    %c0_60 = arith.constant 0 : index
    %c0_61 = arith.constant 0 : index
    %359 = vector.load %arg7[%c0_60, %c0_61] : memref<1x256xf32, #tpu.memory_space<vmem>>, vector<1x256xf32>
    %c0_62 = arith.constant 0 : index
    %c0_63 = arith.constant 0 : index
    %360 = vector.load %arg6[%c0_62, %c0_63] : memref<64x256xf32, #tpu.memory_space<vmem>>, vector<64x256xf32>
    %cst_64 = arith.constant dense<0.000000e+00> : vector<16x256xf32>
    %361 = tpu.matmul %357, %358, %cst_64 {dimension_numbers = #tpu.dot_dimension_numbers<[1], [0], [0], [1], [0, 0, 1, 1], [], []>} : vector<16x64xf32>, vector<64x256xf32>, vector<16x256xf32> -> vector<16x256xf32>
    %362 = vector.broadcast %359 : vector<1x256xf32> to vector<16x256xf32>
    %363 = arith.addf %361, %362 : vector<16x256xf32>
    %cst_65 = arith.constant 0.000000e+00 : f32
    %364 = vector.broadcast %cst_65 : f32 to vector<2x64xf32>
    %cst_66 = arith.constant 0.000000e+00 : f32
    %365 = vector.broadcast %cst_66 : f32 to vector<2x64xf32>
    %366 = vector.extract_strided_slice %363 {offsets = [0, 0], sizes = [2, 256], strides = [1, 1]} : vector<16x256xf32> to vector<2x256xf32>
    %367 = vector.extract_strided_slice %363 {offsets = [14, 0], sizes = [2, 256], strides = [1, 1]} : vector<16x256xf32> to vector<2x256xf32>
    %368 = arith.subf %367, %366 : vector<2x256xf32>
    %369 = vector.broadcast %8 : vector<1x256xf32> to vector<2x256xf32>
    %370 = arith.mulf %369, %368 : vector<2x256xf32>
    %371 = arith.addf %366, %370 : vector<2x256xf32>
    %cst_67 = arith.constant dense<0.000000e+00> : vector<2x256xf32>
    %372 = tpu.matmul %364, %360, %cst_67 {dimension_numbers = #tpu.dot_dimension_numbers<[1], [0], [0], [1], [0, 0, 1, 1], [], []>} : vector<2x64xf32>, vector<64x256xf32>, vector<2x256xf32> -> vector<2x256xf32>
    %373 = arith.addf %371, %372 : vector<2x256xf32>
    %374 = vector.extract_strided_slice %373 {offsets = [0, 0], sizes = [2, 192], strides = [1, 1]} : vector<2x256xf32> to vector<2x192xf32>
    %375 = arith.negf %374 : vector<2x192xf32>
    %376 = math.exp %375 : vector<2x192xf32>
    %cst_68 = arith.constant 1.000000e+00 : f32
    %377 = vector.broadcast %cst_68 : f32 to vector<2x192xf32>
    %378 = arith.addf %377, %376 : vector<2x192xf32>
    %379 = arith.divf %377, %378 : vector<2x192xf32>
    %380 = vector.extract_strided_slice %379 {offsets = [0, 0], sizes = [2, 64], strides = [1, 1]} : vector<2x192xf32> to vector<2x64xf32>
    %381 = vector.extract_strided_slice %379 {offsets = [0, 64], sizes = [2, 64], strides = [1, 1]} : vector<2x192xf32> to vector<2x64xf32>
    %382 = vector.extract_strided_slice %379 {offsets = [0, 128], sizes = [2, 64], strides = [1, 1]} : vector<2x192xf32> to vector<2x64xf32>
    %383 = vector.extract_strided_slice %373 {offsets = [0, 192], sizes = [2, 64], strides = [1, 1]} : vector<2x256xf32> to vector<2x64xf32>
    %384 = math.tanh %383 : vector<2x64xf32>
    %385 = arith.mulf %381, %365 : vector<2x64xf32>
    %386 = arith.mulf %380, %384 : vector<2x64xf32>
    %387 = arith.addf %385, %386 : vector<2x64xf32>
    %388 = math.tanh %387 : vector<2x64xf32>
    %389 = arith.mulf %382, %388 : vector<2x64xf32>
    %390 = vector.extract_strided_slice %0 {offsets = [0, 0], sizes = [2, 1], strides = [1, 1]} : vector<16x1xf32> to vector<2x1xf32>
    %391 = vector.extract_strided_slice %0 {offsets = [14, 0], sizes = [2, 1], strides = [1, 1]} : vector<16x1xf32> to vector<2x1xf32>
    %392 = arith.subf %391, %390 : vector<2x1xf32>
    %393 = vector.broadcast %14 : vector<1x64xf32> to vector<2x64xf32>
    %394 = vector.broadcast %392 : vector<2x1xf32> to vector<2x64xf32>
    %395 = arith.mulf %393, %394 : vector<2x64xf32>
    %396 = vector.broadcast %390 : vector<2x1xf32> to vector<2x64xf32>
    %397 = arith.addf %396, %395 : vector<2x64xf32>
    %398 = arith.subf %389, %364 : vector<2x64xf32>
    %399 = arith.mulf %397, %398 : vector<2x64xf32>
    %400 = arith.addf %364, %399 : vector<2x64xf32>
    %401 = arith.subf %387, %365 : vector<2x64xf32>
    %402 = arith.mulf %397, %401 : vector<2x64xf32>
    %403 = arith.addf %365, %402 : vector<2x64xf32>
    %404 = vector.extract_strided_slice %400 {offsets = [0, 0], sizes = [2, 32], strides = [1, 1]} : vector<2x64xf32> to vector<2x32xf32>
    %c0_69 = arith.constant 0 : index
    %c0_70 = arith.constant 0 : index
    %405 = vector.load %arg16[%c0_69, %c0_70] : memref<16x64xf32, #tpu.memory_space<vmem>>, vector<2x32xf32>
    tpu.vector_store %arg16[%c0_69, %c0_70], %404 {strides = array<i32>} : memref<16x64xf32, #tpu.memory_space<vmem>>, vector<2x32xf32>,
    %406 = vector.extract_strided_slice %400 {offsets = [0, 32], sizes = [2, 32], strides = [1, 1]} : vector<2x64xf32> to vector<2x32xf32>
    %c14_71 = arith.constant 14 : index
    %c32_72 = arith.constant 32 : index
    %407 = vector.load %arg16[%c14_71, %c32_72] : memref<16x64xf32, #tpu.memory_space<vmem>>, vector<2x32xf32>
    tpu.vector_store %arg16[%c14_71, %c32_72], %406 {strides = array<i32>} : memref<16x64xf32, #tpu.memory_space<vmem>>, vector<2x32xf32>,
    %408 = vector.extract_strided_slice %363 {offsets = [2, 0], sizes = [2, 256], strides = [1, 1]} : vector<16x256xf32> to vector<2x256xf32>
    %409 = vector.extract_strided_slice %363 {offsets = [12, 0], sizes = [2, 256], strides = [1, 1]} : vector<16x256xf32> to vector<2x256xf32>
    %410 = arith.subf %409, %408 : vector<2x256xf32>
    %411 = vector.broadcast %8 : vector<1x256xf32> to vector<2x256xf32>
    %412 = arith.mulf %411, %410 : vector<2x256xf32>
    %413 = arith.addf %408, %412 : vector<2x256xf32>
    %cst_73 = arith.constant dense<0.000000e+00> : vector<2x256xf32>
    %414 = tpu.matmul %400, %360, %cst_73 {dimension_numbers = #tpu.dot_dimension_numbers<[1], [0], [0], [1], [0, 0, 1, 1], [], []>} : vector<2x64xf32>, vector<64x256xf32>, vector<2x256xf32> -> vector<2x256xf32>
    %415 = arith.addf %413, %414 : vector<2x256xf32>
    %416 = vector.extract_strided_slice %415 {offsets = [0, 0], sizes = [2, 192], strides = [1, 1]} : vector<2x256xf32> to vector<2x192xf32>
    %417 = arith.negf %416 : vector<2x192xf32>
    %418 = math.exp %417 : vector<2x192xf32>
    %cst_74 = arith.constant 1.000000e+00 : f32
    %419 = vector.broadcast %cst_74 : f32 to vector<2x192xf32>
    %420 = arith.addf %419, %418 : vector<2x192xf32>
    %421 = arith.divf %419, %420 : vector<2x192xf32>
    %422 = vector.extract_strided_slice %421 {offsets = [0, 0], sizes = [2, 64], strides = [1, 1]} : vector<2x192xf32> to vector<2x64xf32>
    %423 = vector.extract_strided_slice %421 {offsets = [0, 64], sizes = [2, 64], strides = [1, 1]} : vector<2x192xf32> to vector<2x64xf32>
    %424 = vector.extract_strided_slice %421 {offsets = [0, 128], sizes = [2, 64], strides = [1, 1]} : vector<2x192xf32> to vector<2x64xf32>
    %425 = vector.extract_strided_slice %415 {offsets = [0, 192], sizes = [2, 64], strides = [1, 1]} : vector<2x256xf32> to vector<2x64xf32>
    %426 = math.tanh %425 : vector<2x64xf32>
    %427 = arith.mulf %423, %403 : vector<2x64xf32>
    %428 = arith.mulf %422, %426 : vector<2x64xf32>
    %429 = arith.addf %427, %428 : vector<2x64xf32>
    %430 = math.tanh %429 : vector<2x64xf32>
    %431 = arith.mulf %424, %430 : vector<2x64xf32>
    %432 = vector.extract_strided_slice %0 {offsets = [2, 0], sizes = [2, 1], strides = [1, 1]} : vector<16x1xf32> to vector<2x1xf32>
    %433 = vector.extract_strided_slice %0 {offsets = [12, 0], sizes = [2, 1], strides = [1, 1]} : vector<16x1xf32> to vector<2x1xf32>
    %434 = arith.subf %433, %432 : vector<2x1xf32>
    %435 = vector.broadcast %14 : vector<1x64xf32> to vector<2x64xf32>
    %436 = vector.broadcast %434 : vector<2x1xf32> to vector<2x64xf32>
    %437 = arith.mulf %435, %436 : vector<2x64xf32>
    %438 = vector.broadcast %432 : vector<2x1xf32> to vector<2x64xf32>
    %439 = arith.addf %438, %437 : vector<2x64xf32>
    %440 = arith.subf %431, %400 : vector<2x64xf32>
    %441 = arith.mulf %439, %440 : vector<2x64xf32>
    %442 = arith.addf %400, %441 : vector<2x64xf32>
    %443 = arith.subf %429, %403 : vector<2x64xf32>
    %444 = arith.mulf %439, %443 : vector<2x64xf32>
    %445 = arith.addf %403, %444 : vector<2x64xf32>
    %446 = vector.extract_strided_slice %442 {offsets = [0, 0], sizes = [2, 32], strides = [1, 1]} : vector<2x64xf32> to vector<2x32xf32>
    %c2_75 = arith.constant 2 : index
    %c0_76 = arith.constant 0 : index
    %447 = vector.load %arg16[%c2_75, %c0_76] : memref<16x64xf32, #tpu.memory_space<vmem>>, vector<2x32xf32>
    tpu.vector_store %arg16[%c2_75, %c0_76], %446 {strides = array<i32>} : memref<16x64xf32, #tpu.memory_space<vmem>>, vector<2x32xf32>,
    %448 = vector.extract_strided_slice %442 {offsets = [0, 32], sizes = [2, 32], strides = [1, 1]} : vector<2x64xf32> to vector<2x32xf32>
    %c12_77 = arith.constant 12 : index
    %c32_78 = arith.constant 32 : index
    %449 = vector.load %arg16[%c12_77, %c32_78] : memref<16x64xf32, #tpu.memory_space<vmem>>, vector<2x32xf32>
    tpu.vector_store %arg16[%c12_77, %c32_78], %448 {strides = array<i32>} : memref<16x64xf32, #tpu.memory_space<vmem>>, vector<2x32xf32>,
    %450 = vector.extract_strided_slice %363 {offsets = [4, 0], sizes = [2, 256], strides = [1, 1]} : vector<16x256xf32> to vector<2x256xf32>
    %451 = vector.extract_strided_slice %363 {offsets = [10, 0], sizes = [2, 256], strides = [1, 1]} : vector<16x256xf32> to vector<2x256xf32>
    %452 = arith.subf %451, %450 : vector<2x256xf32>
    %453 = vector.broadcast %8 : vector<1x256xf32> to vector<2x256xf32>
    %454 = arith.mulf %453, %452 : vector<2x256xf32>
    %455 = arith.addf %450, %454 : vector<2x256xf32>
    %cst_79 = arith.constant dense<0.000000e+00> : vector<2x256xf32>
    %456 = tpu.matmul %442, %360, %cst_79 {dimension_numbers = #tpu.dot_dimension_numbers<[1], [0], [0], [1], [0, 0, 1, 1], [], []>} : vector<2x64xf32>, vector<64x256xf32>, vector<2x256xf32> -> vector<2x256xf32>
    %457 = arith.addf %455, %456 : vector<2x256xf32>
    %458 = vector.extract_strided_slice %457 {offsets = [0, 0], sizes = [2, 192], strides = [1, 1]} : vector<2x256xf32> to vector<2x192xf32>
    %459 = arith.negf %458 : vector<2x192xf32>
    %460 = math.exp %459 : vector<2x192xf32>
    %cst_80 = arith.constant 1.000000e+00 : f32
    %461 = vector.broadcast %cst_80 : f32 to vector<2x192xf32>
    %462 = arith.addf %461, %460 : vector<2x192xf32>
    %463 = arith.divf %461, %462 : vector<2x192xf32>
    %464 = vector.extract_strided_slice %463 {offsets = [0, 0], sizes = [2, 64], strides = [1, 1]} : vector<2x192xf32> to vector<2x64xf32>
    %465 = vector.extract_strided_slice %463 {offsets = [0, 64], sizes = [2, 64], strides = [1, 1]} : vector<2x192xf32> to vector<2x64xf32>
    %466 = vector.extract_strided_slice %463 {offsets = [0, 128], sizes = [2, 64], strides = [1, 1]} : vector<2x192xf32> to vector<2x64xf32>
    %467 = vector.extract_strided_slice %457 {offsets = [0, 192], sizes = [2, 64], strides = [1, 1]} : vector<2x256xf32> to vector<2x64xf32>
    %468 = math.tanh %467 : vector<2x64xf32>
    %469 = arith.mulf %465, %445 : vector<2x64xf32>
    %470 = arith.mulf %464, %468 : vector<2x64xf32>
    %471 = arith.addf %469, %470 : vector<2x64xf32>
    %472 = math.tanh %471 : vector<2x64xf32>
    %473 = arith.mulf %466, %472 : vector<2x64xf32>
    %474 = vector.extract_strided_slice %0 {offsets = [4, 0], sizes = [2, 1], strides = [1, 1]} : vector<16x1xf32> to vector<2x1xf32>
    %475 = vector.extract_strided_slice %0 {offsets = [10, 0], sizes = [2, 1], strides = [1, 1]} : vector<16x1xf32> to vector<2x1xf32>
    %476 = arith.subf %475, %474 : vector<2x1xf32>
    %477 = vector.broadcast %14 : vector<1x64xf32> to vector<2x64xf32>
    %478 = vector.broadcast %476 : vector<2x1xf32> to vector<2x64xf32>
    %479 = arith.mulf %477, %478 : vector<2x64xf32>
    %480 = vector.broadcast %474 : vector<2x1xf32> to vector<2x64xf32>
    %481 = arith.addf %480, %479 : vector<2x64xf32>
    %482 = arith.subf %473, %442 : vector<2x64xf32>
    %483 = arith.mulf %481, %482 : vector<2x64xf32>
    %484 = arith.addf %442, %483 : vector<2x64xf32>
    %485 = arith.subf %471, %445 : vector<2x64xf32>
    %486 = arith.mulf %481, %485 : vector<2x64xf32>
    %487 = arith.addf %445, %486 : vector<2x64xf32>
    %488 = vector.extract_strided_slice %484 {offsets = [0, 0], sizes = [2, 32], strides = [1, 1]} : vector<2x64xf32> to vector<2x32xf32>
    %c4_81 = arith.constant 4 : index
    %c0_82 = arith.constant 0 : index
    %489 = vector.load %arg16[%c4_81, %c0_82] : memref<16x64xf32, #tpu.memory_space<vmem>>, vector<2x32xf32>
    tpu.vector_store %arg16[%c4_81, %c0_82], %488 {strides = array<i32>} : memref<16x64xf32, #tpu.memory_space<vmem>>, vector<2x32xf32>,
    %490 = vector.extract_strided_slice %484 {offsets = [0, 32], sizes = [2, 32], strides = [1, 1]} : vector<2x64xf32> to vector<2x32xf32>
    %c10_83 = arith.constant 10 : index
    %c32_84 = arith.constant 32 : index
    %491 = vector.load %arg16[%c10_83, %c32_84] : memref<16x64xf32, #tpu.memory_space<vmem>>, vector<2x32xf32>
    tpu.vector_store %arg16[%c10_83, %c32_84], %490 {strides = array<i32>} : memref<16x64xf32, #tpu.memory_space<vmem>>, vector<2x32xf32>,
    %492 = vector.extract_strided_slice %363 {offsets = [6, 0], sizes = [2, 256], strides = [1, 1]} : vector<16x256xf32> to vector<2x256xf32>
    %493 = vector.extract_strided_slice %363 {offsets = [8, 0], sizes = [2, 256], strides = [1, 1]} : vector<16x256xf32> to vector<2x256xf32>
    %494 = arith.subf %493, %492 : vector<2x256xf32>
    %495 = vector.broadcast %8 : vector<1x256xf32> to vector<2x256xf32>
    %496 = arith.mulf %495, %494 : vector<2x256xf32>
    %497 = arith.addf %492, %496 : vector<2x256xf32>
    %cst_85 = arith.constant dense<0.000000e+00> : vector<2x256xf32>
    %498 = tpu.matmul %484, %360, %cst_85 {dimension_numbers = #tpu.dot_dimension_numbers<[1], [0], [0], [1], [0, 0, 1, 1], [], []>} : vector<2x64xf32>, vector<64x256xf32>, vector<2x256xf32> -> vector<2x256xf32>
    %499 = arith.addf %497, %498 : vector<2x256xf32>
    %500 = vector.extract_strided_slice %499 {offsets = [0, 0], sizes = [2, 192], strides = [1, 1]} : vector<2x256xf32> to vector<2x192xf32>
    %501 = arith.negf %500 : vector<2x192xf32>
    %502 = math.exp %501 : vector<2x192xf32>
    %cst_86 = arith.constant 1.000000e+00 : f32
    %503 = vector.broadcast %cst_86 : f32 to vector<2x192xf32>
    %504 = arith.addf %503, %502 : vector<2x192xf32>
    %505 = arith.divf %503, %504 : vector<2x192xf32>
    %506 = vector.extract_strided_slice %505 {offsets = [0, 0], sizes = [2, 64], strides = [1, 1]} : vector<2x192xf32> to vector<2x64xf32>
    %507 = vector.extract_strided_slice %505 {offsets = [0, 64], sizes = [2, 64], strides = [1, 1]} : vector<2x192xf32> to vector<2x64xf32>
    %508 = vector.extract_strided_slice %505 {offsets = [0, 128], sizes = [2, 64], strides = [1, 1]} : vector<2x192xf32> to vector<2x64xf32>
    %509 = vector.extract_strided_slice %499 {offsets = [0, 192], sizes = [2, 64], strides = [1, 1]} : vector<2x256xf32> to vector<2x64xf32>
    %510 = math.tanh %509 : vector<2x64xf32>
    %511 = arith.mulf %507, %487 : vector<2x64xf32>
    %512 = arith.mulf %506, %510 : vector<2x64xf32>
    %513 = arith.addf %511, %512 : vector<2x64xf32>
    %514 = math.tanh %513 : vector<2x64xf32>
    %515 = arith.mulf %508, %514 : vector<2x64xf32>
    %516 = vector.extract_strided_slice %0 {offsets = [6, 0], sizes = [2, 1], strides = [1, 1]} : vector<16x1xf32> to vector<2x1xf32>
    %517 = vector.extract_strided_slice %0 {offsets = [8, 0], sizes = [2, 1], strides = [1, 1]} : vector<16x1xf32> to vector<2x1xf32>
    %518 = arith.subf %517, %516 : vector<2x1xf32>
    %519 = vector.broadcast %14 : vector<1x64xf32> to vector<2x64xf32>
    %520 = vector.broadcast %518 : vector<2x1xf32> to vector<2x64xf32>
    %521 = arith.mulf %519, %520 : vector<2x64xf32>
    %522 = vector.broadcast %516 : vector<2x1xf32> to vector<2x64xf32>
    %523 = arith.addf %522, %521 : vector<2x64xf32>
    %524 = arith.subf %515, %484 : vector<2x64xf32>
    %525 = arith.mulf %523, %524 : vector<2x64xf32>
    %526 = arith.addf %484, %525 : vector<2x64xf32>
    %527 = arith.subf %513, %487 : vector<2x64xf32>
    %528 = arith.mulf %523, %527 : vector<2x64xf32>
    %529 = arith.addf %487, %528 : vector<2x64xf32>
    %530 = vector.extract_strided_slice %526 {offsets = [0, 0], sizes = [2, 32], strides = [1, 1]} : vector<2x64xf32> to vector<2x32xf32>
    %c6_87 = arith.constant 6 : index
    %c0_88 = arith.constant 0 : index
    %531 = vector.load %arg16[%c6_87, %c0_88] : memref<16x64xf32, #tpu.memory_space<vmem>>, vector<2x32xf32>
    tpu.vector_store %arg16[%c6_87, %c0_88], %530 {strides = array<i32>} : memref<16x64xf32, #tpu.memory_space<vmem>>, vector<2x32xf32>,
    %532 = vector.extract_strided_slice %526 {offsets = [0, 32], sizes = [2, 32], strides = [1, 1]} : vector<2x64xf32> to vector<2x32xf32>
    %c8_89 = arith.constant 8 : index
    %c32_90 = arith.constant 32 : index
    %533 = vector.load %arg16[%c8_89, %c32_90] : memref<16x64xf32, #tpu.memory_space<vmem>>, vector<2x32xf32>
    tpu.vector_store %arg16[%c8_89, %c32_90], %532 {strides = array<i32>} : memref<16x64xf32, #tpu.memory_space<vmem>>, vector<2x32xf32>,
    %534 = vector.extract_strided_slice %363 {offsets = [8, 0], sizes = [2, 256], strides = [1, 1]} : vector<16x256xf32> to vector<2x256xf32>
    %535 = vector.extract_strided_slice %363 {offsets = [6, 0], sizes = [2, 256], strides = [1, 1]} : vector<16x256xf32> to vector<2x256xf32>
    %536 = arith.subf %535, %534 : vector<2x256xf32>
    %537 = vector.broadcast %8 : vector<1x256xf32> to vector<2x256xf32>
    %538 = arith.mulf %537, %536 : vector<2x256xf32>
    %539 = arith.addf %534, %538 : vector<2x256xf32>
    %cst_91 = arith.constant dense<0.000000e+00> : vector<2x256xf32>
    %540 = tpu.matmul %526, %360, %cst_91 {dimension_numbers = #tpu.dot_dimension_numbers<[1], [0], [0], [1], [0, 0, 1, 1], [], []>} : vector<2x64xf32>, vector<64x256xf32>, vector<2x256xf32> -> vector<2x256xf32>
    %541 = arith.addf %539, %540 : vector<2x256xf32>
    %542 = vector.extract_strided_slice %541 {offsets = [0, 0], sizes = [2, 192], strides = [1, 1]} : vector<2x256xf32> to vector<2x192xf32>
    %543 = arith.negf %542 : vector<2x192xf32>
    %544 = math.exp %543 : vector<2x192xf32>
    %cst_92 = arith.constant 1.000000e+00 : f32
    %545 = vector.broadcast %cst_92 : f32 to vector<2x192xf32>
    %546 = arith.addf %545, %544 : vector<2x192xf32>
    %547 = arith.divf %545, %546 : vector<2x192xf32>
    %548 = vector.extract_strided_slice %547 {offsets = [0, 0], sizes = [2, 64], strides = [1, 1]} : vector<2x192xf32> to vector<2x64xf32>
    %549 = vector.extract_strided_slice %547 {offsets = [0, 64], sizes = [2, 64], strides = [1, 1]} : vector<2x192xf32> to vector<2x64xf32>
    %550 = vector.extract_strided_slice %547 {offsets = [0, 128], sizes = [2, 64], strides = [1, 1]} : vector<2x192xf32> to vector<2x64xf32>
    %551 = vector.extract_strided_slice %541 {offsets = [0, 192], sizes = [2, 64], strides = [1, 1]} : vector<2x256xf32> to vector<2x64xf32>
    %552 = math.tanh %551 : vector<2x64xf32>
    %553 = arith.mulf %549, %529 : vector<2x64xf32>
    %554 = arith.mulf %548, %552 : vector<2x64xf32>
    %555 = arith.addf %553, %554 : vector<2x64xf32>
    %556 = math.tanh %555 : vector<2x64xf32>
    %557 = arith.mulf %550, %556 : vector<2x64xf32>
    %558 = vector.extract_strided_slice %0 {offsets = [8, 0], sizes = [2, 1], strides = [1, 1]} : vector<16x1xf32> to vector<2x1xf32>
    %559 = vector.extract_strided_slice %0 {offsets = [6, 0], sizes = [2, 1], strides = [1, 1]} : vector<16x1xf32> to vector<2x1xf32>
    %560 = arith.subf %559, %558 : vector<2x1xf32>
    %561 = vector.broadcast %14 : vector<1x64xf32> to vector<2x64xf32>
    %562 = vector.broadcast %560 : vector<2x1xf32> to vector<2x64xf32>
    %563 = arith.mulf %561, %562 : vector<2x64xf32>
    %564 = vector.broadcast %558 : vector<2x1xf32> to vector<2x64xf32>
    %565 = arith.addf %564, %563 : vector<2x64xf32>
    %566 = arith.subf %557, %526 : vector<2x64xf32>
    %567 = arith.mulf %565, %566 : vector<2x64xf32>
    %568 = arith.addf %526, %567 : vector<2x64xf32>
    %569 = arith.subf %555, %529 : vector<2x64xf32>
    %570 = arith.mulf %565, %569 : vector<2x64xf32>
    %571 = arith.addf %529, %570 : vector<2x64xf32>
    %572 = vector.extract_strided_slice %568 {offsets = [0, 0], sizes = [2, 32], strides = [1, 1]} : vector<2x64xf32> to vector<2x32xf32>
    %c8_93 = arith.constant 8 : index
    %c0_94 = arith.constant 0 : index
    %573 = vector.load %arg16[%c8_93, %c0_94] : memref<16x64xf32, #tpu.memory_space<vmem>>, vector<2x32xf32>
    tpu.vector_store %arg16[%c8_93, %c0_94], %572 {strides = array<i32>} : memref<16x64xf32, #tpu.memory_space<vmem>>, vector<2x32xf32>,
    %574 = vector.extract_strided_slice %568 {offsets = [0, 32], sizes = [2, 32], strides = [1, 1]} : vector<2x64xf32> to vector<2x32xf32>
    %c6_95 = arith.constant 6 : index
    %c32_96 = arith.constant 32 : index
    %575 = vector.load %arg16[%c6_95, %c32_96] : memref<16x64xf32, #tpu.memory_space<vmem>>, vector<2x32xf32>
    tpu.vector_store %arg16[%c6_95, %c32_96], %574 {strides = array<i32>} : memref<16x64xf32, #tpu.memory_space<vmem>>, vector<2x32xf32>,
    %576 = vector.extract_strided_slice %363 {offsets = [10, 0], sizes = [2, 256], strides = [1, 1]} : vector<16x256xf32> to vector<2x256xf32>
    %577 = vector.extract_strided_slice %363 {offsets = [4, 0], sizes = [2, 256], strides = [1, 1]} : vector<16x256xf32> to vector<2x256xf32>
    %578 = arith.subf %577, %576 : vector<2x256xf32>
    %579 = vector.broadcast %8 : vector<1x256xf32> to vector<2x256xf32>
    %580 = arith.mulf %579, %578 : vector<2x256xf32>
    %581 = arith.addf %576, %580 : vector<2x256xf32>
    %cst_97 = arith.constant dense<0.000000e+00> : vector<2x256xf32>
    %582 = tpu.matmul %568, %360, %cst_97 {dimension_numbers = #tpu.dot_dimension_numbers<[1], [0], [0], [1], [0, 0, 1, 1], [], []>} : vector<2x64xf32>, vector<64x256xf32>, vector<2x256xf32> -> vector<2x256xf32>
    %583 = arith.addf %581, %582 : vector<2x256xf32>
    %584 = vector.extract_strided_slice %583 {offsets = [0, 0], sizes = [2, 192], strides = [1, 1]} : vector<2x256xf32> to vector<2x192xf32>
    %585 = arith.negf %584 : vector<2x192xf32>
    %586 = math.exp %585 : vector<2x192xf32>
    %cst_98 = arith.constant 1.000000e+00 : f32
    %587 = vector.broadcast %cst_98 : f32 to vector<2x192xf32>
    %588 = arith.addf %587, %586 : vector<2x192xf32>
    %589 = arith.divf %587, %588 : vector<2x192xf32>
    %590 = vector.extract_strided_slice %589 {offsets = [0, 0], sizes = [2, 64], strides = [1, 1]} : vector<2x192xf32> to vector<2x64xf32>
    %591 = vector.extract_strided_slice %589 {offsets = [0, 64], sizes = [2, 64], strides = [1, 1]} : vector<2x192xf32> to vector<2x64xf32>
    %592 = vector.extract_strided_slice %589 {offsets = [0, 128], sizes = [2, 64], strides = [1, 1]} : vector<2x192xf32> to vector<2x64xf32>
    %593 = vector.extract_strided_slice %583 {offsets = [0, 192], sizes = [2, 64], strides = [1, 1]} : vector<2x256xf32> to vector<2x64xf32>
    %594 = math.tanh %593 : vector<2x64xf32>
    %595 = arith.mulf %591, %571 : vector<2x64xf32>
    %596 = arith.mulf %590, %594 : vector<2x64xf32>
    %597 = arith.addf %595, %596 : vector<2x64xf32>
    %598 = math.tanh %597 : vector<2x64xf32>
    %599 = arith.mulf %592, %598 : vector<2x64xf32>
    %600 = vector.extract_strided_slice %0 {offsets = [10, 0], sizes = [2, 1], strides = [1, 1]} : vector<16x1xf32> to vector<2x1xf32>
    %601 = vector.extract_strided_slice %0 {offsets = [4, 0], sizes = [2, 1], strides = [1, 1]} : vector<16x1xf32> to vector<2x1xf32>
    %602 = arith.subf %601, %600 : vector<2x1xf32>
    %603 = vector.broadcast %14 : vector<1x64xf32> to vector<2x64xf32>
    %604 = vector.broadcast %602 : vector<2x1xf32> to vector<2x64xf32>
    %605 = arith.mulf %603, %604 : vector<2x64xf32>
    %606 = vector.broadcast %600 : vector<2x1xf32> to vector<2x64xf32>
    %607 = arith.addf %606, %605 : vector<2x64xf32>
    %608 = arith.subf %599, %568 : vector<2x64xf32>
    %609 = arith.mulf %607, %608 : vector<2x64xf32>
    %610 = arith.addf %568, %609 : vector<2x64xf32>
    %611 = arith.subf %597, %571 : vector<2x64xf32>
    %612 = arith.mulf %607, %611 : vector<2x64xf32>
    %613 = arith.addf %571, %612 : vector<2x64xf32>
    %614 = vector.extract_strided_slice %610 {offsets = [0, 0], sizes = [2, 32], strides = [1, 1]} : vector<2x64xf32> to vector<2x32xf32>
    %c10_99 = arith.constant 10 : index
    %c0_100 = arith.constant 0 : index
    %615 = vector.load %arg16[%c10_99, %c0_100] : memref<16x64xf32, #tpu.memory_space<vmem>>, vector<2x32xf32>
    tpu.vector_store %arg16[%c10_99, %c0_100], %614 {strides = array<i32>} : memref<16x64xf32, #tpu.memory_space<vmem>>, vector<2x32xf32>,
    %616 = vector.extract_strided_slice %610 {offsets = [0, 32], sizes = [2, 32], strides = [1, 1]} : vector<2x64xf32> to vector<2x32xf32>
    %c4_101 = arith.constant 4 : index
    %c32_102 = arith.constant 32 : index
    %617 = vector.load %arg16[%c4_101, %c32_102] : memref<16x64xf32, #tpu.memory_space<vmem>>, vector<2x32xf32>
    tpu.vector_store %arg16[%c4_101, %c32_102], %616 {strides = array<i32>} : memref<16x64xf32, #tpu.memory_space<vmem>>, vector<2x32xf32>,
    %618 = vector.extract_strided_slice %363 {offsets = [12, 0], sizes = [2, 256], strides = [1, 1]} : vector<16x256xf32> to vector<2x256xf32>
    %619 = vector.extract_strided_slice %363 {offsets = [2, 0], sizes = [2, 256], strides = [1, 1]} : vector<16x256xf32> to vector<2x256xf32>
    %620 = arith.subf %619, %618 : vector<2x256xf32>
    %621 = vector.broadcast %8 : vector<1x256xf32> to vector<2x256xf32>
    %622 = arith.mulf %621, %620 : vector<2x256xf32>
    %623 = arith.addf %618, %622 : vector<2x256xf32>
    %cst_103 = arith.constant dense<0.000000e+00> : vector<2x256xf32>
    %624 = tpu.matmul %610, %360, %cst_103 {dimension_numbers = #tpu.dot_dimension_numbers<[1], [0], [0], [1], [0, 0, 1, 1], [], []>} : vector<2x64xf32>, vector<64x256xf32>, vector<2x256xf32> -> vector<2x256xf32>
    %625 = arith.addf %623, %624 : vector<2x256xf32>
    %626 = vector.extract_strided_slice %625 {offsets = [0, 0], sizes = [2, 192], strides = [1, 1]} : vector<2x256xf32> to vector<2x192xf32>
    %627 = arith.negf %626 : vector<2x192xf32>
    %628 = math.exp %627 : vector<2x192xf32>
    %cst_104 = arith.constant 1.000000e+00 : f32
    %629 = vector.broadcast %cst_104 : f32 to vector<2x192xf32>
    %630 = arith.addf %629, %628 : vector<2x192xf32>
    %631 = arith.divf %629, %630 : vector<2x192xf32>
    %632 = vector.extract_strided_slice %631 {offsets = [0, 0], sizes = [2, 64], strides = [1, 1]} : vector<2x192xf32> to vector<2x64xf32>
    %633 = vector.extract_strided_slice %631 {offsets = [0, 64], sizes = [2, 64], strides = [1, 1]} : vector<2x192xf32> to vector<2x64xf32>
    %634 = vector.extract_strided_slice %631 {offsets = [0, 128], sizes = [2, 64], strides = [1, 1]} : vector<2x192xf32> to vector<2x64xf32>
    %635 = vector.extract_strided_slice %625 {offsets = [0, 192], sizes = [2, 64], strides = [1, 1]} : vector<2x256xf32> to vector<2x64xf32>
    %636 = math.tanh %635 : vector<2x64xf32>
    %637 = arith.mulf %633, %613 : vector<2x64xf32>
    %638 = arith.mulf %632, %636 : vector<2x64xf32>
    %639 = arith.addf %637, %638 : vector<2x64xf32>
    %640 = math.tanh %639 : vector<2x64xf32>
    %641 = arith.mulf %634, %640 : vector<2x64xf32>
    %642 = vector.extract_strided_slice %0 {offsets = [12, 0], sizes = [2, 1], strides = [1, 1]} : vector<16x1xf32> to vector<2x1xf32>
    %643 = vector.extract_strided_slice %0 {offsets = [2, 0], sizes = [2, 1], strides = [1, 1]} : vector<16x1xf32> to vector<2x1xf32>
    %644 = arith.subf %643, %642 : vector<2x1xf32>
    %645 = vector.broadcast %14 : vector<1x64xf32> to vector<2x64xf32>
    %646 = vector.broadcast %644 : vector<2x1xf32> to vector<2x64xf32>
    %647 = arith.mulf %645, %646 : vector<2x64xf32>
    %648 = vector.broadcast %642 : vector<2x1xf32> to vector<2x64xf32>
    %649 = arith.addf %648, %647 : vector<2x64xf32>
    %650 = arith.subf %641, %610 : vector<2x64xf32>
    %651 = arith.mulf %649, %650 : vector<2x64xf32>
    %652 = arith.addf %610, %651 : vector<2x64xf32>
    %653 = arith.subf %639, %613 : vector<2x64xf32>
    %654 = arith.mulf %649, %653 : vector<2x64xf32>
    %655 = arith.addf %613, %654 : vector<2x64xf32>
    %656 = vector.extract_strided_slice %652 {offsets = [0, 0], sizes = [2, 32], strides = [1, 1]} : vector<2x64xf32> to vector<2x32xf32>
    %c12_105 = arith.constant 12 : index
    %c0_106 = arith.constant 0 : index
    %657 = vector.load %arg16[%c12_105, %c0_106] : memref<16x64xf32, #tpu.memory_space<vmem>>, vector<2x32xf32>
    tpu.vector_store %arg16[%c12_105, %c0_106], %656 {strides = array<i32>} : memref<16x64xf32, #tpu.memory_space<vmem>>, vector<2x32xf32>,
    %658 = vector.extract_strided_slice %652 {offsets = [0, 32], sizes = [2, 32], strides = [1, 1]} : vector<2x64xf32> to vector<2x32xf32>
    %c2_107 = arith.constant 2 : index
    %c32_108 = arith.constant 32 : index
    %659 = vector.load %arg16[%c2_107, %c32_108] : memref<16x64xf32, #tpu.memory_space<vmem>>, vector<2x32xf32>
    tpu.vector_store %arg16[%c2_107, %c32_108], %658 {strides = array<i32>} : memref<16x64xf32, #tpu.memory_space<vmem>>, vector<2x32xf32>,
    %660 = vector.extract_strided_slice %363 {offsets = [14, 0], sizes = [2, 256], strides = [1, 1]} : vector<16x256xf32> to vector<2x256xf32>
    %661 = vector.extract_strided_slice %363 {offsets = [0, 0], sizes = [2, 256], strides = [1, 1]} : vector<16x256xf32> to vector<2x256xf32>
    %662 = arith.subf %661, %660 : vector<2x256xf32>
    %663 = vector.broadcast %8 : vector<1x256xf32> to vector<2x256xf32>
    %664 = arith.mulf %663, %662 : vector<2x256xf32>
    %665 = arith.addf %660, %664 : vector<2x256xf32>
    %cst_109 = arith.constant dense<0.000000e+00> : vector<2x256xf32>
    %666 = tpu.matmul %652, %360, %cst_109 {dimension_numbers = #tpu.dot_dimension_numbers<[1], [0], [0], [1], [0, 0, 1, 1], [], []>} : vector<2x64xf32>, vector<64x256xf32>, vector<2x256xf32> -> vector<2x256xf32>
    %667 = arith.addf %665, %666 : vector<2x256xf32>
    %668 = vector.extract_strided_slice %667 {offsets = [0, 0], sizes = [2, 192], strides = [1, 1]} : vector<2x256xf32> to vector<2x192xf32>
    %669 = arith.negf %668 : vector<2x192xf32>
    %670 = math.exp %669 : vector<2x192xf32>
    %cst_110 = arith.constant 1.000000e+00 : f32
    %671 = vector.broadcast %cst_110 : f32 to vector<2x192xf32>
    %672 = arith.addf %671, %670 : vector<2x192xf32>
    %673 = arith.divf %671, %672 : vector<2x192xf32>
    %674 = vector.extract_strided_slice %673 {offsets = [0, 0], sizes = [2, 64], strides = [1, 1]} : vector<2x192xf32> to vector<2x64xf32>
    %675 = vector.extract_strided_slice %673 {offsets = [0, 64], sizes = [2, 64], strides = [1, 1]} : vector<2x192xf32> to vector<2x64xf32>
    %676 = vector.extract_strided_slice %673 {offsets = [0, 128], sizes = [2, 64], strides = [1, 1]} : vector<2x192xf32> to vector<2x64xf32>
    %677 = vector.extract_strided_slice %667 {offsets = [0, 192], sizes = [2, 64], strides = [1, 1]} : vector<2x256xf32> to vector<2x64xf32>
    %678 = math.tanh %677 : vector<2x64xf32>
    %679 = arith.mulf %675, %655 : vector<2x64xf32>
    %680 = arith.mulf %674, %678 : vector<2x64xf32>
    %681 = arith.addf %679, %680 : vector<2x64xf32>
    %682 = math.tanh %681 : vector<2x64xf32>
    %683 = arith.mulf %676, %682 : vector<2x64xf32>
    %684 = vector.extract_strided_slice %0 {offsets = [14, 0], sizes = [2, 1], strides = [1, 1]} : vector<16x1xf32> to vector<2x1xf32>
    %685 = vector.extract_strided_slice %0 {offsets = [0, 0], sizes = [2, 1], strides = [1, 1]} : vector<16x1xf32> to vector<2x1xf32>
    %686 = arith.subf %685, %684 : vector<2x1xf32>
    %687 = vector.broadcast %14 : vector<1x64xf32> to vector<2x64xf32>
    %688 = vector.broadcast %686 : vector<2x1xf32> to vector<2x64xf32>
    %689 = arith.mulf %687, %688 : vector<2x64xf32>
    %690 = vector.broadcast %684 : vector<2x1xf32> to vector<2x64xf32>
    %691 = arith.addf %690, %689 : vector<2x64xf32>
    %692 = arith.subf %683, %652 : vector<2x64xf32>
    %693 = arith.mulf %691, %692 : vector<2x64xf32>
    %694 = arith.addf %652, %693 : vector<2x64xf32>
    %695 = vector.extract_strided_slice %694 {offsets = [0, 0], sizes = [2, 32], strides = [1, 1]} : vector<2x64xf32> to vector<2x32xf32>
    %c14_111 = arith.constant 14 : index
    %c0_112 = arith.constant 0 : index
    %696 = vector.load %arg16[%c14_111, %c0_112] : memref<16x64xf32, #tpu.memory_space<vmem>>, vector<2x32xf32>
    tpu.vector_store %arg16[%c14_111, %c0_112], %695 {strides = array<i32>} : memref<16x64xf32, #tpu.memory_space<vmem>>, vector<2x32xf32>,
    %697 = vector.extract_strided_slice %694 {offsets = [0, 32], sizes = [2, 32], strides = [1, 1]} : vector<2x64xf32> to vector<2x32xf32>
    %c0_113 = arith.constant 0 : index
    %c32_114 = arith.constant 32 : index
    %698 = vector.load %arg16[%c0_113, %c32_114] : memref<16x64xf32, #tpu.memory_space<vmem>>, vector<2x32xf32>
    tpu.vector_store %arg16[%c0_113, %c32_114], %697 {strides = array<i32>} : memref<16x64xf32, #tpu.memory_space<vmem>>, vector<2x32xf32>,
    %c0_115 = arith.constant 0 : index
    %c0_116 = arith.constant 0 : index
    %699 = vector.load %arg16[%c0_115, %c0_116] : memref<16x64xf32, #tpu.memory_space<vmem>>, vector<16x64xf32>
    %c0_117 = arith.constant 0 : index
    %c0_118 = arith.constant 0 : index
    %700 = vector.load %arg8[%c0_117, %c0_118] : memref<64x8xf32, #tpu.memory_space<vmem>>, vector<64x8xf32>
    %cst_119 = arith.constant dense<0.000000e+00> : vector<16x8xf32>
    %701 = tpu.matmul %699, %700, %cst_119 {dimension_numbers = #tpu.dot_dimension_numbers<[1], [0], [0], [1], [0, 0, 1, 1], [], []>} : vector<16x64xf32>, vector<64x8xf32>, vector<16x8xf32> -> vector<16x8xf32>
    %c0_120 = arith.constant 0 : index
    %c0_121 = arith.constant 0 : index
    %702 = vector.load %arg9[%c0_120, %c0_121] : memref<1x8xf32, #tpu.memory_space<vmem>>, vector<1x8xf32>
    %703 = vector.broadcast %702 : vector<1x8xf32> to vector<16x8xf32>
    %704 = arith.addf %701, %703 : vector<16x8xf32>
    %705 = vector.broadcast %0 : vector<16x1xf32> to vector<16x8xf32>
    %706 = arith.mulf %704, %705 : vector<16x8xf32>
    %c0_122 = arith.constant 0 : index
    %c0_123 = arith.constant 0 : index
    %707 = vector.load %arg10[%c0_122, %c0_123] : memref<8x8xf32, #tpu.memory_space<vmem>>, vector<8x8xf32>
    %708 = tpu.iota {dimensions = array<i32: 1>} : vector<2x8xi32>
    %c1_i32 = arith.constant 1 : i32
    %709 = vector.broadcast %c1_i32 : i32 to vector<2x8xi32>
    %710 = arith.cmpi eq, %708, %709 : vector<2x8xi32>
    %cst_124 = arith.constant 0.000000e+00 : f32
    %cst_125 = arith.constant -1.000000e+04 : f32
    %711 = vector.broadcast %cst_124 : f32 to vector<2x8xf32>
    %712 = vector.broadcast %cst_125 : f32 to vector<2x8xf32>
    %713 = arith.select %710, %711, %712 : vector<2x8xi1>, vector<2x8xf32>
    %714 = vector.extract_strided_slice %706 {offsets = [0, 0], sizes = [2, 8], strides = [1, 1]} : vector<16x8xf32> to vector<2x8xf32>
    %715 = vector.extract_strided_slice %0 {offsets = [0, 0], sizes = [2, 1], strides = [1, 1]} : vector<16x1xf32> to vector<2x1xf32>
    %716 = vector.shape_cast %713 : vector<2x8xf32> to vector<2x1x8xf32>
    %717 = vector.shape_cast %707 : vector<8x8xf32> to vector<1x8x8xf32>
    %718 = vector.broadcast %716 : vector<2x1x8xf32> to vector<2x8x8xf32>
    %719 = vector.broadcast %717 : vector<1x8x8xf32> to vector<2x8x8xf32>
    %720 = arith.addf %718, %719 : vector<2x8x8xf32>
    %cst_126 = arith.constant dense<0xFF800000> : vector<2x8xf32>
    %721 = vector.multi_reduction <maximumf>, %720, %cst_126 [2] : vector<2x8x8xf32> to vector<2x8xf32>
    %722 = arith.addf %714, %721 : vector<2x8xf32>
    %723 = vector.shape_cast %721 : vector<2x8xf32> to vector<2x8x1xf32>
    %724 = vector.broadcast %723 : vector<2x8x1xf32> to vector<2x8x8xf32>
    %725 = arith.subf %720, %724 : vector<2x8x8xf32>
    %726 = math.exp %725 : vector<2x8x8xf32>
    %cst_127 = arith.constant dense<0.000000e+00> : vector<2x8xf32>
    %727 = vector.multi_reduction <add>, %726, %cst_127 [2] : vector<2x8x8xf32> to vector<2x8xf32>
    %728 = math.log %727 : vector<2x8xf32>
    %729 = arith.addf %722, %728 : vector<2x8xf32>
    %730 = arith.subf %729, %713 : vector<2x8xf32>
    %731 = vector.broadcast %715 : vector<2x1xf32> to vector<2x8xf32>
    %732 = arith.mulf %731, %730 : vector<2x8xf32>
    %733 = arith.addf %713, %732 : vector<2x8xf32>
    %734 = vector.extract_strided_slice %706 {offsets = [2, 0], sizes = [2, 8], strides = [1, 1]} : vector<16x8xf32> to vector<2x8xf32>
    %735 = vector.extract_strided_slice %0 {offsets = [2, 0], sizes = [2, 1], strides = [1, 1]} : vector<16x1xf32> to vector<2x1xf32>
    %736 = vector.shape_cast %733 : vector<2x8xf32> to vector<2x1x8xf32>
    %737 = vector.shape_cast %707 : vector<8x8xf32> to vector<1x8x8xf32>
    %738 = vector.broadcast %736 : vector<2x1x8xf32> to vector<2x8x8xf32>
    %739 = vector.broadcast %737 : vector<1x8x8xf32> to vector<2x8x8xf32>
    %740 = arith.addf %738, %739 : vector<2x8x8xf32>
    %cst_128 = arith.constant dense<0xFF800000> : vector<2x8xf32>
    %741 = vector.multi_reduction <maximumf>, %740, %cst_128 [2] : vector<2x8x8xf32> to vector<2x8xf32>
    %742 = arith.addf %734, %741 : vector<2x8xf32>
    %743 = vector.shape_cast %741 : vector<2x8xf32> to vector<2x8x1xf32>
    %744 = vector.broadcast %743 : vector<2x8x1xf32> to vector<2x8x8xf32>
    %745 = arith.subf %740, %744 : vector<2x8x8xf32>
    %746 = math.exp %745 : vector<2x8x8xf32>
    %cst_129 = arith.constant dense<0.000000e+00> : vector<2x8xf32>
    %747 = vector.multi_reduction <add>, %746, %cst_129 [2] : vector<2x8x8xf32> to vector<2x8xf32>
    %748 = math.log %747 : vector<2x8xf32>
    %749 = arith.addf %742, %748 : vector<2x8xf32>
    %750 = arith.subf %749, %733 : vector<2x8xf32>
    %751 = vector.broadcast %735 : vector<2x1xf32> to vector<2x8xf32>
    %752 = arith.mulf %751, %750 : vector<2x8xf32>
    %753 = arith.addf %733, %752 : vector<2x8xf32>
    %754 = vector.extract_strided_slice %706 {offsets = [4, 0], sizes = [2, 8], strides = [1, 1]} : vector<16x8xf32> to vector<2x8xf32>
    %755 = vector.extract_strided_slice %0 {offsets = [4, 0], sizes = [2, 1], strides = [1, 1]} : vector<16x1xf32> to vector<2x1xf32>
    %756 = vector.shape_cast %753 : vector<2x8xf32> to vector<2x1x8xf32>
    %757 = vector.shape_cast %707 : vector<8x8xf32> to vector<1x8x8xf32>
    %758 = vector.broadcast %756 : vector<2x1x8xf32> to vector<2x8x8xf32>
    %759 = vector.broadcast %757 : vector<1x8x8xf32> to vector<2x8x8xf32>
    %760 = arith.addf %758, %759 : vector<2x8x8xf32>
    %cst_130 = arith.constant dense<0xFF800000> : vector<2x8xf32>
    %761 = vector.multi_reduction <maximumf>, %760, %cst_130 [2] : vector<2x8x8xf32> to vector<2x8xf32>
    %762 = arith.addf %754, %761 : vector<2x8xf32>
    %763 = vector.shape_cast %761 : vector<2x8xf32> to vector<2x8x1xf32>
    %764 = vector.broadcast %763 : vector<2x8x1xf32> to vector<2x8x8xf32>
    %765 = arith.subf %760, %764 : vector<2x8x8xf32>
    %766 = math.exp %765 : vector<2x8x8xf32>
    %cst_131 = arith.constant dense<0.000000e+00> : vector<2x8xf32>
    %767 = vector.multi_reduction <add>, %766, %cst_131 [2] : vector<2x8x8xf32> to vector<2x8xf32>
    %768 = math.log %767 : vector<2x8xf32>
    %769 = arith.addf %762, %768 : vector<2x8xf32>
    %770 = arith.subf %769, %753 : vector<2x8xf32>
    %771 = vector.broadcast %755 : vector<2x1xf32> to vector<2x8xf32>
    %772 = arith.mulf %771, %770 : vector<2x8xf32>
    %773 = arith.addf %753, %772 : vector<2x8xf32>
    %774 = vector.extract_strided_slice %706 {offsets = [6, 0], sizes = [2, 8], strides = [1, 1]} : vector<16x8xf32> to vector<2x8xf32>
    %775 = vector.extract_strided_slice %0 {offsets = [6, 0], sizes = [2, 1], strides = [1, 1]} : vector<16x1xf32> to vector<2x1xf32>
    %776 = vector.shape_cast %773 : vector<2x8xf32> to vector<2x1x8xf32>
    %777 = vector.shape_cast %707 : vector<8x8xf32> to vector<1x8x8xf32>
    %778 = vector.broadcast %776 : vector<2x1x8xf32> to vector<2x8x8xf32>
    %779 = vector.broadcast %777 : vector<1x8x8xf32> to vector<2x8x8xf32>
    %780 = arith.addf %778, %779 : vector<2x8x8xf32>
    %cst_132 = arith.constant dense<0xFF800000> : vector<2x8xf32>
    %781 = vector.multi_reduction <maximumf>, %780, %cst_132 [2] : vector<2x8x8xf32> to vector<2x8xf32>
    %782 = arith.addf %774, %781 : vector<2x8xf32>
    %783 = vector.shape_cast %781 : vector<2x8xf32> to vector<2x8x1xf32>
    %784 = vector.broadcast %783 : vector<2x8x1xf32> to vector<2x8x8xf32>
    %785 = arith.subf %780, %784 : vector<2x8x8xf32>
    %786 = math.exp %785 : vector<2x8x8xf32>
    %cst_133 = arith.constant dense<0.000000e+00> : vector<2x8xf32>
    %787 = vector.multi_reduction <add>, %786, %cst_133 [2] : vector<2x8x8xf32> to vector<2x8xf32>
    %788 = math.log %787 : vector<2x8xf32>
    %789 = arith.addf %782, %788 : vector<2x8xf32>
    %790 = arith.subf %789, %773 : vector<2x8xf32>
    %791 = vector.broadcast %775 : vector<2x1xf32> to vector<2x8xf32>
    %792 = arith.mulf %791, %790 : vector<2x8xf32>
    %793 = arith.addf %773, %792 : vector<2x8xf32>
    %794 = vector.extract_strided_slice %706 {offsets = [8, 0], sizes = [2, 8], strides = [1, 1]} : vector<16x8xf32> to vector<2x8xf32>
    %795 = vector.extract_strided_slice %0 {offsets = [8, 0], sizes = [2, 1], strides = [1, 1]} : vector<16x1xf32> to vector<2x1xf32>
    %796 = vector.shape_cast %793 : vector<2x8xf32> to vector<2x1x8xf32>
    %797 = vector.shape_cast %707 : vector<8x8xf32> to vector<1x8x8xf32>
    %798 = vector.broadcast %796 : vector<2x1x8xf32> to vector<2x8x8xf32>
    %799 = vector.broadcast %797 : vector<1x8x8xf32> to vector<2x8x8xf32>
    %800 = arith.addf %798, %799 : vector<2x8x8xf32>
    %cst_134 = arith.constant dense<0xFF800000> : vector<2x8xf32>
    %801 = vector.multi_reduction <maximumf>, %800, %cst_134 [2] : vector<2x8x8xf32> to vector<2x8xf32>
    %802 = arith.addf %794, %801 : vector<2x8xf32>
    %803 = vector.shape_cast %801 : vector<2x8xf32> to vector<2x8x1xf32>
    %804 = vector.broadcast %803 : vector<2x8x1xf32> to vector<2x8x8xf32>
    %805 = arith.subf %800, %804 : vector<2x8x8xf32>
    %806 = math.exp %805 : vector<2x8x8xf32>
    %cst_135 = arith.constant dense<0.000000e+00> : vector<2x8xf32>
    %807 = vector.multi_reduction <add>, %806, %cst_135 [2] : vector<2x8x8xf32> to vector<2x8xf32>
    %808 = math.log %807 : vector<2x8xf32>
    %809 = arith.addf %802, %808 : vector<2x8xf32>
    %810 = arith.subf %809, %793 : vector<2x8xf32>
    %811 = vector.broadcast %795 : vector<2x1xf32> to vector<2x8xf32>
    %812 = arith.mulf %811, %810 : vector<2x8xf32>
    %813 = arith.addf %793, %812 : vector<2x8xf32>
    %814 = vector.extract_strided_slice %706 {offsets = [10, 0], sizes = [2, 8], strides = [1, 1]} : vector<16x8xf32> to vector<2x8xf32>
    %815 = vector.extract_strided_slice %0 {offsets = [10, 0], sizes = [2, 1], strides = [1, 1]} : vector<16x1xf32> to vector<2x1xf32>
    %816 = vector.shape_cast %813 : vector<2x8xf32> to vector<2x1x8xf32>
    %817 = vector.shape_cast %707 : vector<8x8xf32> to vector<1x8x8xf32>
    %818 = vector.broadcast %816 : vector<2x1x8xf32> to vector<2x8x8xf32>
    %819 = vector.broadcast %817 : vector<1x8x8xf32> to vector<2x8x8xf32>
    %820 = arith.addf %818, %819 : vector<2x8x8xf32>
    %cst_136 = arith.constant dense<0xFF800000> : vector<2x8xf32>
    %821 = vector.multi_reduction <maximumf>, %820, %cst_136 [2] : vector<2x8x8xf32> to vector<2x8xf32>
    %822 = arith.addf %814, %821 : vector<2x8xf32>
    %823 = vector.shape_cast %821 : vector<2x8xf32> to vector<2x8x1xf32>
    %824 = vector.broadcast %823 : vector<2x8x1xf32> to vector<2x8x8xf32>
    %825 = arith.subf %820, %824 : vector<2x8x8xf32>
    %826 = math.exp %825 : vector<2x8x8xf32>
    %cst_137 = arith.constant dense<0.000000e+00> : vector<2x8xf32>
    %827 = vector.multi_reduction <add>, %826, %cst_137 [2] : vector<2x8x8xf32> to vector<2x8xf32>
    %828 = math.log %827 : vector<2x8xf32>
    %829 = arith.addf %822, %828 : vector<2x8xf32>
    %830 = arith.subf %829, %813 : vector<2x8xf32>
    %831 = vector.broadcast %815 : vector<2x1xf32> to vector<2x8xf32>
    %832 = arith.mulf %831, %830 : vector<2x8xf32>
    %833 = arith.addf %813, %832 : vector<2x8xf32>
    %834 = vector.extract_strided_slice %706 {offsets = [12, 0], sizes = [2, 8], strides = [1, 1]} : vector<16x8xf32> to vector<2x8xf32>
    %835 = vector.extract_strided_slice %0 {offsets = [12, 0], sizes = [2, 1], strides = [1, 1]} : vector<16x1xf32> to vector<2x1xf32>
    %836 = vector.shape_cast %833 : vector<2x8xf32> to vector<2x1x8xf32>
    %837 = vector.shape_cast %707 : vector<8x8xf32> to vector<1x8x8xf32>
    %838 = vector.broadcast %836 : vector<2x1x8xf32> to vector<2x8x8xf32>
    %839 = vector.broadcast %837 : vector<1x8x8xf32> to vector<2x8x8xf32>
    %840 = arith.addf %838, %839 : vector<2x8x8xf32>
    %cst_138 = arith.constant dense<0xFF800000> : vector<2x8xf32>
    %841 = vector.multi_reduction <maximumf>, %840, %cst_138 [2] : vector<2x8x8xf32> to vector<2x8xf32>
    %842 = arith.addf %834, %841 : vector<2x8xf32>
    %843 = vector.shape_cast %841 : vector<2x8xf32> to vector<2x8x1xf32>
    %844 = vector.broadcast %843 : vector<2x8x1xf32> to vector<2x8x8xf32>
    %845 = arith.subf %840, %844 : vector<2x8x8xf32>
    %846 = math.exp %845 : vector<2x8x8xf32>
    %cst_139 = arith.constant dense<0.000000e+00> : vector<2x8xf32>
    %847 = vector.multi_reduction <add>, %846, %cst_139 [2] : vector<2x8x8xf32> to vector<2x8xf32>
    %848 = math.log %847 : vector<2x8xf32>
    %849 = arith.addf %842, %848 : vector<2x8xf32>
    %850 = arith.subf %849, %833 : vector<2x8xf32>
    %851 = vector.broadcast %835 : vector<2x1xf32> to vector<2x8xf32>
    %852 = arith.mulf %851, %850 : vector<2x8xf32>
    %853 = arith.addf %833, %852 : vector<2x8xf32>
    %854 = vector.extract_strided_slice %706 {offsets = [14, 0], sizes = [2, 8], strides = [1, 1]} : vector<16x8xf32> to vector<2x8xf32>
    %855 = vector.extract_strided_slice %0 {offsets = [14, 0], sizes = [2, 1], strides = [1, 1]} : vector<16x1xf32> to vector<2x1xf32>
    %856 = vector.shape_cast %853 : vector<2x8xf32> to vector<2x1x8xf32>
    %857 = vector.shape_cast %707 : vector<8x8xf32> to vector<1x8x8xf32>
    %858 = vector.broadcast %856 : vector<2x1x8xf32> to vector<2x8x8xf32>
    %859 = vector.broadcast %857 : vector<1x8x8xf32> to vector<2x8x8xf32>
    %860 = arith.addf %858, %859 : vector<2x8x8xf32>
    %cst_140 = arith.constant dense<0xFF800000> : vector<2x8xf32>
    %861 = vector.multi_reduction <maximumf>, %860, %cst_140 [2] : vector<2x8x8xf32> to vector<2x8xf32>
    %862 = arith.addf %854, %861 : vector<2x8xf32>
    %863 = vector.shape_cast %861 : vector<2x8xf32> to vector<2x8x1xf32>
    %864 = vector.broadcast %863 : vector<2x8x1xf32> to vector<2x8x8xf32>
    %865 = arith.subf %860, %864 : vector<2x8x8xf32>
    %866 = math.exp %865 : vector<2x8x8xf32>
    %cst_141 = arith.constant dense<0.000000e+00> : vector<2x8xf32>
    %867 = vector.multi_reduction <add>, %866, %cst_141 [2] : vector<2x8x8xf32> to vector<2x8xf32>
    %868 = math.log %867 : vector<2x8xf32>
    %869 = arith.addf %862, %868 : vector<2x8xf32>
    %870 = arith.subf %869, %853 : vector<2x8xf32>
    %871 = vector.broadcast %855 : vector<2x1xf32> to vector<2x8xf32>
    %872 = arith.mulf %871, %870 : vector<2x8xf32>
    %873 = arith.addf %853, %872 : vector<2x8xf32>
    %874 = vector.extract_strided_slice %707 {offsets = [2, 0], sizes = [1, 8], strides = [1, 1]} : vector<8x8xf32> to vector<1x8xf32>
    %875 = vector.broadcast %874 : vector<1x8xf32> to vector<2x8xf32>
    %876 = arith.addf %873, %875 : vector<2x8xf32>
    %cst_142 = arith.constant dense<0xFF800000> : vector<2xf32>
    %877 = vector.multi_reduction <maximumf>, %876, %cst_142 [1] : vector<2x8xf32> to vector<2xf32>
    %878 = vector.shape_cast %877 : vector<2xf32> to vector<2x1xf32>
    %879 = vector.broadcast %878 : vector<2x1xf32> to vector<2x8xf32>
    %880 = arith.subf %876, %879 : vector<2x8xf32>
    %881 = math.exp %880 : vector<2x8xf32>
    %cst_143 = arith.constant dense<0.000000e+00> : vector<2xf32>
    %882 = vector.multi_reduction <add>, %881, %cst_143 [1] : vector<2x8xf32> to vector<2xf32>
    %883 = vector.shape_cast %882 : vector<2xf32> to vector<2x1xf32>
    %884 = math.log %883 : vector<2x1xf32>
    %885 = arith.addf %878, %884 : vector<2x1xf32>
    %c0_144 = arith.constant 0 : index
    %c0_145 = arith.constant 0 : index
    %886 = vector.load %arg11[%c0_144, %c0_145] : memref<16x8xf32, #tpu.memory_space<vmem>>, vector<16x8xf32>
    %c0_146 = arith.constant 0 : index
    %c0_147 = arith.constant 0 : index
    %887 = vector.load %arg12[%c0_146, %c0_147] : memref<16x8xf32, #tpu.memory_space<vmem>>, vector<16x8xf32>
    %888 = arith.mulf %706, %886 : vector<16x8xf32>
    %cst_148 = arith.constant dense<0.000000e+00> : vector<16xf32>
    %889 = vector.multi_reduction <add>, %888, %cst_148 [1] : vector<16x8xf32> to vector<16xf32>
    %890 = vector.shape_cast %889 : vector<16xf32> to vector<16x1xf32>
    %cst_149 = arith.constant dense<0.000000e+00> : vector<16x8xf32>
    %891 = tpu.matmul %886, %707, %cst_149 {dimension_numbers = #tpu.dot_dimension_numbers<[1], [0], [0], [1], [0, 0, 1, 1], [], []>} : vector<16x8xf32>, vector<8x8xf32>, vector<16x8xf32> -> vector<16x8xf32>
    %892 = arith.mulf %891, %887 : vector<16x8xf32>
    %cst_150 = arith.constant dense<0.000000e+00> : vector<16xf32>
    %893 = vector.multi_reduction <add>, %892, %cst_150 [1] : vector<16x8xf32> to vector<16xf32>
    %894 = vector.shape_cast %893 : vector<16xf32> to vector<16x1xf32>
    %895 = arith.addf %890, %894 : vector<16x1xf32>
    %896 = arith.mulf %895, %0 : vector<16x1xf32>
    %897 = vector.extract_strided_slice %896 {offsets = [0, 0], sizes = [2, 1], strides = [1, 1]} : vector<16x1xf32> to vector<2x1xf32>
    %898 = vector.extract_strided_slice %896 {offsets = [2, 0], sizes = [2, 1], strides = [1, 1]} : vector<16x1xf32> to vector<2x1xf32>
    %899 = arith.addf %897, %898 : vector<2x1xf32>
    %900 = vector.extract_strided_slice %896 {offsets = [4, 0], sizes = [2, 1], strides = [1, 1]} : vector<16x1xf32> to vector<2x1xf32>
    %901 = arith.addf %899, %900 : vector<2x1xf32>
    %902 = vector.extract_strided_slice %896 {offsets = [6, 0], sizes = [2, 1], strides = [1, 1]} : vector<16x1xf32> to vector<2x1xf32>
    %903 = arith.addf %901, %902 : vector<2x1xf32>
    %904 = vector.extract_strided_slice %896 {offsets = [8, 0], sizes = [2, 1], strides = [1, 1]} : vector<16x1xf32> to vector<2x1xf32>
    %905 = arith.addf %903, %904 : vector<2x1xf32>
    %906 = vector.extract_strided_slice %896 {offsets = [10, 0], sizes = [2, 1], strides = [1, 1]} : vector<16x1xf32> to vector<2x1xf32>
    %907 = arith.addf %905, %906 : vector<2x1xf32>
    %908 = vector.extract_strided_slice %896 {offsets = [12, 0], sizes = [2, 1], strides = [1, 1]} : vector<16x1xf32> to vector<2x1xf32>
    %909 = arith.addf %907, %908 : vector<2x1xf32>
    %910 = vector.extract_strided_slice %896 {offsets = [14, 0], sizes = [2, 1], strides = [1, 1]} : vector<16x1xf32> to vector<2x1xf32>
    %911 = arith.addf %909, %910 : vector<2x1xf32>
    %912 = vector.extract_strided_slice %707 {offsets = [2, 0], sizes = [1, 8], strides = [1, 1]} : vector<8x8xf32> to vector<1x8xf32>
    %c0_151 = arith.constant 0 : index
    %c0_152 = arith.constant 0 : index
    %913 = vector.load %arg13[%c0_151, %c0_152] : memref<2x8xf32, #tpu.memory_space<vmem>>, vector<2x8xf32>
    %914 = vector.broadcast %912 : vector<1x8xf32> to vector<2x8xf32>
    %915 = arith.mulf %914, %913 : vector<2x8xf32>
    %cst_153 = arith.constant dense<0.000000e+00> : vector<2xf32>
    %916 = vector.multi_reduction <add>, %915, %cst_153 [1] : vector<2x8xf32> to vector<2xf32>
    %917 = vector.shape_cast %916 : vector<2xf32> to vector<2x1xf32>
    %918 = arith.addf %911, %917 : vector<2x1xf32>
    %919 = arith.subf %885, %918 : vector<2x1xf32>
    %cst_154 = arith.constant dense<0.000000e+00> : vector<1xf32>
    %920 = vector.multi_reduction <add>, %919, %cst_154 [0] : vector<2x1xf32> to vector<1xf32>
    %921 = vector.shape_cast %920 : vector<1xf32> to vector<1x1xf32>
    %cst_155 = arith.constant 2.000000e+00 : f32
    %922 = vector.broadcast %cst_155 : f32 to vector<1x1xf32>
    %923 = arith.divf %921, %922 : vector<1x1xf32>
    %c0_156 = arith.constant 0 : index
    %c0_157 = arith.constant 0 : index
    %924 = vector.load %arg14[%c0_156, %c0_157] : memref<1x1xf32, #tpu.memory_space<vmem>>, vector<1x1xf32>
    tpu.vector_store %arg14[%c0_156, %c0_157], %923 {strides = array<i32>} : memref<1x1xf32, #tpu.memory_space<vmem>>, vector<1x1xf32>,
    return
  }
}

</mosaic_0001>

<llo_original>
// kernel: rnn_crf_loss.1
$region0: #{rnn_crf_loss.1}
  #allocation0 [shape = 'u32[]', space=smem, size = 0x4, offset = 0x4, fixed_abs, tag = 'smem constant byte address 0x4 - core index']
  #allocation1 [shape = 'u32[72,128]{1,0:T(1,128)}', space=vmem, size = 0x9000, scoped, tag = 'internal scratch']
  #allocation2 [shape = 'f32[16,64]{1,0:T(8,128)}', space=vmem, size = 0x2000, scoped, tag = 'scratch operand']
  #allocation3 [shape = 'f32[16,64]{1,0:T(8,128)}', space=vmem, size = 0x2000, scoped, tag = 'scratch operand']
  %s0 = inlined_call_operand.vmem [shape: f32[16,32], index: 0, kind: input, shape index: {}]
  %s1 = inlined_call_operand.vmem [shape: f32[16,1], index: 1, kind: input, shape index: {}]
  %s2 = inlined_call_operand.vmem [shape: f32[32,256], index: 2, kind: input, shape index: {}]
  %s3 = inlined_call_operand.vmem [shape: f32[64,256], index: 3, kind: input, shape index: {}]
  %s4 = inlined_call_operand.vmem [shape: f32[1,256], index: 4, kind: input, shape index: {}]
  %s5 = inlined_call_operand.vmem [shape: f32[64,256], index: 5, kind: input, shape index: {}]
  %s6 = inlined_call_operand.vmem [shape: f32[64,256], index: 6, kind: input, shape index: {}]
  %s7 = inlined_call_operand.vmem [shape: f32[1,256], index: 7, kind: input, shape index: {}]
  %s8 = inlined_call_operand.vmem [shape: f32[64,8], index: 8, kind: input, shape index: {}]
  %s9 = inlined_call_operand.vmem [shape: f32[1,8], index: 9, kind: input, shape index: {}]
  %s10 = inlined_call_operand.vmem [shape: f32[8,8], index: 10, kind: input, shape index: {}]
  %s11 = inlined_call_operand.vmem [shape: f32[16,8], index: 11, kind: input, shape index: {}]
  %s12 = inlined_call_operand.vmem [shape: f32[16,8], index: 12, kind: input, shape index: {}]
  %s13 = inlined_call_operand.vmem [shape: f32[2,8], index: 13, kind: input, shape index: {}]
  %s14 = inlined_call_operand.hbm [shape: f32[1,1], index: 14, kind: output, shape index: {}]
  %s15 = sld [smem:[#allocation0]]
  $region66: #{rnn_crf_loss.1} parent=0
    _
  %s17 = ssub.s32 1, %s15
  %s18 = scalar_select 0, %s17, %s15
  $region1: #{rnn_crf_loss.1} parent=0
    #allocation4 [shape = 'u8[512]{0}', space=vmem, size = 0x400, scoped, tag = 'output window, operand 0, single buffered']
    #allocation5 [shape = 's32[1]{0}', space=sflag, size = 0x4, scoped, tag = 'scoped memory for rnn_crf_loss.1']
    %19 = vsyncpa [#allocation5], 0
    // Predicated region
    $region2: #{rnn_crf_loss.1} parent=1 // pred_check
      _
    $region3: #{rnn_crf_loss.1} parent=1 // pred_check_branch
      %21 = sbr.rel (0) target = $region5
    $region4: #{rnn_crf_loss.1} parent=1 // pred_region
      _
    $region5: #{rnn_crf_loss.1} parent=1 // pred_fallthru
      _
    // Predicated region
    $region6: #{rnn_crf_loss.1} parent=1 // pred_check
      _
    $region7: #{rnn_crf_loss.1} parent=1 // pred_check_branch
      %23 = sbr.rel (0) target = $region9
    $region8: #{rnn_crf_loss.1} parent=1 // pred_region
      _
    $region9: #{rnn_crf_loss.1} parent=1 // pred_fallthru
      _
    // Predicated region
    $region10: #{rnn_crf_loss.1} parent=1 // pred_check
      _
    $region11: #{rnn_crf_loss.1} parent=1 // pred_check_branch
      %25 = sbr.rel (0) target = $region13
    $region12: #{rnn_crf_loss.1} parent=1 // pred_region
      _
    $region13: #{rnn_crf_loss.1} parent=1 // pred_fallthru
      _
    // Predicated region
    $region14: #{rnn_crf_loss.1} parent=1 // pred_check
      _
    $region15: #{rnn_crf_loss.1} parent=1 // pred_check_branch
      %27 = sbr.rel (0) target = $region17
    $region16: #{rnn_crf_loss.1} parent=1 // pred_region
      _
    $region17: #{rnn_crf_loss.1} parent=1 // pred_fallthru
      _
    // Predicated region
    $region18: #{rnn_crf_loss.1} parent=1 // pred_check
      _
    $region19: #{rnn_crf_loss.1} parent=1 // pred_check_branch
      %29 = sbr.rel (0) target = $region21
    $region20: #{rnn_crf_loss.1} parent=1 // pred_region
      _
    $region21: #{rnn_crf_loss.1} parent=1 // pred_fallthru
      _
    // Predicated region
    $region22: #{rnn_crf_loss.1} parent=1 // pred_check
      _
    $region23: #{rnn_crf_loss.1} parent=1 // pred_check_branch
      %31 = sbr.rel (0) target = $region25
    $region24: #{rnn_crf_loss.1} parent=1 // pred_region
      _
    $region25: #{rnn_crf_loss.1} parent=1 // pred_fallthru
      _
    // Predicated region
    $region26: #{rnn_crf_loss.1} parent=1 // pred_check
      _
    $region27: #{rnn_crf_loss.1} parent=1 // pred_check_branch
      %33 = sbr.rel (0) target = $region29
    $region28: #{rnn_crf_loss.1} parent=1 // pred_region
      _
    $region29: #{rnn_crf_loss.1} parent=1 // pred_fallthru
      _
    // Predicated region
    $region30: #{rnn_crf_loss.1} parent=1 // pred_check
      _
    $region31: #{rnn_crf_loss.1} parent=1 // pred_check_branch
      %35 = sbr.rel (0) target = $region33
    $region32: #{rnn_crf_loss.1} parent=1 // pred_region
      _
    $region33: #{rnn_crf_loss.1} parent=1 // pred_fallthru
      _
    // Predicated region
    $region34: #{rnn_crf_loss.1} parent=1 // pred_check
      _
    $region35: #{rnn_crf_loss.1} parent=1 // pred_check_branch
      %37 = sbr.rel (0) target = $region37
    $region36: #{rnn_crf_loss.1} parent=1 // pred_region
      _
    $region37: #{rnn_crf_loss.1} parent=1 // pred_fallthru
      _
    // Predicated region
    $region38: #{rnn_crf_loss.1} parent=1 // pred_check
      _
    $region39: #{rnn_crf_loss.1} parent=1 // pred_check_branch
      %39 = sbr.rel (0) target = $region41
    $region40: #{rnn_crf_loss.1} parent=1 // pred_region
      _
    $region41: #{rnn_crf_loss.1} parent=1 // pred_fallthru
      _
    // Predicated region
    $region42: #{rnn_crf_loss.1} parent=1 // pred_check
      _
    $region43: #{rnn_crf_loss.1} parent=1 // pred_check_branch
      %41 = sbr.rel (0) target = $region45
    $region44: #{rnn_crf_loss.1} parent=1 // pred_region
      _
    $region45: #{rnn_crf_loss.1} parent=1 // pred_fallthru
      _
    // Predicated region
    $region46: #{rnn_crf_loss.1} parent=1 // pred_check
      _
    $region47: #{rnn_crf_loss.1} parent=1 // pred_check_branch
      %43 = sbr.rel (0) target = $region49
    $region48: #{rnn_crf_loss.1} parent=1 // pred_region
      _
    $region49: #{rnn_crf_loss.1} parent=1 // pred_fallthru
      _
    // Predicated region
    $region50: #{rnn_crf_loss.1} parent=1 // pred_check
      _
    $region51: #{rnn_crf_loss.1} parent=1 // pred_check_branch
      %45 = sbr.rel (0) target = $region53
    $region52: #{rnn_crf_loss.1} parent=1 // pred_region
      _
    $region53: #{rnn_crf_loss.1} parent=1 // pred_fallthru
      _
    // Predicated region
    $region54: #{rnn_crf_loss.1} parent=1 // pred_check
      _
    $region55: #{rnn_crf_loss.1} parent=1 // pred_check_branch
      %47 = sbr.rel (0) target = $region57
    $region56: #{rnn_crf_loss.1} parent=1 // pred_region
      _
    $region57: #{rnn_crf_loss.1} parent=1 // pred_fallthru
      _
    %v48 = vld [vmem:[%s1] sm:$0xff]
    %v49 = vld [vmem:[%s1 + $0x8] sm:$0xff]
    %v50 = vlaneseq
    %v51 = vand.u32 %v50, 127
    %v52 = vadd.s32 %v51, 128
    %v53 = vand.u32 %v51, 32
    %v54 = vand.u32 %v52, 32
    %vm55 = vcmp.ne.s32.totalorder %v53, 0
    %vm56 = vcmp.ne.s32.totalorder %v54, 0
    %v57 = vsel %vm55, 1.0, 0.0
    %v58 = vsel %vm56, 1.0, 0.0
    %vm59 = vcmp.ge.s32.totalorder %v51, 32
    %v60 = vsel %vm59, 1.0, 0.0
    %v61 = vld [vmem:[%s0] sm:$0xff]
    %v62 = vld [vmem:[%s0 + $0x8] sm:$0xff]
    %v63 = vld [vmem:[%s2] sm:$0xff]
    %v64 = vld [vmem:[%s2 + $0x8] sm:$0xff]
    %v65 = vld [vmem:[%s2 + $0x10] sm:$0xff]
    %v66 = vld [vmem:[%s2 + $0x18] sm:$0xff]
    %v67 = vld [vmem:[%s2 + $0x20] sm:$0xff]
    %v68 = vld [vmem:[%s2 + $0x28] sm:$0xff]
    %v69 = vld [vmem:[%s2 + $0x30] sm:$0xff]
    %v70 = vld [vmem:[%s2 + $0x38] sm:$0xff]
    %v71 = vld [vmem:[%s4] sm:$0x3]
    %v72 = vld [vmem:[%s3] sm:$0xff]
    %v73 = vld [vmem:[%s3 + $0x8] sm:$0xff]
    %v74 = vld [vmem:[%s3 + $0x10] sm:$0xff]
    %v75 = vld [vmem:[%s3 + $0x18] sm:$0xff]
    %v76 = vld [vmem:[%s3 + $0x20] sm:$0xff]
    %v77 = vld [vmem:[%s3 + $0x28] sm:$0xff]
    %v78 = vld [vmem:[%s3 + $0x30] sm:$0xff]
    %v79 = vld [vmem:[%s3 + $0x38] sm:$0xff]
    %v80 = vld [vmem:[%s3 + $0x40] sm:$0xff]
    %v81 = vld [vmem:[%s3 + $0x48] sm:$0xff]
    %v82 = vld [vmem:[%s3 + $0x50] sm:$0xff]
    %v83 = vld [vmem:[%s3 + $0x58] sm:$0xff]
    %v84 = vld [vmem:[%s3 + $0x60] sm:$0xff]
    %v85 = vld [vmem:[%s3 + $0x68] sm:$0xff]
    %v86 = vld [vmem:[%s3 + $0x70] sm:$0xff]
    %v87 = vld [vmem:[%s3 + $0x78] sm:$0xff]
    %v89 = vperm.slane %v71, 0
    %v90 = vperm.slane %v71, 1
    %vm93 = vcmask 261120
    %v95 = vsel %vm93, %v61, 0
    %v98 = vsel %vm93, %v62, 0
    %100 = vmatpush.msra.mxu0 0.0
    %101 = vmatpush.msra.mxu0 0.0
    %102 = vmatpush.msra.mxu0 0.0
    %103 = vmatpush.msra.mxu0 0.0
    %104 = vmatpush.msra.mxu0 0.0
    %105 = vmatpush.msra.mxu0 0.0
    %106 = vmatpush.msra.mxu0 0.0
    %107 = vmatpush.msra.mxu0 0.0
    %108 = vmatpush.msra.mxu0 0.0
    %109 = vmatpush.msra.mxu0 0.0
    %110 = vmatpush.msra.mxu0 0.0
    %111 = vmatpush.msra.mxu0 0.0
    %112 = vmatpush.msra.mxu0 %v69
    %113 = vmatpush.msra.mxu0 %v67
    %114 = vmatpush.msra.mxu0 %v65
    %115 = vmatpush.msra.mxu0 %v63
    %116 = vmatmul.f32.gmra.mxu0 %v95
    %v117 = vpop.f32.mrf.mxu0
    %v118 = vadd.f32 %v89, %v117
    %119 = vmatmul.f32.gmra.mxu0 %v98
    %v120 = vpop.f32.mrf.mxu0
    %v121 = vadd.f32 %v89, %v120
    %122 = vdwg.mxu0
    %123 = vmatpush.msra.mxu0 0.0
    %124 = vmatpush.msra.mxu0 0.0
    %125 = vmatpush.msra.mxu0 0.0
    %126 = vmatpush.msra.mxu0 0.0
    %127 = vmatpush.msra.mxu0 0.0
    %128 = vmatpush.msra.mxu0 0.0
    %129 = vmatpush.msra.mxu0 0.0
    %130 = vmatpush.msra.mxu0 0.0
    %131 = vmatpush.msra.mxu0 0.0
    %132 = vmatpush.msra.mxu0 0.0
    %133 = vmatpush.msra.mxu0 0.0
    %134 = vmatpush.msra.mxu0 0.0
    %135 = vmatpush.msra.mxu0 %v70
    %136 = vmatpush.msra.mxu0 %v68
    %137 = vmatpush.msra.mxu0 %v66
    %138 = vmatpush.msra.mxu0 %v64
    %139 = vmatmul.f32.gmra.mxu0 %v95
    %v140 = vpop.f32.mrf.mxu0
    %v141 = vadd.f32 %v90, %v140
    %142 = vmatmul.f32.gmra.mxu0 %v98
    %v143 = vpop.f32.mrf.mxu0
    %v144 = vadd.f32 %v90, %v143
    %145 = vdwg.mxu0
    %v148 = vrot.slane %v118, 2
    %v149 = vrot.slane %v141, 2
    %v152 = vsub.f32 %v121, %v148
    %v153 = vsub.f32 %v144, %v149
    %v154 = vmul.f32 %v57, %v152
    %v155 = vmul.f32 %v58, %v153
    %v158 = vrot.slane %v154, 6
    %v159 = vrot.slane %v155, 6
    %v162 = vadd.f32 %v118, %v158
    %v163 = vadd.f32 %v141, %v159
    %vm164 = vcmask 523264
    %v166 = vsel %vm164, 0.0, 0
    %168 = vmatpush.msra.mxu0 0.0
    %169 = vmatpush.msra.mxu0 0.0
    %170 = vmatpush.msra.mxu0 0.0
    %171 = vmatpush.msra.mxu0 0.0
    %172 = vmatpush.msra.mxu0 0.0
    %173 = vmatpush.msra.mxu0 0.0
    %174 = vmatpush.msra.mxu0 0.0
    %175 = vmatpush.msra.mxu0 0.0
    %176 = vmatpush.msra.mxu0 %v86
    %177 = vmatpush.msra.mxu0 %v84
    %178 = vmatpush.msra.mxu0 %v82
    %179 = vmatpush.msra.mxu0 %v80
    %180 = vmatpush.msra.mxu0 %v78
    %181 = vmatpush.msra.mxu0 %v76
    %182 = vmatpush.msra.mxu0 %v74
    %183 = vmatpush.msra.mxu0 %v72
    %184 = vmatmul.f32.gmra.mxu0 %v166
    %v185 = vpop.f32.mrf.mxu0
    %v186 = vadd.f32 0.0, %v185
    %187 = vdwg.mxu0
    %188 = vmatpush.msra.mxu0 0.0
    %189 = vmatpush.msra.mxu0 0.0
    %190 = vmatpush.msra.mxu0 0.0
    %191 = vmatpush.msra.mxu0 0.0
    %192 = vmatpush.msra.mxu0 0.0
    %193 = vmatpush.msra.mxu0 0.0
    %194 = vmatpush.msra.mxu0 0.0
    %195 = vmatpush.msra.mxu0 0.0
    %196 = vmatpush.msra.mxu0 %v87
    %197 = vmatpush.msra.mxu0 %v85
    %198 = vmatpush.msra.mxu0 %v83
    %199 = vmatpush.msra.mxu0 %v81
    %200 = vmatpush.msra.mxu0 %v79
    %201 = vmatpush.msra.mxu0 %v77
    %202 = vmatpush.msra.mxu0 %v75
    %203 = vmatpush.msra.mxu0 %v73
    %204 = vmatmul.f32.gmra.mxu0 %v166
    %v205 = vpop.f32.mrf.mxu0
    %v206 = vadd.f32 0.0, %v205
    %207 = vdwg.mxu0
    %v208 = vadd.f32 %v162, %v186
    %v209 = vadd.f32 %v163, %v206
    %v210 = vxor.u32 %v208, 2147483648
    %v211 = vxor.u32 %v209, 2147483648
    %v212 = vmul.f32 %v210, 1.442695
    %v213 = vpow.pop %v212
    %v214 = vmul.f32 %v211, 1.442695
    %v215 = vpow.pop %v214
    %v216 = vadd.f32 %v213, 1.0
    %v217 = vadd.f32 %v215, 1.0
    %v218 = vrcp.pop %v216
    %v219 = vmul.f32 %v216, %v218
    %v220 = vsub.f32 1.0, %v219
    %v221 = vmul.f32 %v218, %v220
    %v222 = vadd.f32 %v218, %v221
    %vm223 = vweird.f32 %v216
    %vm224 = vweird.f32 %v218
    %vm225 = vmor %vm223, %vm224
    %v226 = vsel %vm225, %v218, %v222
    %v227 = vand.u32 2147483647, %v216
    %vm228 = vcmp.eq.f32.partialorder %v227, 8.507059e+37
    %v229 = vand.u32 %v216, 2147483648
    %v230 = vor.u32 1.1754944e-38, %v229
    %v231 = vsel %vm228, %v230, %v226
    %v232 = vmul.f32 1.0, %v231
    %v233 = vrcp.pop %v217
    %v234 = vmul.f32 %v217, %v233
    %v235 = vsub.f32 1.0, %v234
    %v236 = vmul.f32 %v233, %v235
    %v237 = vadd.f32 %v233, %v236
    %vm238 = vweird.f32 %v217
    %vm239 = vweird.f32 %v233
    %vm240 = vmor %vm238, %vm239
    %v241 = vsel %vm240, %v233, %v237
    %v242 = vand.u32 2147483647, %v217
    %vm243 = vcmp.eq.f32.partialorder %v242, 8.507059e+37
    %v244 = vand.u32 %v217, 2147483648
    %v245 = vor.u32 1.1754944e-38, %v244
    %v246 = vsel %vm243, %v245, %v241
    %v247 = vmul.f32 1.0, %v246
    %v248 = vtanh.pop %v209
    %v249 = vmul.f32 %v232, 0.0
    %251 = vrot.lane.b32.xlu0 %v248, 64
    %v252 = vpop.permute.xlu0 %251
    %v254 = vmul.f32 %v232, %v252
    %256 = vrot.lane.b32.xlu0 %v254, 64
    %v257 = vpop.permute.xlu0 %256
    %v259 = vadd.f32 %v249, %v257
    %v260 = vtanh.pop %v259
    %262 = vrot.lane.b32.xlu0 %v260, 64
    %v263 = vpop.permute.xlu0 %262
    %v265 = vmul.f32 %v247, %v263
    %v267 = vrot.slane %v48, 2
    %v269 = vsub.f32 %v49, %v267
    %271 = vset.pattern.permute.xlu0 0
    %272 = vperm.xlu0 %271, %v269
    %v273 = vpop.permute.xlu0 %272
    %v275 = vmul.f32 %v60, %v273
    %276 = vset.pattern.permute.xlu0 0
    %277 = vperm.xlu0 %276, %v48
    %v278 = vpop.permute.xlu0 %277
    %v281 = vrot.slane %v275, 6
    %v283 = vadd.f32 %v278, %v281
    %v284 = vmul.f32 %v283, %v265
    %v285 = vadd.f32 %v284, 0.0
    %287 = vrot.lane.b32.xlu0 %v259, 64
    %v288 = vpop.permute.xlu0 %287
    %v290 = vmul.f32 %v283, %v288
    %v291 = vadd.f32 %v290, 0.0
    %vm292 = vcmask 254976
    %293 = vst.msk [vmem:[#allocation2] sm:$0x3] %vm292, %v285
    %vm294 = vcmask 517376
    %295 = vst.msk [vmem:[#allocation2 + $0xe] sm:$0x3] %vm294, %v285
    %v296 = vrot.slane %v118, 6
    %v297 = vrot.slane %v141, 6
    %v300 = vsub.f32 %v121, %v296
    %v301 = vsub.f32 %v144, %v297
    %v302 = vmul.f32 %v57, %v300
    %v303 = vmul.f32 %v58, %v301
    %v306 = vrot.slane %v302, 2
    %v307 = vrot.slane %v303, 2
    %v310 = vadd.f32 %v118, %v306
    %v311 = vadd.f32 %v141, %v307
    %v313 = vsel %vm164, %v285, 0
    %315 = vmatpush.msra.mxu0 0.0
    %316 = vmatpush.msra.mxu0 0.0
    %317 = vmatpush.msra.mxu0 0.0
    %318 = vmatpush.msra.mxu0 0.0
    %319 = vmatpush.msra.mxu0 0.0
    %320 = vmatpush.msra.mxu0 0.0
    %321 = vmatpush.msra.mxu0 0.0
    %322 = vmatpush.msra.mxu0 0.0
    %323 = vmatpush.msra.mxu0 %v86
    %324 = vmatpush.msra.mxu0 %v84
    %325 = vmatpush.msra.mxu0 %v82
    %326 = vmatpush.msra.mxu0 %v80
    %327 = vmatpush.msra.mxu0 %v78
    %328 = vmatpush.msra.mxu0 %v76
    %329 = vmatpush.msra.mxu0 %v74
    %330 = vmatpush.msra.mxu0 %v72
    %331 = vmatmul.f32.gmra.mxu0 %v313
    %v332 = vpop.f32.mrf.mxu0
    %v333 = vadd.f32 0.0, %v332
    %334 = vdwg.mxu0
    %335 = vmatpush.msra.mxu0 0.0
    %336 = vmatpush.msra.mxu0 0.0
    %337 = vmatpush.msra.mxu0 0.0
    %338 = vmatpush.msra.mxu0 0.0
    %339 = vmatpush.msra.mxu0 0.0
    %340 = vmatpush.msra.mxu0 0.0
    %341 = vmatpush.msra.mxu0 0.0
    %342 = vmatpush.msra.mxu0 0.0
    %343 = vmatpush.msra.mxu0 %v87
    %344 = vmatpush.msra.mxu0 %v85
    %345 = vmatpush.msra.mxu0 %v83
    %346 = vmatpush.msra.mxu0 %v81
    %347 = vmatpush.msra.mxu0 %v79
    %348 = vmatpush.msra.mxu0 %v77
    %349 = vmatpush.msra.mxu0 %v75
    %350 = vmatpush.msra.mxu0 %v73
    %351 = vmatmul.f32.gmra.mxu0 %v313
    %v352 = vpop.f32.mrf.mxu0
    %v353 = vadd.f32 0.0, %v352
    %354 = vdwg.mxu0
    %v357 = vrot.slane %v333, 6
    %v358 = vrot.slane %v353, 6
    %v361 = vadd.f32 %v310, %v357
    %v362 = vadd.f32 %v311, %v358
    %v363 = vxor.u32 %v361, 2147483648
    %v364 = vxor.u32 %v362, 2147483648
    %v365 = vmul.f32 %v363, 1.442695
    %v366 = vpow.pop %v365
    %v367 = vmul.f32 %v364, 1.442695
    %v368 = vpow.pop %v367
    %v369 = vadd.f32 %v366, 1.0
    %v370 = vadd.f32 %v368, 1.0
    %v371 = vrcp.pop %v369
    %v372 = vmul.f32 %v369, %v371
    %v373 = vsub.f32 1.0, %v372
    %v374 = vmul.f32 %v371, %v373
    %v375 = vadd.f32 %v371, %v374
    %vm376 = vweird.f32 %v369
    %vm377 = vweird.f32 %v371
    %vm378 = vmor %vm376, %vm377
    %v379 = vsel %vm378, %v371, %v375
    %v380 = vand.u32 2147483647, %v369
    %vm381 = vcmp.eq.f32.partialorder %v380, 8.507059e+37
    %v382 = vand.u32 %v369, 2147483648
    %v383 = vor.u32 1.1754944e-38, %v382
    %v384 = vsel %vm381, %v383, %v379
    %v385 = vmul.f32 1.0, %v384
    %v386 = vrcp.pop %v370
    %v387 = vmul.f32 %v370, %v386
    %v388 = vsub.f32 1.0, %v387
    %v389 = vmul.f32 %v386, %v388
    %v390 = vadd.f32 %v386, %v389
    %vm391 = vweird.f32 %v370
    %vm392 = vweird.f32 %v386
    %vm393 = vmor %vm391, %vm392
    %v394 = vsel %vm393, %v386, %v390
    %v395 = vand.u32 2147483647, %v370
    %vm396 = vcmp.eq.f32.partialorder %v395, 8.507059e+37
    %v397 = vand.u32 %v370, 2147483648
    %v398 = vor.u32 1.1754944e-38, %v397
    %v399 = vsel %vm396, %v398, %v394
    %v400 = vmul.f32 1.0, %v399
    %v401 = vtanh.pop %v362
    %v403 = vrot.slane %v291, 6
    %404 = vrot.lane.b32.xlu0 %v403, 64
    %v405 = vpop.permute.xlu0 %404
    %v407 = vmul.f32 %v385, %v405
    %409 = vrot.lane.b32.xlu0 %v401, 64
    %v410 = vpop.permute.xlu0 %409
    %v412 = vmul.f32 %v385, %v410
    %414 = vrot.lane.b32.xlu0 %v412, 64
    %v415 = vpop.permute.xlu0 %414
    %v417 = vadd.f32 %v407, %v415
    %v418 = vtanh.pop %v417
    %420 = vrot.lane.b32.xlu0 %v418, 64
    %v421 = vpop.permute.xlu0 %420
    %v423 = vmul.f32 %v400, %v421
    %v424 = vrot.slane %v48, 6
    %v426 = vsub.f32 %v49, %v424
    %428 = vset.pattern.permute.xlu0 0
    %429 = vperm.xlu0 %428, %v426
    %v430 = vpop.permute.xlu0 %429
    %v432 = vmul.f32 %v60, %v430
    %v434 = vrot.slane %v432, 2
    %v436 = vadd.f32 %v278, %v434
    %v437 = vrot.slane %v285, 6
    %v439 = vsub.f32 %v423, %v437
    %v440 = vmul.f32 %v436, %v439
    %v442 = vrot.slane %v440, 2
    %v444 = vadd.f32 %v285, %v442
    %v445 = vsub.f32 %v417, %v405
    %447 = vrot.lane.b32.xlu0 %v445, 64
    %v448 = vpop.permute.xlu0 %447
    %v450 = vmul.f32 %v436, %v448
    %v452 = vrot.slane %v450, 2
    %v454 = vadd.f32 %v291, %v452
    %455 = vst.msk [vmem:[#allocation2 + $0x2] sm:$0x3] %vm292, %v444
    %456 = vst.msk [vmem:[#allocation2 + $0xc] sm:$0x3] %vm294, %v444
    %v458 = vsel %vm164, %v444, 0
    %460 = vmatpush.msra.mxu0 0.0
    %461 = vmatpush.msra.mxu0 0.0
    %462 = vmatpush.msra.mxu0 0.0
    %463 = vmatpush.msra.mxu0 0.0
    %464 = vmatpush.msra.mxu0 0.0
    %465 = vmatpush.msra.mxu0 0.0
    %466 = vmatpush.msra.mxu0 0.0
    %467 = vmatpush.msra.mxu0 0.0
    %468 = vmatpush.msra.mxu0 %v86
    %469 = vmatpush.msra.mxu0 %v84
    %470 = vmatpush.msra.mxu0 %v82
    %471 = vmatpush.msra.mxu0 %v80
    %472 = vmatpush.msra.mxu0 %v78
    %473 = vmatpush.msra.mxu0 %v76
    %474 = vmatpush.msra.mxu0 %v74
    %475 = vmatpush.msra.mxu0 %v72
    %476 = vmatmul.f32.gmra.mxu0 %v458
    %v477 = vpop.f32.mrf.mxu0
    %v478 = vadd.f32 0.0, %v477
    %479 = vdwg.mxu0
    %480 = vmatpush.msra.mxu0 0.0
    %481 = vmatpush.msra.mxu0 0.0
    %482 = vmatpush.msra.mxu0 0.0
    %483 = vmatpush.msra.mxu0 0.0
    %484 = vmatpush.msra.mxu0 0.0
    %485 = vmatpush.msra.mxu0 0.0
    %486 = vmatpush.msra.mxu0 0.0
    %487 = vmatpush.msra.mxu0 0.0
    %488 = vmatpush.msra.mxu0 %v87
    %489 = vmatpush.msra.mxu0 %v85
    %490 = vmatpush.msra.mxu0 %v83
    %491 = vmatpush.msra.mxu0 %v81
    %492 = vmatpush.msra.mxu0 %v79
    %493 = vmatpush.msra.mxu0 %v77
    %494 = vmatpush.msra.mxu0 %v75
    %495 = vmatpush.msra.mxu0 %v73
    %496 = vmatmul.f32.gmra.mxu0 %v458
    %v497 = vpop.f32.mrf.mxu0
    %v498 = vadd.f32 0.0, %v497
    %499 = vdwg.mxu0
    %v502 = vrot.slane %v478, 4
    %v503 = vrot.slane %v498, 4
    %v506 = vadd.f32 %v162, %v502
    %v507 = vadd.f32 %v163, %v503
    %v508 = vxor.u32 %v506, 2147483648
    %v509 = vxor.u32 %v507, 2147483648
    %v510 = vmul.f32 %v508, 1.442695
    %v511 = vpow.pop %v510
    %v512 = vmul.f32 %v509, 1.442695
    %v513 = vpow.pop %v512
    %v514 = vadd.f32 %v511, 1.0
    %v515 = vadd.f32 %v513, 1.0
    %v516 = vrcp.pop %v514
    %v517 = vmul.f32 %v514, %v516
    %v518 = vsub.f32 1.0, %v517
    %v519 = vmul.f32 %v516, %v518
    %v520 = vadd.f32 %v516, %v519
    %vm521 = vweird.f32 %v514
    %vm522 = vweird.f32 %v516
    %vm523 = vmor %vm521, %vm522
    %v524 = vsel %vm523, %v516, %v520
    %v525 = vand.u32 2147483647, %v514
    %vm526 = vcmp.eq.f32.partialorder %v525, 8.507059e+37
    %v527 = vand.u32 %v514, 2147483648
    %v528 = vor.u32 1.1754944e-38, %v527
    %v529 = vsel %vm526, %v528, %v524
    %v530 = vmul.f32 1.0, %v529
    %v531 = vrcp.pop %v515
    %v532 = vmul.f32 %v515, %v531
    %v533 = vsub.f32 1.0, %v532
    %v534 = vmul.f32 %v531, %v533
    %v535 = vadd.f32 %v531, %v534
    %vm536 = vweird.f32 %v515
    %vm537 = vweird.f32 %v531
    %vm538 = vmor %vm536, %vm537
    %v539 = vsel %vm538, %v531, %v535
    %v540 = vand.u32 2147483647, %v515
    %vm541 = vcmp.eq.f32.partialorder %v540, 8.507059e+37
    %v542 = vand.u32 %v515, 2147483648
    %v543 = vor.u32 1.1754944e-38, %v542
    %v544 = vsel %vm541, %v543, %v539
    %v545 = vmul.f32 1.0, %v544
    %v546 = vtanh.pop %v507
    %v548 = vrot.slane %v454, 4
    %549 = vrot.lane.b32.xlu0 %v548, 64
    %v550 = vpop.permute.xlu0 %549
    %v552 = vmul.f32 %v530, %v550
    %554 = vrot.lane.b32.xlu0 %v546, 64
    %v555 = vpop.permute.xlu0 %554
    %v557 = vmul.f32 %v530, %v555
    %559 = vrot.lane.b32.xlu0 %v557, 64
    %v560 = vpop.permute.xlu0 %559
    %v562 = vadd.f32 %v552, %v560
    %v563 = vtanh.pop %v562
    %565 = vrot.lane.b32.xlu0 %v563, 64
    %v566 = vpop.permute.xlu0 %565
    %v568 = vmul.f32 %v545, %v566
    %569 = vset.pattern.permute.xlu0 0
    %570 = vperm.xlu0 %569, %v269
    %v571 = vpop.permute.xlu0 %570
    %v573 = vmul.f32 %v60, %v571
    %v575 = vrot.slane %v573, 6
    %v577 = vadd.f32 %v278, %v575
    %v578 = vrot.slane %v444, 4
    %v580 = vsub.f32 %v568, %v578
    %v581 = vmul.f32 %v577, %v580
    %v583 = vrot.slane %v581, 4
    %v585 = vadd.f32 %v444, %v583
    %v586 = vsub.f32 %v562, %v550
    %588 = vrot.lane.b32.xlu0 %v586, 64
    %v589 = vpop.permute.xlu0 %588
    %v591 = vmul.f32 %v577, %v589
    %v593 = vrot.slane %v591, 4
    %v595 = vadd.f32 %v454, %v593
    %596 = vst.msk [vmem:[#allocation2 + $0x4] sm:$0x3] %vm292, %v585
    %597 = vst.msk [vmem:[#allocation2 + $0xa] sm:$0x3] %vm294, %v585
    %v599 = vsel %vm164, %v585, 0
    %601 = vmatpush.msra.mxu0 0.0
    %602 = vmatpush.msra.mxu0 0.0
    %603 = vmatpush.msra.mxu0 0.0
    %604 = vmatpush.msra.mxu0 0.0
    %605 = vmatpush.msra.mxu0 0.0
    %606 = vmatpush.msra.mxu0 0.0
    %607 = vmatpush.msra.mxu0 0.0
    %608 = vmatpush.msra.mxu0 0.0
    %609 = vmatpush.msra.mxu0 %v86
    %610 = vmatpush.msra.mxu0 %v84
    %611 = vmatpush.msra.mxu0 %v82
    %612 = vmatpush.msra.mxu0 %v80
    %613 = vmatpush.msra.mxu0 %v78
    %614 = vmatpush.msra.mxu0 %v76
    %615 = vmatpush.msra.mxu0 %v74
    %616 = vmatpush.msra.mxu0 %v72
    %617 = vmatmul.f32.gmra.mxu0 %v599
    %v618 = vpop.f32.mrf.mxu0
    %v619 = vadd.f32 0.0, %v618
    %620 = vdwg.mxu0
    %621 = vmatpush.msra.mxu0 0.0
    %622 = vmatpush.msra.mxu0 0.0
    %623 = vmatpush.msra.mxu0 0.0
    %624 = vmatpush.msra.mxu0 0.0
    %625 = vmatpush.msra.mxu0 0.0
    %626 = vmatpush.msra.mxu0 0.0
    %627 = vmatpush.msra.mxu0 0.0
    %628 = vmatpush.msra.mxu0 0.0
    %629 = vmatpush.msra.mxu0 %v87
    %630 = vmatpush.msra.mxu0 %v85
    %631 = vmatpush.msra.mxu0 %v83
    %632 = vmatpush.msra.mxu0 %v81
    %633 = vmatpush.msra.mxu0 %v79
    %634 = vmatpush.msra.mxu0 %v77
    %635 = vmatpush.msra.mxu0 %v75
    %636 = vmatpush.msra.mxu0 %v73
    %637 = vmatmul.f32.gmra.mxu0 %v599
    %v638 = vpop.f32.mrf.mxu0
    %v639 = vadd.f32 0.0, %v638
    %640 = vdwg.mxu0
    %v643 = vrot.slane %v619, 2
    %v644 = vrot.slane %v639, 2
    %v647 = vadd.f32 %v310, %v643
    %v648 = vadd.f32 %v311, %v644
    %v649 = vxor.u32 %v647, 2147483648
    %v650 = vxor.u32 %v648, 2147483648
    %v651 = vmul.f32 %v649, 1.442695
    %v652 = vpow.pop %v651
    %v653 = vmul.f32 %v650, 1.442695
    %v654 = vpow.pop %v653
    %v655 = vadd.f32 %v652, 1.0
    %v656 = vadd.f32 %v654, 1.0
    %v657 = vrcp.pop %v655
    %v658 = vmul.f32 %v655, %v657
    %v659 = vsub.f32 1.0, %v658
    %v660 = vmul.f32 %v657, %v659
    %v661 = vadd.f32 %v657, %v660
    %vm662 = vweird.f32 %v655
    %vm663 = vweird.f32 %v657
    %vm664 = vmor %vm662, %vm663
    %v665 = vsel %vm664, %v657, %v661
    %v666 = vand.u32 2147483647, %v655
    %vm667 = vcmp.eq.f32.partialorder %v666, 8.507059e+37
    %v668 = vand.u32 %v655, 2147483648
    %v669 = vor.u32 1.1754944e-38, %v668
    %v670 = vsel %vm667, %v669, %v665
    %v671 = vmul.f32 1.0, %v670
    %v672 = vrcp.pop %v656
    %v673 = vmul.f32 %v656, %v672
    %v674 = vsub.f32 1.0, %v673
    %v675 = vmul.f32 %v672, %v674
    %v676 = vadd.f32 %v672, %v675
    %vm677 = vweird.f32 %v656
    %vm678 = vweird.f32 %v672
    %vm679 = vmor %vm677, %vm678
    %v680 = vsel %vm679, %v672, %v676
    %v681 = vand.u32 2147483647, %v656
    %vm682 = vcmp.eq.f32.partialorder %v681, 8.507059e+37
    %v683 = vand.u32 %v656, 2147483648
    %v684 = vor.u32 1.1754944e-38, %v683
    %v685 = vsel %vm682, %v684, %v680
    %v686 = vmul.f32 1.0, %v685
    %v687 = vtanh.pop %v648
    %v689 = vrot.slane %v595, 2
    %690 = vrot.lane.b32.xlu0 %v689, 64
    %v691 = vpop.permute.xlu0 %690
    %v693 = vmul.f32 %v671, %v691
    %695 = vrot.lane.b32.xlu0 %v687, 64
    %v696 = vpop.permute.xlu0 %695
    %v698 = vmul.f32 %v671, %v696
    %700 = vrot.lane.b32.xlu0 %v698, 64
    %v701 = vpop.permute.xlu0 %700
    %v703 = vadd.f32 %v693, %v701
    %v704 = vtanh.pop %v703
    %706 = vrot.lane.b32.xlu0 %v704, 64
    %v707 = vpop.permute.xlu0 %706
    %v709 = vmul.f32 %v686, %v707
    %710 = vset.pattern.permute.xlu0 0
    %711 = vperm.xlu0 %710, %v426
    %v712 = vpop.permute.xlu0 %711
    %v714 = vmul.f32 %v60, %v712
    %v716 = vrot.slane %v714, 2
    %v718 = vadd.f32 %v278, %v716
    %v719 = vrot.slane %v585, 2
    %v721 = vsub.f32 %v709, %v719
    %v722 = vmul.f32 %v718, %v721
    %v724 = vrot.slane %v722, 6
    %v726 = vadd.f32 %v585, %v724
    %v727 = vsub.f32 %v703, %v691
    %729 = vrot.lane.b32.xlu0 %v727, 64
    %v730 = vpop.permute.xlu0 %729
    %v732 = vmul.f32 %v718, %v730
    %v734 = vrot.slane %v732, 6
    %v736 = vadd.f32 %v595, %v734
    %737 = vst.msk [vmem:[#allocation2 + $0x6] sm:$0x3] %vm292, %v726
    %738 = vst.msk [vmem:[#allocation2 + $0x8] sm:$0x3] %vm294, %v726
    %v741 = vrot.slane %v121, 2
    %v742 = vrot.slane %v144, 2
    %v745 = vsub.f32 %v118, %v741
    %v746 = vsub.f32 %v141, %v742
    %v747 = vmul.f32 %v57, %v745
    %v748 = vmul.f32 %v58, %v746
    %v751 = vrot.slane %v747, 6
    %v752 = vrot.slane %v748, 6
    %v755 = vadd.f32 %v121, %v751
    %v756 = vadd.f32 %v144, %v752
    %v758 = vsel %vm164, %v726, 0
    %760 = vmatpush.msra.mxu0 0.0
    %761 = vmatpush.msra.mxu0 0.0
    %762 = vmatpush.msra.mxu0 0.0
    %763 = vmatpush.msra.mxu0 0.0
    %764 = vmatpush.msra.mxu0 0.0
    %765 = vmatpush.msra.mxu0 0.0
    %766 = vmatpush.msra.mxu0 0.0
    %767 = vmatpush.msra.mxu0 0.0
    %768 = vmatpush.msra.mxu0 %v86
    %769 = vmatpush.msra.mxu0 %v84
    %770 = vmatpush.msra.mxu0 %v82
    %771 = vmatpush.msra.mxu0 %v80
    %772 = vmatpush.msra.mxu0 %v78
    %773 = vmatpush.msra.mxu0 %v76
    %774 = vmatpush.msra.mxu0 %v74
    %775 = vmatpush.msra.mxu0 %v72
    %776 = vmatmul.f32.gmra.mxu0 %v758
    %v777 = vpop.f32.mrf.mxu0
    %v778 = vadd.f32 0.0, %v777
    %779 = vdwg.mxu0
    %780 = vmatpush.msra.mxu0 0.0
    %781 = vmatpush.msra.mxu0 0.0
    %782 = vmatpush.msra.mxu0 0.0
    %783 = vmatpush.msra.mxu0 0.0
    %784 = vmatpush.msra.mxu0 0.0
    %785 = vmatpush.msra.mxu0 0.0
    %786 = vmatpush.msra.mxu0 0.0
    %787 = vmatpush.msra.mxu0 0.0
    %788 = vmatpush.msra.mxu0 %v87
    %789 = vmatpush.msra.mxu0 %v85
    %790 = vmatpush.msra.mxu0 %v83
    %791 = vmatpush.msra.mxu0 %v81
    %792 = vmatpush.msra.mxu0 %v79
    %793 = vmatpush.msra.mxu0 %v77
    %794 = vmatpush.msra.mxu0 %v75
    %795 = vmatpush.msra.mxu0 %v73
    %796 = vmatmul.f32.gmra.mxu0 %v758
    %v797 = vpop.f32.mrf.mxu0
    %v798 = vadd.f32 0.0, %v797
    %799 = vdwg.mxu0
    %v800 = vadd.f32 %v755, %v778
    %v801 = vadd.f32 %v756, %v798
    %v802 = vxor.u32 %v800, 2147483648
    %v803 = vxor.u32 %v801, 2147483648
    %v804 = vmul.f32 %v802, 1.442695
    %v805 = vpow.pop %v804
    %v806 = vmul.f32 %v803, 1.442695
    %v807 = vpow.pop %v806
    %v808 = vadd.f32 %v805, 1.0
    %v809 = vadd.f32 %v807, 1.0
    %v810 = vrcp.pop %v808
    %v811 = vmul.f32 %v808, %v810
    %v812 = vsub.f32 1.0, %v811
    %v813 = vmul.f32 %v810, %v812
    %v814 = vadd.f32 %v810, %v813
    %vm815 = vweird.f32 %v808
    %vm816 = vweird.f32 %v810
    %vm817 = vmor %vm815, %vm816
    %v818 = vsel %vm817, %v810, %v814
    %v819 = vand.u32 2147483647, %v808
    %vm820 = vcmp.eq.f32.partialorder %v819, 8.507059e+37
    %v821 = vand.u32 %v808, 2147483648
    %v822 = vor.u32 1.1754944e-38, %v821
    %v823 = vsel %vm820, %v822, %v818
    %v824 = vmul.f32 1.0, %v823
    %v825 = vrcp.pop %v809
    %v826 = vmul.f32 %v809, %v825
    %v827 = vsub.f32 1.0, %v826
    %v828 = vmul.f32 %v825, %v827
    %v829 = vadd.f32 %v825, %v828
    %vm830 = vweird.f32 %v809
    %vm831 = vweird.f32 %v825
    %vm832 = vmor %vm830, %vm831
    %v833 = vsel %vm832, %v825, %v829
    %v834 = vand.u32 2147483647, %v809
    %vm835 = vcmp.eq.f32.partialorder %v834, 8.507059e+37
    %v836 = vand.u32 %v809, 2147483648
    %v837 = vor.u32 1.1754944e-38, %v836
    %v838 = vsel %vm835, %v837, %v833
    %v839 = vmul.f32 1.0, %v838
    %v840 = vtanh.pop %v801
    %842 = vrot.lane.b32.xlu0 %v736, 64
    %v843 = vpop.permute.xlu0 %842
    %v845 = vmul.f32 %v824, %v843
    %847 = vrot.lane.b32.xlu0 %v840, 64
    %v848 = vpop.permute.xlu0 %847
    %v850 = vmul.f32 %v824, %v848
    %852 = vrot.lane.b32.xlu0 %v850, 64
    %v853 = vpop.permute.xlu0 %852
    %v855 = vadd.f32 %v845, %v853
    %v856 = vtanh.pop %v855
    %858 = vrot.lane.b32.xlu0 %v856, 64
    %v859 = vpop.permute.xlu0 %858
    %v861 = vmul.f32 %v839, %v859
    %v863 = vrot.slane %v49, 2
    %v865 = vsub.f32 %v48, %v863
    %867 = vset.pattern.permute.xlu0 0
    %868 = vperm.xlu0 %867, %v865
    %v869 = vpop.permute.xlu0 %868
    %v871 = vmul.f32 %v60, %v869
    %872 = vset.pattern.permute.xlu0 0
    %873 = vperm.xlu0 %872, %v49
    %v874 = vpop.permute.xlu0 %873
    %v877 = vrot.slane %v871, 6
    %v879 = vadd.f32 %v874, %v877
    %v880 = vsub.f32 %v861, %v726
    %v881 = vmul.f32 %v879, %v880
    %v882 = vadd.f32 %v726, %v881
    %v883 = vsub.f32 %v855, %v843
    %885 = vrot.lane.b32.xlu0 %v883, 64
    %v886 = vpop.permute.xlu0 %885
    %v888 = vmul.f32 %v879, %v886
    %v889 = vadd.f32 %v736, %v888
    %890 = vst.msk [vmem:[#allocation2 + $0x8] sm:$0x3] %vm292, %v882
    %891 = vst.msk [vmem:[#allocation2 + $0x6] sm:$0x3] %vm294, %v882
    %v892 = vrot.slane %v121, 6
    %v893 = vrot.slane %v144, 6
    %v896 = vsub.f32 %v118, %v892
    %v897 = vsub.f32 %v141, %v893
    %v898 = vmul.f32 %v57, %v896
    %v899 = vmul.f32 %v58, %v897
    %v902 = vrot.slane %v898, 2
    %v903 = vrot.slane %v899, 2
    %v906 = vadd.f32 %v121, %v902
    %v907 = vadd.f32 %v144, %v903
    %v909 = vsel %vm164, %v882, 0
    %911 = vmatpush.msra.mxu0 0.0
    %912 = vmatpush.msra.mxu0 0.0
    %913 = vmatpush.msra.mxu0 0.0
    %914 = vmatpush.msra.mxu0 0.0
    %915 = vmatpush.msra.mxu0 0.0
    %916 = vmatpush.msra.mxu0 0.0
    %917 = vmatpush.msra.mxu0 0.0
    %918 = vmatpush.msra.mxu0 0.0
    %919 = vmatpush.msra.mxu0 %v86
    %920 = vmatpush.msra.mxu0 %v84
    %921 = vmatpush.msra.mxu0 %v82
    %922 = vmatpush.msra.mxu0 %v80
    %923 = vmatpush.msra.mxu0 %v78
    %924 = vmatpush.msra.mxu0 %v76
    %925 = vmatpush.msra.mxu0 %v74
    %926 = vmatpush.msra.mxu0 %v72
    %927 = vmatmul.f32.gmra.mxu0 %v909
    %v928 = vpop.f32.mrf.mxu0
    %v929 = vadd.f32 0.0, %v928
    %930 = vdwg.mxu0
    %931 = vmatpush.msra.mxu0 0.0
    %932 = vmatpush.msra.mxu0 0.0
    %933 = vmatpush.msra.mxu0 0.0
    %934 = vmatpush.msra.mxu0 0.0
    %935 = vmatpush.msra.mxu0 0.0
    %936 = vmatpush.msra.mxu0 0.0
    %937 = vmatpush.msra.mxu0 0.0
    %938 = vmatpush.msra.mxu0 0.0
    %939 = vmatpush.msra.mxu0 %v87
    %940 = vmatpush.msra.mxu0 %v85
    %941 = vmatpush.msra.mxu0 %v83
    %942 = vmatpush.msra.mxu0 %v81
    %943 = vmatpush.msra.mxu0 %v79
    %944 = vmatpush.msra.mxu0 %v77
    %945 = vmatpush.msra.mxu0 %v75
    %946 = vmatpush.msra.mxu0 %v73
    %947 = vmatmul.f32.gmra.mxu0 %v909
    %v948 = vpop.f32.mrf.mxu0
    %v949 = vadd.f32 0.0, %v948
    %950 = vdwg.mxu0
    %v953 = vrot.slane %v929, 6
    %v954 = vrot.slane %v949, 6
    %v957 = vadd.f32 %v906, %v953
    %v958 = vadd.f32 %v907, %v954
    %v959 = vxor.u32 %v957, 2147483648
    %v960 = vxor.u32 %v958, 2147483648
    %v961 = vmul.f32 %v959, 1.442695
    %v962 = vpow.pop %v961
    %v963 = vmul.f32 %v960, 1.442695
    %v964 = vpow.pop %v963
    %v965 = vadd.f32 %v962, 1.0
    %v966 = vadd.f32 %v964, 1.0
    %v967 = vrcp.pop %v965
    %v968 = vmul.f32 %v965, %v967
    %v969 = vsub.f32 1.0, %v968
    %v970 = vmul.f32 %v967, %v969
    %v971 = vadd.f32 %v967, %v970
    %vm972 = vweird.f32 %v965
    %vm973 = vweird.f32 %v967
    %vm974 = vmor %vm972, %vm973
    %v975 = vsel %vm974, %v967, %v971
    %v976 = vand.u32 2147483647, %v965
    %vm977 = vcmp.eq.f32.partialorder %v976, 8.507059e+37
    %v978 = vand.u32 %v965, 2147483648
    %v979 = vor.u32 1.1754944e-38, %v978
    %v980 = vsel %vm977, %v979, %v975
    %v981 = vmul.f32 1.0, %v980
    %v982 = vrcp.pop %v966
    %v983 = vmul.f32 %v966, %v982
    %v984 = vsub.f32 1.0, %v983
    %v985 = vmul.f32 %v982, %v984
    %v986 = vadd.f32 %v982, %v985
    %vm987 = vweird.f32 %v966
    %vm988 = vweird.f32 %v982
    %vm989 = vmor %vm987, %vm988
    %v990 = vsel %vm989, %v982, %v986
    %v991 = vand.u32 2147483647, %v966
    %vm992 = vcmp.eq.f32.partialorder %v991, 8.507059e+37
    %v993 = vand.u32 %v966, 2147483648
    %v994 = vor.u32 1.1754944e-38, %v993
    %v995 = vsel %vm992, %v994, %v990
    %v996 = vmul.f32 1.0, %v995
    %v997 = vtanh.pop %v958
    %v999 = vrot.slane %v889, 6
    %1000 = vrot.lane.b32.xlu0 %v999, 64
    %v1001 = vpop.permute.xlu0 %1000
    %v1003 = vmul.f32 %v981, %v1001
    %1005 = vrot.lane.b32.xlu0 %v997, 64
    %v1006 = vpop.permute.xlu0 %1005
    %v1008 = vmul.f32 %v981, %v1006
    %1010 = vrot.lane.b32.xlu0 %v1008, 64
    %v1011 = vpop.permute.xlu0 %1010
    %v1013 = vadd.f32 %v1003, %v1011
    %v1014 = vtanh.pop %v1013
    %1016 = vrot.lane.b32.xlu0 %v1014, 64
    %v1017 = vpop.permute.xlu0 %1016
    %v1019 = vmul.f32 %v996, %v1017
    %v1020 = vrot.slane %v49, 6
    %v1022 = vsub.f32 %v48, %v1020
    %1024 = vset.pattern.permute.xlu0 0
    %1025 = vperm.xlu0 %1024, %v1022
    %v1026 = vpop.permute.xlu0 %1025
    %v1028 = vmul.f32 %v60, %v1026
    %v1030 = vrot.slane %v1028, 2
    %v1032 = vadd.f32 %v874, %v1030
    %v1033 = vrot.slane %v882, 6
    %v1035 = vsub.f32 %v1019, %v1033
    %v1036 = vmul.f32 %v1032, %v1035
    %v1038 = vrot.slane %v1036, 2
    %v1040 = vadd.f32 %v882, %v1038
    %v1041 = vsub.f32 %v1013, %v1001
    %1043 = vrot.lane.b32.xlu0 %v1041, 64
    %v1044 = vpop.permute.xlu0 %1043
    %v1046 = vmul.f32 %v1032, %v1044
    %v1048 = vrot.slane %v1046, 2
    %v1050 = vadd.f32 %v889, %v1048
    %1051 = vst.msk [vmem:[#allocation2 + $0xa] sm:$0x3] %vm292, %v1040
    %1052 = vst.msk [vmem:[#allocation2 + $0x4] sm:$0x3] %vm294, %v1040
    %v1054 = vsel %vm164, %v1040, 0
    %1056 = vmatpush.msra.mxu0 0.0
    %1057 = vmatpush.msra.mxu0 0.0
    %1058 = vmatpush.msra.mxu0 0.0
    %1059 = vmatpush.msra.mxu0 0.0
    %1060 = vmatpush.msra.mxu0 0.0
    %1061 = vmatpush.msra.mxu0 0.0
    %1062 = vmatpush.msra.mxu0 0.0
    %1063 = vmatpush.msra.mxu0 0.0
    %1064 = vmatpush.msra.mxu0 %v86
    %1065 = vmatpush.msra.mxu0 %v84
    %1066 = vmatpush.msra.mxu0 %v82
    %1067 = vmatpush.msra.mxu0 %v80
    %1068 = vmatpush.msra.mxu0 %v78
    %1069 = vmatpush.msra.mxu0 %v76
    %1070 = vmatpush.msra.mxu0 %v74
    %1071 = vmatpush.msra.mxu0 %v72
    %1072 = vmatmul.f32.gmra.mxu0 %v1054
    %v1073 = vpop.f32.mrf.mxu0
    %v1074 = vadd.f32 0.0, %v1073
    %1075 = vdwg.mxu0
    %1076 = vmatpush.msra.mxu0 0.0
    %1077 = vmatpush.msra.mxu0 0.0
    %1078 = vmatpush.msra.mxu0 0.0
    %1079 = vmatpush.msra.mxu0 0.0
    %1080 = vmatpush.msra.mxu0 0.0
    %1081 = vmatpush.msra.mxu0 0.0
    %1082 = vmatpush.msra.mxu0 0.0
    %1083 = vmatpush.msra.mxu0 0.0
    %1084 = vmatpush.msra.mxu0 %v87
    %1085 = vmatpush.msra.mxu0 %v85
    %1086 = vmatpush.msra.mxu0 %v83
    %1087 = vmatpush.msra.mxu0 %v81
    %1088 = vmatpush.msra.mxu0 %v79
    %1089 = vmatpush.msra.mxu0 %v77
    %1090 = vmatpush.msra.mxu0 %v75
    %1091 = vmatpush.msra.mxu0 %v73
    %1092 = vmatmul.f32.gmra.mxu0 %v1054
    %v1093 = vpop.f32.mrf.mxu0
    %v1094 = vadd.f32 0.0, %v1093
    %1095 = vdwg.mxu0
    %v1098 = vrot.slane %v1074, 4
    %v1099 = vrot.slane %v1094, 4
    %v1102 = vadd.f32 %v755, %v1098
    %v1103 = vadd.f32 %v756, %v1099
    %v1104 = vxor.u32 %v1102, 2147483648
    %v1105 = vxor.u32 %v1103, 2147483648
    %v1106 = vmul.f32 %v1104, 1.442695
    %v1107 = vpow.pop %v1106
    %v1108 = vmul.f32 %v1105, 1.442695
    %v1109 = vpow.pop %v1108
    %v1110 = vadd.f32 %v1107, 1.0
    %v1111 = vadd.f32 %v1109, 1.0
    %v1112 = vrcp.pop %v1110
    %v1113 = vmul.f32 %v1110, %v1112
    %v1114 = vsub.f32 1.0, %v1113
    %v1115 = vmul.f32 %v1112, %v1114
    %v1116 = vadd.f32 %v1112, %v1115
    %vm1117 = vweird.f32 %v1110
    %vm1118 = vweird.f32 %v1112
    %vm1119 = vmor %vm1117, %vm1118
    %v1120 = vsel %vm1119, %v1112, %v1116
    %v1121 = vand.u32 2147483647, %v1110
    %vm1122 = vcmp.eq.f32.partialorder %v1121, 8.507059e+37
    %v1123 = vand.u32 %v1110, 2147483648
    %v1124 = vor.u32 1.1754944e-38, %v1123
    %v1125 = vsel %vm1122, %v1124, %v1120
    %v1126 = vmul.f32 1.0, %v1125
    %v1127 = vrcp.pop %v1111
    %v1128 = vmul.f32 %v1111, %v1127
    %v1129 = vsub.f32 1.0, %v1128
    %v1130 = vmul.f32 %v1127, %v1129
    %v1131 = vadd.f32 %v1127, %v1130
    %vm1132 = vweird.f32 %v1111
    %vm1133 = vweird.f32 %v1127
    %vm1134 = vmor %vm1132, %vm1133
    %v1135 = vsel %vm1134, %v1127, %v1131
    %v1136 = vand.u32 2147483647, %v1111
    %vm1137 = vcmp.eq.f32.partialorder %v1136, 8.507059e+37
    %v1138 = vand.u32 %v1111, 2147483648
    %v1139 = vor.u32 1.1754944e-38, %v1138
    %v1140 = vsel %vm1137, %v1139, %v1135
    %v1141 = vmul.f32 1.0, %v1140
    %v1142 = vtanh.pop %v1103
    %v1144 = vrot.slane %v1050, 4
    %1145 = vrot.lane.b32.xlu0 %v1144, 64
    %v1146 = vpop.permute.xlu0 %1145
    %v1148 = vmul.f32 %v1126, %v1146
    %1150 = vrot.lane.b32.xlu0 %v1142, 64
    %v1151 = vpop.permute.xlu0 %1150
    %v1153 = vmul.f32 %v1126, %v1151
    %1155 = vrot.lane.b32.xlu0 %v1153, 64
    %v1156 = vpop.permute.xlu0 %1155
    %v1158 = vadd.f32 %v1148, %v1156
    %v1159 = vtanh.pop %v1158
    %1161 = vrot.lane.b32.xlu0 %v1159, 64
    %v1162 = vpop.permute.xlu0 %1161
    %v1164 = vmul.f32 %v1141, %v1162
    %1165 = vset.pattern.permute.xlu0 0
    %1166 = vperm.xlu0 %1165, %v865
    %v1167 = vpop.permute.xlu0 %1166
    %v1169 = vmul.f32 %v60, %v1167
    %v1171 = vrot.slane %v1169, 6
    %v1173 = vadd.f32 %v874, %v1171
    %v1174 = vrot.slane %v1040, 4
    %v1176 = vsub.f32 %v1164, %v1174
    %v1177 = vmul.f32 %v1173, %v1176
    %v1179 = vrot.slane %v1177, 4
    %v1181 = vadd.f32 %v1040, %v1179
    %v1182 = vsub.f32 %v1158, %v1146
    %1184 = vrot.lane.b32.xlu0 %v1182, 64
    %v1185 = vpop.permute.xlu0 %1184
    %v1187 = vmul.f32 %v1173, %v1185
    %v1189 = vrot.slane %v1187, 4
    %v1191 = vadd.f32 %v1050, %v1189
    %1192 = vst.msk [vmem:[#allocation2 + $0xc] sm:$0x3] %vm292, %v1181
    %1193 = vst.msk [vmem:[#allocation2 + $0x2] sm:$0x3] %vm294, %v1181
    %v1195 = vsel %vm164, %v1181, 0
    %1197 = vmatpush.msra.mxu0 0.0
    %1198 = vmatpush.msra.mxu0 0.0
    %1199 = vmatpush.msra.mxu0 0.0
    %1200 = vmatpush.msra.mxu0 0.0
    %1201 = vmatpush.msra.mxu0 0.0
    %1202 = vmatpush.msra.mxu0 0.0
    %1203 = vmatpush.msra.mxu0 0.0
    %1204 = vmatpush.msra.mxu0 0.0
    %1205 = vmatpush.msra.mxu0 %v86
    %1206 = vmatpush.msra.mxu0 %v84
    %1207 = vmatpush.msra.mxu0 %v82
    %1208 = vmatpush.msra.mxu0 %v80
    %1209 = vmatpush.msra.mxu0 %v78
    %1210 = vmatpush.msra.mxu0 %v76
    %1211 = vmatpush.msra.mxu0 %v74
    %1212 = vmatpush.msra.mxu0 %v72
    %1213 = vmatmul.f32.gmra.mxu0 %v1195
    %v1214 = vpop.f32.mrf.mxu0
    %v1215 = vadd.f32 0.0, %v1214
    %1216 = vdwg.mxu0
    %1217 = vmatpush.msra.mxu0 0.0
    %1218 = vmatpush.msra.mxu0 0.0
    %1219 = vmatpush.msra.mxu0 0.0
    %1220 = vmatpush.msra.mxu0 0.0
    %1221 = vmatpush.msra.mxu0 0.0
    %1222 = vmatpush.msra.mxu0 0.0
    %1223 = vmatpush.msra.mxu0 0.0
    %1224 = vmatpush.msra.mxu0 0.0
    %1225 = vmatpush.msra.mxu0 %v87
    %1226 = vmatpush.msra.mxu0 %v85
    %1227 = vmatpush.msra.mxu0 %v83
    %1228 = vmatpush.msra.mxu0 %v81
    %1229 = vmatpush.msra.mxu0 %v79
    %1230 = vmatpush.msra.mxu0 %v77
    %1231 = vmatpush.msra.mxu0 %v75
    %1232 = vmatpush.msra.mxu0 %v73
    %1233 = vmatmul.f32.gmra.mxu0 %v1195
    %v1234 = vpop.f32.mrf.mxu0
    %v1235 = vadd.f32 0.0, %v1234
    %1236 = vdwg.mxu0
    %v1239 = vrot.slane %v1215, 2
    %v1240 = vrot.slane %v1235, 2
    %v1243 = vadd.f32 %v906, %v1239
    %v1244 = vadd.f32 %v907, %v1240
    %v1245 = vxor.u32 %v1243, 2147483648
    %v1246 = vxor.u32 %v1244, 2147483648
    %v1247 = vmul.f32 %v1245, 1.442695
    %v1248 = vpow.pop %v1247
    %v1249 = vmul.f32 %v1246, 1.442695
    %v1250 = vpow.pop %v1249
    %v1251 = vadd.f32 %v1248, 1.0
    %v1252 = vadd.f32 %v1250, 1.0
    %v1253 = vrcp.pop %v1251
    %v1254 = vmul.f32 %v1251, %v1253
    %v1255 = vsub.f32 1.0, %v1254
    %v1256 = vmul.f32 %v1253, %v1255
    %v1257 = vadd.f32 %v1253, %v1256
    %vm1258 = vweird.f32 %v1251
    %vm1259 = vweird.f32 %v1253
    %vm1260 = vmor %vm1258, %vm1259
    %v1261 = vsel %vm1260, %v1253, %v1257
    %v1262 = vand.u32 2147483647, %v1251
    %vm1263 = vcmp.eq.f32.partialorder %v1262, 8.507059e+37
    %v1264 = vand.u32 %v1251, 2147483648
    %v1265 = vor.u32 1.1754944e-38, %v1264
    %v1266 = vsel %vm1263, %v1265, %v1261
    %v1267 = vmul.f32 1.0, %v1266
    %v1268 = vrcp.pop %v1252
    %v1269 = vmul.f32 %v1252, %v1268
    %v1270 = vsub.f32 1.0, %v1269
    %v1271 = vmul.f32 %v1268, %v1270
    %v1272 = vadd.f32 %v1268, %v1271
    %vm1273 = vweird.f32 %v1252
    %vm1274 = vweird.f32 %v1268
    %vm1275 = vmor %vm1273, %vm1274
    %v1276 = vsel %vm1275, %v1268, %v1272
    %v1277 = vand.u32 2147483647, %v1252
    %vm1278 = vcmp.eq.f32.partialorder %v1277, 8.507059e+37
    %v1279 = vand.u32 %v1252, 2147483648
    %v1280 = vor.u32 1.1754944e-38, %v1279
    %v1281 = vsel %vm1278, %v1280, %v1276
    %v1282 = vmul.f32 1.0, %v1281
    %v1283 = vtanh.pop %v1244
    %v1285 = vrot.slane %v1191, 2
    %1286 = vrot.lane.b32.xlu0 %v1285, 64
    %v1287 = vpop.permute.xlu0 %1286
    %v1289 = vmul.f32 %v1267, %v1287
    %1291 = vrot.lane.b32.xlu0 %v1283, 64
    %v1292 = vpop.permute.xlu0 %1291
    %v1294 = vmul.f32 %v1267, %v1292
    %1296 = vrot.lane.b32.xlu0 %v1294, 64
    %v1297 = vpop.permute.xlu0 %1296
    %v1299 = vadd.f32 %v1289, %v1297
    %v1300 = vtanh.pop %v1299
    %1302 = vrot.lane.b32.xlu0 %v1300, 64
    %v1303 = vpop.permute.xlu0 %1302
    %v1305 = vmul.f32 %v1282, %v1303
    %1306 = vset.pattern.permute.xlu0 0
    %1307 = vperm.xlu0 %1306, %v1022
    %v1308 = vpop.permute.xlu0 %1307
    %v1310 = vmul.f32 %v60, %v1308
    %v1312 = vrot.slane %v1310, 2
    %v1314 = vadd.f32 %v874, %v1312
    %v1315 = vrot.slane %v1181, 2
    %v1317 = vsub.f32 %v1305, %v1315
    %v1318 = vmul.f32 %v1314, %v1317
    %v1320 = vrot.slane %v1318, 6
    %v1322 = vadd.f32 %v1181, %v1320
    %1323 = vst.msk [vmem:[#allocation2 + $0xe] sm:$0x3] %vm292, %v1322
    %1324 = vst.msk [vmem:[#allocation2] sm:$0x3] %vm294, %v1322
    %v1325 = vld [vmem:[#allocation2] sm:$0xff]
    %v1326 = vld [vmem:[#allocation2 + $0x8] sm:$0xff]
    %v1327 = vld [vmem:[%s5] sm:$0xff]
    %v1328 = vld [vmem:[%s5 + $0x8] sm:$0xff]
    %v1329 = vld [vmem:[%s5 + $0x10] sm:$0xff]
    %v1330 = vld [vmem:[%s5 + $0x18] sm:$0xff]
    %v1331 = vld [vmem:[%s5 + $0x20] sm:$0xff]
    %v1332 = vld [vmem:[%s5 + $0x28] sm:$0xff]
    %v1333 = vld [vmem:[%s5 + $0x30] sm:$0xff]
    %v1334 = vld [vmem:[%s5 + $0x38] sm:$0xff]
    %v1335 = vld [vmem:[%s5 + $0x40] sm:$0xff]
    %v1336 = vld [vmem:[%s5 + $0x48] sm:$0xff]
    %v1337 = vld [vmem:[%s5 + $0x50] sm:$0xff]
    %v1338 = vld [vmem:[%s5 + $0x58] sm:$0xff]
    %v1339 = vld [vmem:[%s5 + $0x60] sm:$0xff]
    %v1340 = vld [vmem:[%s5 + $0x68] sm:$0xff]
    %v1341 = vld [vmem:[%s5 + $0x70] sm:$0xff]
    %v1342 = vld [vmem:[%s5 + $0x78] sm:$0xff]
    %v1343 = vld [vmem:[%s7] sm:$0x3]
    %v1344 = vld [vmem:[%s6] sm:$0xff]
    %v1345 = vld [vmem:[%s6 + $0x8] sm:$0xff]
    %v1346 = vld [vmem:[%s6 + $0x10] sm:$0xff]
    %v1347 = vld [vmem:[%s6 + $0x18] sm:$0xff]
    %v1348 = vld [vmem:[%s6 + $0x20] sm:$0xff]
    %v1349 = vld [vmem:[%s6 + $0x28] sm:$0xff]
    %v1350 = vld [vmem:[%s6 + $0x30] sm:$0xff]
    %v1351 = vld [vmem:[%s6 + $0x38] sm:$0xff]
    %v1352 = vld [vmem:[%s6 + $0x40] sm:$0xff]
    %v1353 = vld [vmem:[%s6 + $0x48] sm:$0xff]
    %v1354 = vld [vmem:[%s6 + $0x50] sm:$0xff]
    %v1355 = vld [vmem:[%s6 + $0x58] sm:$0xff]
    %v1356 = vld [vmem:[%s6 + $0x60] sm:$0xff]
    %v1357 = vld [vmem:[%s6 + $0x68] sm:$0xff]
    %v1358 = vld [vmem:[%s6 + $0x70] sm:$0xff]
    %v1359 = vld [vmem:[%s6 + $0x78] sm:$0xff]
    %v1361 = vperm.slane %v1343, 0
    %v1362 = vperm.slane %v1343, 1
    %v1366 = vsel %vm164, %v1325, 0
    %v1369 = vsel %vm164, %v1326, 0
    %1371 = vmatpush.msra.mxu0 0.0
    %1372 = vmatpush.msra.mxu0 0.0
    %1373 = vmatpush.msra.mxu0 0.0
    %1374 = vmatpush.msra.mxu0 0.0
    %1375 = vmatpush.msra.mxu0 0.0
    %1376 = vmatpush.msra.mxu0 0.0
    %1377 = vmatpush.msra.mxu0 0.0
    %1378 = vmatpush.msra.mxu0 0.0
    %1379 = vmatpush.msra.mxu0 %v1341
    %1380 = vmatpush.msra.mxu0 %v1339
    %1381 = vmatpush.msra.mxu0 %v1337
    %1382 = vmatpush.msra.mxu0 %v1335
    %1383 = vmatpush.msra.mxu0 %v1333
    %1384 = vmatpush.msra.mxu0 %v1331
    %1385 = vmatpush.msra.mxu0 %v1329
    %1386 = vmatpush.msra.mxu0 %v1327
    %1387 = vmatmul.f32.gmra.mxu0 %v1366
    %v1388 = vpop.f32.mrf.mxu0
    %v1389 = vadd.f32 %v1361, %v1388
    %1390 = vmatmul.f32.gmra.mxu0 %v1369
    %v1391 = vpop.f32.mrf.mxu0
    %v1392 = vadd.f32 %v1361, %v1391
    %1393 = vdwg.mxu0
    %1394 = vmatpush.msra.mxu0 0.0
    %1395 = vmatpush.msra.mxu0 0.0
    %1396 = vmatpush.msra.mxu0 0.0
    %1397 = vmatpush.msra.mxu0 0.0
    %1398 = vmatpush.msra.mxu0 0.0
    %1399 = vmatpush.msra.mxu0 0.0
    %1400 = vmatpush.msra.mxu0 0.0
    %1401 = vmatpush.msra.mxu0 0.0
    %1402 = vmatpush.msra.mxu0 %v1342
    %1403 = vmatpush.msra.mxu0 %v1340
    %1404 = vmatpush.msra.mxu0 %v1338
    %1405 = vmatpush.msra.mxu0 %v1336
    %1406 = vmatpush.msra.mxu0 %v1334
    %1407 = vmatpush.msra.mxu0 %v1332
    %1408 = vmatpush.msra.mxu0 %v1330
    %1409 = vmatpush.msra.mxu0 %v1328
    %1410 = vmatmul.f32.gmra.mxu0 %v1366
    %v1411 = vpop.f32.mrf.mxu0
    %v1412 = vadd.f32 %v1362, %v1411
    %1413 = vmatmul.f32.gmra.mxu0 %v1369
    %v1414 = vpop.f32.mrf.mxu0
    %v1415 = vadd.f32 %v1362, %v1414
    %1416 = vdwg.mxu0
    %v1419 = vrot.slane %v1389, 2
    %v1420 = vrot.slane %v1412, 2
    %v1423 = vsub.f32 %v1392, %v1419
    %v1424 = vsub.f32 %v1415, %v1420
    %v1425 = vmul.f32 %v57, %v1423
    %v1426 = vmul.f32 %v58, %v1424
    %v1429 = vrot.slane %v1425, 6
    %v1430 = vrot.slane %v1426, 6
    %v1433 = vadd.f32 %v1389, %v1429
    %v1434 = vadd.f32 %v1412, %v1430
    %1435 = vmatpush.msra.mxu0 0.0
    %1436 = vmatpush.msra.mxu0 0.0
    %1437 = vmatpush.msra.mxu0 0.0
    %1438 = vmatpush.msra.mxu0 0.0
    %1439 = vmatpush.msra.mxu0 0.0
    %1440 = vmatpush.msra.mxu0 0.0
    %1441 = vmatpush.msra.mxu0 0.0
    %1442 = vmatpush.msra.mxu0 0.0
    %1443 = vmatpush.msra.mxu0 %v1358
    %1444 = vmatpush.msra.mxu0 %v1356
    %1445 = vmatpush.msra.mxu0 %v1354
    %1446 = vmatpush.msra.mxu0 %v1352
    %1447 = vmatpush.msra.mxu0 %v1350
    %1448 = vmatpush.msra.mxu0 %v1348
    %1449 = vmatpush.msra.mxu0 %v1346
    %1450 = vmatpush.msra.mxu0 %v1344
    %1451 = vmatmul.f32.gmra.mxu0 %v166
    %v1452 = vpop.f32.mrf.mxu0
    %v1453 = vadd.f32 0.0, %v1452
    %1454 = vdwg.mxu0
    %1455 = vmatpush.msra.mxu0 0.0
    %1456 = vmatpush.msra.mxu0 0.0
    %1457 = vmatpush.msra.mxu0 0.0
    %1458 = vmatpush.msra.mxu0 0.0
    %1459 = vmatpush.msra.mxu0 0.0
    %1460 = vmatpush.msra.mxu0 0.0
    %1461 = vmatpush.msra.mxu0 0.0
    %1462 = vmatpush.msra.mxu0 0.0
    %1463 = vmatpush.msra.mxu0 %v1359
    %1464 = vmatpush.msra.mxu0 %v1357
    %1465 = vmatpush.msra.mxu0 %v1355
    %1466 = vmatpush.msra.mxu0 %v1353
    %1467 = vmatpush.msra.mxu0 %v1351
    %1468 = vmatpush.msra.mxu0 %v1349
    %1469 = vmatpush.msra.mxu0 %v1347
    %1470 = vmatpush.msra.mxu0 %v1345
    %1471 = vmatmul.f32.gmra.mxu0 %v166
    %v1472 = vpop.f32.mrf.mxu0
    %v1473 = vadd.f32 0.0, %v1472
    %1474 = vdwg.mxu0
    %v1475 = vadd.f32 %v1433, %v1453
    %v1476 = vadd.f32 %v1434, %v1473
    %v1477 = vxor.u32 %v1475, 2147483648
    %v1478 = vxor.u32 %v1476, 2147483648
    %v1479 = vmul.f32 %v1477, 1.442695
    %v1480 = vpow.pop %v1479
    %v1481 = vmul.f32 %v1478, 1.442695
    %v1482 = vpow.pop %v1481
    %v1483 = vadd.f32 %v1480, 1.0
    %v1484 = vadd.f32 %v1482, 1.0
    %v1485 = vrcp.pop %v1483
    %v1486 = vmul.f32 %v1483, %v1485
    %v1487 = vsub.f32 1.0, %v1486
    %v1488 = vmul.f32 %v1485, %v1487
    %v1489 = vadd.f32 %v1485, %v1488
    %vm1490 = vweird.f32 %v1483
    %vm1491 = vweird.f32 %v1485
    %vm1492 = vmor %vm1490, %vm1491
    %v1493 = vsel %vm1492, %v1485, %v1489
    %v1494 = vand.u32 2147483647, %v1483
    %vm1495 = vcmp.eq.f32.partialorder %v1494, 8.507059e+37
    %v1496 = vand.u32 %v1483, 2147483648
    %v1497 = vor.u32 1.1754944e-38, %v1496
    %v1498 = vsel %vm1495, %v1497, %v1493
    %v1499 = vmul.f32 1.0, %v1498
    %v1500 = vrcp.pop %v1484
    %v1501 = vmul.f32 %v1484, %v1500
    %v1502 = vsub.f32 1.0, %v1501
    %v1503 = vmul.f32 %v1500, %v1502
    %v1504 = vadd.f32 %v1500, %v1503
    %vm1505 = vweird.f32 %v1484
    %vm1506 = vweird.f32 %v1500
    %vm1507 = vmor %vm1505, %vm1506
    %v1508 = vsel %vm1507, %v1500, %v1504
    %v1509 = vand.u32 2147483647, %v1484
    %vm1510 = vcmp.eq.f32.partialorder %v1509, 8.507059e+37
    %v1511 = vand.u32 %v1484, 2147483648
    %v1512 = vor.u32 1.1754944e-38, %v1511
    %v1513 = vsel %vm1510, %v1512, %v1508
    %v1514 = vmul.f32 1.0, %v1513
    %v1515 = vtanh.pop %v1476
    %v1516 = vmul.f32 %v1499, 0.0
    %1518 = vrot.lane.b32.xlu0 %v1515, 64
    %v1519 = vpop.permute.xlu0 %1518
    %v1521 = vmul.f32 %v1499, %v1519
    %1523 = vrot.lane.b32.xlu0 %v1521, 64
    %v1524 = vpop.permute.xlu0 %1523
    %v1526 = vadd.f32 %v1516, %v1524
    %v1527 = vtanh.pop %v1526
    %1529 = vrot.lane.b32.xlu0 %v1527, 64
    %v1530 = vpop.permute.xlu0 %1529
    %v1532 = vmul.f32 %v1514, %v1530
    %v1533 = vmul.f32 %v283, %v1532
    %v1534 = vadd.f32 %v1533, 0.0
    %1536 = vrot.lane.b32.xlu0 %v1526, 64
    %v1537 = vpop.permute.xlu0 %1536
    %v1539 = vmul.f32 %v283, %v1537
    %v1540 = vadd.f32 %v1539, 0.0
    %1541 = vst.msk [vmem:[#allocation3] sm:$0x3] %vm292, %v1534
    %1542 = vst.msk [vmem:[#allocation3 + $0xe] sm:$0x3] %vm294, %v1534
    %v1543 = vrot.slane %v1389, 6
    %v1544 = vrot.slane %v1412, 6
    %v1547 = vsub.f32 %v1392, %v1543
    %v1548 = vsub.f32 %v1415, %v1544
    %v1549 = vmul.f32 %v57, %v1547
    %v1550 = vmul.f32 %v58, %v1548
    %v1553 = vrot.slane %v1549, 2
    %v1554 = vrot.slane %v1550, 2
    %v1557 = vadd.f32 %v1389, %v1553
    %v1558 = vadd.f32 %v1412, %v1554
    %v1560 = vsel %vm164, %v1534, 0
    %1562 = vmatpush.msra.mxu0 0.0
    %1563 = vmatpush.msra.mxu0 0.0
    %1564 = vmatpush.msra.mxu0 0.0
    %1565 = vmatpush.msra.mxu0 0.0
    %1566 = vmatpush.msra.mxu0 0.0
    %1567 = vmatpush.msra.mxu0 0.0
    %1568 = vmatpush.msra.mxu0 0.0
    %1569 = vmatpush.msra.mxu0 0.0
    %1570 = vmatpush.msra.mxu0 %v1358
    %1571 = vmatpush.msra.mxu0 %v1356
    %1572 = vmatpush.msra.mxu0 %v1354
    %1573 = vmatpush.msra.mxu0 %v1352
    %1574 = vmatpush.msra.mxu0 %v1350
    %1575 = vmatpush.msra.mxu0 %v1348
    %1576 = vmatpush.msra.mxu0 %v1346
    %1577 = vmatpush.msra.mxu0 %v1344
    %1578 = vmatmul.f32.gmra.mxu0 %v1560
    %v1579 = vpop.f32.mrf.mxu0
    %v1580 = vadd.f32 0.0, %v1579
    %1581 = vdwg.mxu0
    %1582 = vmatpush.msra.mxu0 0.0
    %1583 = vmatpush.msra.mxu0 0.0
    %1584 = vmatpush.msra.mxu0 0.0
    %1585 = vmatpush.msra.mxu0 0.0
    %1586 = vmatpush.msra.mxu0 0.0
    %1587 = vmatpush.msra.mxu0 0.0
    %1588 = vmatpush.msra.mxu0 0.0
    %1589 = vmatpush.msra.mxu0 0.0
    %1590 = vmatpush.msra.mxu0 %v1359
    %1591 = vmatpush.msra.mxu0 %v1357
    %1592 = vmatpush.msra.mxu0 %v1355
    %1593 = vmatpush.msra.mxu0 %v1353
    %1594 = vmatpush.msra.mxu0 %v1351
    %1595 = vmatpush.msra.mxu0 %v1349
    %1596 = vmatpush.msra.mxu0 %v1347
    %1597 = vmatpush.msra.mxu0 %v1345
    %1598 = vmatmul.f32.gmra.mxu0 %v1560
    %v1599 = vpop.f32.mrf.mxu0
    %v1600 = vadd.f32 0.0, %v1599
    %1601 = vdwg.mxu0
    %v1604 = vrot.slane %v1580, 6
    %v1605 = vrot.slane %v1600, 6
    %v1608 = vadd.f32 %v1557, %v1604
    %v1609 = vadd.f32 %v1558, %v1605
    %v1610 = vxor.u32 %v1608, 2147483648
    %v1611 = vxor.u32 %v1609, 2147483648
    %v1612 = vmul.f32 %v1610, 1.442695
    %v1613 = vpow.pop %v1612
    %v1614 = vmul.f32 %v1611, 1.442695
    %v1615 = vpow.pop %v1614
    %v1616 = vadd.f32 %v1613, 1.0
    %v1617 = vadd.f32 %v1615, 1.0
    %v1618 = vrcp.pop %v1616
    %v1619 = vmul.f32 %v1616, %v1618
    %v1620 = vsub.f32 1.0, %v1619
    %v1621 = vmul.f32 %v1618, %v1620
    %v1622 = vadd.f32 %v1618, %v1621
    %vm1623 = vweird.f32 %v1616
    %vm1624 = vweird.f32 %v1618
    %vm1625 = vmor %vm1623, %vm1624
    %v1626 = vsel %vm1625, %v1618, %v1622
    %v1627 = vand.u32 2147483647, %v1616
    %vm1628 = vcmp.eq.f32.partialorder %v1627, 8.507059e+37
    %v1629 = vand.u32 %v1616, 2147483648
    %v1630 = vor.u32 1.1754944e-38, %v1629
    %v1631 = vsel %vm1628, %v1630, %v1626
    %v1632 = vmul.f32 1.0, %v1631
    %v1633 = vrcp.pop %v1617
    %v1634 = vmul.f32 %v1617, %v1633
    %v1635 = vsub.f32 1.0, %v1634
    %v1636 = vmul.f32 %v1633, %v1635
    %v1637 = vadd.f32 %v1633, %v1636
    %vm1638 = vweird.f32 %v1617
    %vm1639 = vweird.f32 %v1633
    %vm1640 = vmor %vm1638, %vm1639
    %v1641 = vsel %vm1640, %v1633, %v1637
    %v1642 = vand.u32 2147483647, %v1617
    %vm1643 = vcmp.eq.f32.partialorder %v1642, 8.507059e+37
    %v1644 = vand.u32 %v1617, 2147483648
    %v1645 = vor.u32 1.1754944e-38, %v1644
    %v1646 = vsel %vm1643, %v1645, %v1641
    %v1647 = vmul.f32 1.0, %v1646
    %v1648 = vtanh.pop %v1609
    %v1650 = vrot.slane %v1540, 6
    %1651 = vrot.lane.b32.xlu0 %v1650, 64
    %v1652 = vpop.permute.xlu0 %1651
    %v1654 = vmul.f32 %v1632, %v1652
    %1656 = vrot.lane.b32.xlu0 %v1648, 64
    %v1657 = vpop.permute.xlu0 %1656
    %v1659 = vmul.f32 %v1632, %v1657
    %1661 = vrot.lane.b32.xlu0 %v1659, 64
    %v1662 = vpop.permute.xlu0 %1661
    %v1664 = vadd.f32 %v1654, %v1662
    %v1665 = vtanh.pop %v1664
    %1667 = vrot.lane.b32.xlu0 %v1665, 64
    %v1668 = vpop.permute.xlu0 %1667
    %v1670 = vmul.f32 %v1647, %v1668
    %v1671 = vrot.slane %v1534, 6
    %v1673 = vsub.f32 %v1670, %v1671
    %v1674 = vmul.f32 %v436, %v1673
    %v1676 = vrot.slane %v1674, 2
    %v1678 = vadd.f32 %v1534, %v1676
    %v1679 = vsub.f32 %v1664, %v1652
    %1681 = vrot.lane.b32.xlu0 %v1679, 64
    %v1682 = vpop.permute.xlu0 %1681
    %v1684 = vmul.f32 %v436, %v1682
    %v1686 = vrot.slane %v1684, 2
    %v1688 = vadd.f32 %v1540, %v1686
    %1689 = vst.msk [vmem:[#allocation3 + $0x2] sm:$0x3] %vm292, %v1678
    %1690 = vst.msk [vmem:[#allocation3 + $0xc] sm:$0x3] %vm294, %v1678
    %v1692 = vsel %vm164, %v1678, 0
    %1694 = vmatpush.msra.mxu0 0.0
    %1695 = vmatpush.msra.mxu0 0.0
    %1696 = vmatpush.msra.mxu0 0.0
    %1697 = vmatpush.msra.mxu0 0.0
    %1698 = vmatpush.msra.mxu0 0.0
    %1699 = vmatpush.msra.mxu0 0.0
    %1700 = vmatpush.msra.mxu0 0.0
    %1701 = vmatpush.msra.mxu0 0.0
    %1702 = vmatpush.msra.mxu0 %v1358
    %1703 = vmatpush.msra.mxu0 %v1356
    %1704 = vmatpush.msra.mxu0 %v1354
    %1705 = vmatpush.msra.mxu0 %v1352
    %1706 = vmatpush.msra.mxu0 %v1350
    %1707 = vmatpush.msra.mxu0 %v1348
    %1708 = vmatpush.msra.mxu0 %v1346
    %1709 = vmatpush.msra.mxu0 %v1344
    %1710 = vmatmul.f32.gmra.mxu0 %v1692
    %v1711 = vpop.f32.mrf.mxu0
    %v1712 = vadd.f32 0.0, %v1711
    %1713 = vdwg.mxu0
    %1714 = vmatpush.msra.mxu0 0.0
    %1715 = vmatpush.msra.mxu0 0.0
    %1716 = vmatpush.msra.mxu0 0.0
    %1717 = vmatpush.msra.mxu0 0.0
    %1718 = vmatpush.msra.mxu0 0.0
    %1719 = vmatpush.msra.mxu0 0.0
    %1720 = vmatpush.msra.mxu0 0.0
    %1721 = vmatpush.msra.mxu0 0.0
    %1722 = vmatpush.msra.mxu0 %v1359
    %1723 = vmatpush.msra.mxu0 %v1357
    %1724 = vmatpush.msra.mxu0 %v1355
    %1725 = vmatpush.msra.mxu0 %v1353
    %1726 = vmatpush.msra.mxu0 %v1351
    %1727 = vmatpush.msra.mxu0 %v1349
    %1728 = vmatpush.msra.mxu0 %v1347
    %1729 = vmatpush.msra.mxu0 %v1345
    %1730 = vmatmul.f32.gmra.mxu0 %v1692
    %v1731 = vpop.f32.mrf.mxu0
    %v1732 = vadd.f32 0.0, %v1731
    %1733 = vdwg.mxu0
    %v1736 = vrot.slane %v1712, 4
    %v1737 = vrot.slane %v1732, 4
    %v1740 = vadd.f32 %v1433, %v1736
    %v1741 = vadd.f32 %v1434, %v1737
    %v1742 = vxor.u32 %v1740, 2147483648
    %v1743 = vxor.u32 %v1741, 2147483648
    %v1744 = vmul.f32 %v1742, 1.442695
    %v1745 = vpow.pop %v1744
    %v1746 = vmul.f32 %v1743, 1.442695
    %v1747 = vpow.pop %v1746
    %v1748 = vadd.f32 %v1745, 1.0
    %v1749 = vadd.f32 %v1747, 1.0
    %v1750 = vrcp.pop %v1748
    %v1751 = vmul.f32 %v1748, %v1750
    %v1752 = vsub.f32 1.0, %v1751
    %v1753 = vmul.f32 %v1750, %v1752
    %v1754 = vadd.f32 %v1750, %v1753
    %vm1755 = vweird.f32 %v1748
    %vm1756 = vweird.f32 %v1750
    %vm1757 = vmor %vm1755, %vm1756
    %v1758 = vsel %vm1757, %v1750, %v1754
    %v1759 = vand.u32 2147483647, %v1748
    %vm1760 = vcmp.eq.f32.partialorder %v1759, 8.507059e+37
    %v1761 = vand.u32 %v1748, 2147483648
    %v1762 = vor.u32 1.1754944e-38, %v1761
    %v1763 = vsel %vm1760, %v1762, %v1758
    %v1764 = vmul.f32 1.0, %v1763
    %v1765 = vrcp.pop %v1749
    %v1766 = vmul.f32 %v1749, %v1765
    %v1767 = vsub.f32 1.0, %v1766
    %v1768 = vmul.f32 %v1765, %v1767
    %v1769 = vadd.f32 %v1765, %v1768
    %vm1770 = vweird.f32 %v1749
    %vm1771 = vweird.f32 %v1765
    %vm1772 = vmor %vm1770, %vm1771
    %v1773 = vsel %vm1772, %v1765, %v1769
    %v1774 = vand.u32 2147483647, %v1749
    %vm1775 = vcmp.eq.f32.partialorder %v1774, 8.507059e+37
    %v1776 = vand.u32 %v1749, 2147483648
    %v1777 = vor.u32 1.1754944e-38, %v1776
    %v1778 = vsel %vm1775, %v1777, %v1773
    %v1779 = vmul.f32 1.0, %v1778
    %v1780 = vtanh.pop %v1741
    %v1782 = vrot.slane %v1688, 4
    %1783 = vrot.lane.b32.xlu0 %v1782, 64
    %v1784 = vpop.permute.xlu0 %1783
    %v1786 = vmul.f32 %v1764, %v1784
    %1788 = vrot.lane.b32.xlu0 %v1780, 64
    %v1789 = vpop.permute.xlu0 %1788
    %v1791 = vmul.f32 %v1764, %v1789
    %1793 = vrot.lane.b32.xlu0 %v1791, 64
    %v1794 = vpop.permute.xlu0 %1793
    %v1796 = vadd.f32 %v1786, %v1794
    %v1797 = vtanh.pop %v1796
    %1799 = vrot.lane.b32.xlu0 %v1797, 64
    %v1800 = vpop.permute.xlu0 %1799
    %v1802 = vmul.f32 %v1779, %v1800
    %v1803 = vrot.slane %v1678, 4
    %v1805 = vsub.f32 %v1802, %v1803
    %v1806 = vmul.f32 %v577, %v1805
    %v1808 = vrot.slane %v1806, 4
    %v1810 = vadd.f32 %v1678, %v1808
    %v1811 = vsub.f32 %v1796, %v1784
    %1813 = vrot.lane.b32.xlu0 %v1811, 64
    %v1814 = vpop.permute.xlu0 %1813
    %v1816 = vmul.f32 %v577, %v1814
    %v1818 = vrot.slane %v1816, 4
    %v1820 = vadd.f32 %v1688, %v1818
    %1821 = vst.msk [vmem:[#allocation3 + $0x4] sm:$0x3] %vm292, %v1810
    %1822 = vst.msk [vmem:[#allocation3 + $0xa] sm:$0x3] %vm294, %v1810
    %v1824 = vsel %vm164, %v1810, 0
    %1826 = vmatpush.msra.mxu0 0.0
    %1827 = vmatpush.msra.mxu0 0.0
    %1828 = vmatpush.msra.mxu0 0.0
    %1829 = vmatpush.msra.mxu0 0.0
    %1830 = vmatpush.msra.mxu0 0.0
    %1831 = vmatpush.msra.mxu0 0.0
    %1832 = vmatpush.msra.mxu0 0.0
    %1833 = vmatpush.msra.mxu0 0.0
    %1834 = vmatpush.msra.mxu0 %v1358
    %1835 = vmatpush.msra.mxu0 %v1356
    %1836 = vmatpush.msra.mxu0 %v1354
    %1837 = vmatpush.msra.mxu0 %v1352
    %1838 = vmatpush.msra.mxu0 %v1350
    %1839 = vmatpush.msra.mxu0 %v1348
    %1840 = vmatpush.msra.mxu0 %v1346
    %1841 = vmatpush.msra.mxu0 %v1344
    %1842 = vmatmul.f32.gmra.mxu0 %v1824
    %v1843 = vpop.f32.mrf.mxu0
    %v1844 = vadd.f32 0.0, %v1843
    %1845 = vdwg.mxu0
    %1846 = vmatpush.msra.mxu0 0.0
    %1847 = vmatpush.msra.mxu0 0.0
    %1848 = vmatpush.msra.mxu0 0.0
    %1849 = vmatpush.msra.mxu0 0.0
    %1850 = vmatpush.msra.mxu0 0.0
    %1851 = vmatpush.msra.mxu0 0.0
    %1852 = vmatpush.msra.mxu0 0.0
    %1853 = vmatpush.msra.mxu0 0.0
    %1854 = vmatpush.msra.mxu0 %v1359
    %1855 = vmatpush.msra.mxu0 %v1357
    %1856 = vmatpush.msra.mxu0 %v1355
    %1857 = vmatpush.msra.mxu0 %v1353
    %1858 = vmatpush.msra.mxu0 %v1351
    %1859 = vmatpush.msra.mxu0 %v1349
    %1860 = vmatpush.msra.mxu0 %v1347
    %1861 = vmatpush.msra.mxu0 %v1345
    %1862 = vmatmul.f32.gmra.mxu0 %v1824
    %v1863 = vpop.f32.mrf.mxu0
    %v1864 = vadd.f32 0.0, %v1863
    %1865 = vdwg.mxu0
    %v1868 = vrot.slane %v1844, 2
    %v1869 = vrot.slane %v1864, 2
    %v1872 = vadd.f32 %v1557, %v1868
    %v1873 = vadd.f32 %v1558, %v1869
    %v1874 = vxor.u32 %v1872, 2147483648
    %v1875 = vxor.u32 %v1873, 2147483648
    %v1876 = vmul.f32 %v1874, 1.442695
    %v1877 = vpow.pop %v1876
    %v1878 = vmul.f32 %v1875, 1.442695
    %v1879 = vpow.pop %v1878
    %v1880 = vadd.f32 %v1877, 1.0
    %v1881 = vadd.f32 %v1879, 1.0
    %v1882 = vrcp.pop %v1880
    %v1883 = vmul.f32 %v1880, %v1882
    %v1884 = vsub.f32 1.0, %v1883
    %v1885 = vmul.f32 %v1882, %v1884
    %v1886 = vadd.f32 %v1882, %v1885
    %vm1887 = vweird.f32 %v1880
    %vm1888 = vweird.f32 %v1882
    %vm1889 = vmor %vm1887, %vm1888
    %v1890 = vsel %vm1889, %v1882, %v1886
    %v1891 = vand.u32 2147483647, %v1880
    %vm1892 = vcmp.eq.f32.partialorder %v1891, 8.507059e+37
    %v1893 = vand.u32 %v1880, 2147483648
    %v1894 = vor.u32 1.1754944e-38, %v1893
    %v1895 = vsel %vm1892, %v1894, %v1890
    %v1896 = vmul.f32 1.0, %v1895
    %v1897 = vrcp.pop %v1881
    %v1898 = vmul.f32 %v1881, %v1897
    %v1899 = vsub.f32 1.0, %v1898
    %v1900 = vmul.f32 %v1897, %v1899
    %v1901 = vadd.f32 %v1897, %v1900
    %vm1902 = vweird.f32 %v1881
    %vm1903 = vweird.f32 %v1897
    %vm1904 = vmor %vm1902, %vm1903
    %v1905 = vsel %vm1904, %v1897, %v1901
    %v1906 = vand.u32 2147483647, %v1881
    %vm1907 = vcmp.eq.f32.partialorder %v1906, 8.507059e+37
    %v1908 = vand.u32 %v1881, 2147483648
    %v1909 = vor.u32 1.1754944e-38, %v1908
    %v1910 = vsel %vm1907, %v1909, %v1905
    %v1911 = vmul.f32 1.0, %v1910
    %v1912 = vtanh.pop %v1873
    %v1914 = vrot.slane %v1820, 2
    %1915 = vrot.lane.b32.xlu0 %v1914, 64
    %v1916 = vpop.permute.xlu0 %1915
    %v1918 = vmul.f32 %v1896, %v1916
    %1920 = vrot.lane.b32.xlu0 %v1912, 64
    %v1921 = vpop.permute.xlu0 %1920
    %v1923 = vmul.f32 %v1896, %v1921
    %1925 = vrot.lane.b32.xlu0 %v1923, 64
    %v1926 = vpop.permute.xlu0 %1925
    %v1928 = vadd.f32 %v1918, %v1926
    %v1929 = vtanh.pop %v1928
    %1931 = vrot.lane.b32.xlu0 %v1929, 64
    %v1932 = vpop.permute.xlu0 %1931
    %v1934 = vmul.f32 %v1911, %v1932
    %v1935 = vrot.slane %v1810, 2
    %v1937 = vsub.f32 %v1934, %v1935
    %v1938 = vmul.f32 %v718, %v1937
    %v1940 = vrot.slane %v1938, 6
    %v1942 = vadd.f32 %v1810, %v1940
    %v1943 = vsub.f32 %v1928, %v1916
    %1945 = vrot.lane.b32.xlu0 %v1943, 64
    %v1946 = vpop.permute.xlu0 %1945
    %v1948 = vmul.f32 %v718, %v1946
    %v1950 = vrot.slane %v1948, 6
    %v1952 = vadd.f32 %v1820, %v1950
    %1953 = vst.msk [vmem:[#allocation3 + $0x6] sm:$0x3] %vm292, %v1942
    %1954 = vst.msk [vmem:[#allocation3 + $0x8] sm:$0x3] %vm294, %v1942
    %v1957 = vrot.slane %v1392, 2
    %v1958 = vrot.slane %v1415, 2
    %v1961 = vsub.f32 %v1389, %v1957
    %v1962 = vsub.f32 %v1412, %v1958
    %v1963 = vmul.f32 %v57, %v1961
    %v1964 = vmul.f32 %v58, %v1962
    %v1967 = vrot.slane %v1963, 6
    %v1968 = vrot.slane %v1964, 6
    %v1971 = vadd.f32 %v1392, %v1967
    %v1972 = vadd.f32 %v1415, %v1968
    %v1974 = vsel %vm164, %v1942, 0
    %1976 = vmatpush.msra.mxu0 0.0
    %1977 = vmatpush.msra.mxu0 0.0
    %1978 = vmatpush.msra.mxu0 0.0
    %1979 = vmatpush.msra.mxu0 0.0
    %1980 = vmatpush.msra.mxu0 0.0
    %1981 = vmatpush.msra.mxu0 0.0
    %1982 = vmatpush.msra.mxu0 0.0
    %1983 = vmatpush.msra.mxu0 0.0
    %1984 = vmatpush.msra.mxu0 %v1358
    %1985 = vmatpush.msra.mxu0 %v1356
    %1986 = vmatpush.msra.mxu0 %v1354
    %1987 = vmatpush.msra.mxu0 %v1352
    %1988 = vmatpush.msra.mxu0 %v1350
    %1989 = vmatpush.msra.mxu0 %v1348
    %1990 = vmatpush.msra.mxu0 %v1346
    %1991 = vmatpush.msra.mxu0 %v1344
    %1992 = vmatmul.f32.gmra.mxu0 %v1974
    %v1993 = vpop.f32.mrf.mxu0
    %v1994 = vadd.f32 0.0, %v1993
    %1995 = vdwg.mxu0
    %1996 = vmatpush.msra.mxu0 0.0
    %1997 = vmatpush.msra.mxu0 0.0
    %1998 = vmatpush.msra.mxu0 0.0
    %1999 = vmatpush.msra.mxu0 0.0
    %2000 = vmatpush.msra.mxu0 0.0
    %2001 = vmatpush.msra.mxu0 0.0
    %2002 = vmatpush.msra.mxu0 0.0
    %2003 = vmatpush.msra.mxu0 0.0
    %2004 = vmatpush.msra.mxu0 %v1359
    %2005 = vmatpush.msra.mxu0 %v1357
    %2006 = vmatpush.msra.mxu0 %v1355
    %2007 = vmatpush.msra.mxu0 %v1353
    %2008 = vmatpush.msra.mxu0 %v1351
    %2009 = vmatpush.msra.mxu0 %v1349
    %2010 = vmatpush.msra.mxu0 %v1347
    %2011 = vmatpush.msra.mxu0 %v1345
    %2012 = vmatmul.f32.gmra.mxu0 %v1974
    %v2013 = vpop.f32.mrf.mxu0
    %v2014 = vadd.f32 0.0, %v2013
    %2015 = vdwg.mxu0
    %v2016 = vadd.f32 %v1971, %v1994
    %v2017 = vadd.f32 %v1972, %v2014
    %v2018 = vxor.u32 %v2016, 2147483648
    %v2019 = vxor.u32 %v2017, 2147483648
    %v2020 = vmul.f32 %v2018, 1.442695
    %v2021 = vpow.pop %v2020
    %v2022 = vmul.f32 %v2019, 1.442695
    %v2023 = vpow.pop %v2022
    %v2024 = vadd.f32 %v2021, 1.0
    %v2025 = vadd.f32 %v2023, 1.0
    %v2026 = vrcp.pop %v2024
    %v2027 = vmul.f32 %v2024, %v2026
    %v2028 = vsub.f32 1.0, %v2027
    %v2029 = vmul.f32 %v2026, %v2028
    %v2030 = vadd.f32 %v2026, %v2029
    %vm2031 = vweird.f32 %v2024
    %vm2032 = vweird.f32 %v2026
    %vm2033 = vmor %vm2031, %vm2032
    %v2034 = vsel %vm2033, %v2026, %v2030
    %v2035 = vand.u32 2147483647, %v2024
    %vm2036 = vcmp.eq.f32.partialorder %v2035, 8.507059e+37
    %v2037 = vand.u32 %v2024, 2147483648
    %v2038 = vor.u32 1.1754944e-38, %v2037
    %v2039 = vsel %vm2036, %v2038, %v2034
    %v2040 = vmul.f32 1.0, %v2039
    %v2041 = vrcp.pop %v2025
    %v2042 = vmul.f32 %v2025, %v2041
    %v2043 = vsub.f32 1.0, %v2042
    %v2044 = vmul.f32 %v2041, %v2043
    %v2045 = vadd.f32 %v2041, %v2044
    %vm2046 = vweird.f32 %v2025
    %vm2047 = vweird.f32 %v2041
    %vm2048 = vmor %vm2046, %vm2047
    %v2049 = vsel %vm2048, %v2041, %v2045
    %v2050 = vand.u32 2147483647, %v2025
    %vm2051 = vcmp.eq.f32.partialorder %v2050, 8.507059e+37
    %v2052 = vand.u32 %v2025, 2147483648
    %v2053 = vor.u32 1.1754944e-38, %v2052
    %v2054 = vsel %vm2051, %v2053, %v2049
    %v2055 = vmul.f32 1.0, %v2054
    %v2056 = vtanh.pop %v2017
    %2058 = vrot.lane.b32.xlu0 %v1952, 64
    %v2059 = vpop.permute.xlu0 %2058
    %v2061 = vmul.f32 %v2040, %v2059
    %2063 = vrot.lane.b32.xlu0 %v2056, 64
    %v2064 = vpop.permute.xlu0 %2063
    %v2066 = vmul.f32 %v2040, %v2064
    %2068 = vrot.lane.b32.xlu0 %v2066, 64
    %v2069 = vpop.permute.xlu0 %2068
    %v2071 = vadd.f32 %v2061, %v2069
    %v2072 = vtanh.pop %v2071
    %2074 = vrot.lane.b32.xlu0 %v2072, 64
    %v2075 = vpop.permute.xlu0 %2074
    %v2077 = vmul.f32 %v2055, %v2075
    %v2078 = vsub.f32 %v2077, %v1942
    %v2079 = vmul.f32 %v879, %v2078
    %v2080 = vadd.f32 %v1942, %v2079
    %v2081 = vsub.f32 %v2071, %v2059
    %2083 = vrot.lane.b32.xlu0 %v2081, 64
    %v2084 = vpop.permute.xlu0 %2083
    %v2086 = vmul.f32 %v879, %v2084
    %v2087 = vadd.f32 %v1952, %v2086
    %2088 = vst.msk [vmem:[#allocation3 + $0x8] sm:$0x3] %vm292, %v2080
    %2089 = vst.msk [vmem:[#allocation3 + $0x6] sm:$0x3] %vm294, %v2080
    %v2090 = vrot.slane %v1392, 6
    %v2091 = vrot.slane %v1415, 6
    %v2094 = vsub.f32 %v1389, %v2090
    %v2095 = vsub.f32 %v1412, %v2091
    %v2096 = vmul.f32 %v57, %v2094
    %v2097 = vmul.f32 %v58, %v2095
    %v2100 = vrot.slane %v2096, 2
    %v2101 = vrot.slane %v2097, 2
    %v2104 = vadd.f32 %v1392, %v2100
    %v2105 = vadd.f32 %v1415, %v2101
    %v2107 = vsel %vm164, %v2080, 0
    %2109 = vmatpush.msra.mxu0 0.0
    %2110 = vmatpush.msra.mxu0 0.0
    %2111 = vmatpush.msra.mxu0 0.0
    %2112 = vmatpush.msra.mxu0 0.0
    %2113 = vmatpush.msra.mxu0 0.0
    %2114 = vmatpush.msra.mxu0 0.0
    %2115 = vmatpush.msra.mxu0 0.0
    %2116 = vmatpush.msra.mxu0 0.0
    %2117 = vmatpush.msra.mxu0 %v1358
    %2118 = vmatpush.msra.mxu0 %v1356
    %2119 = vmatpush.msra.mxu0 %v1354
    %2120 = vmatpush.msra.mxu0 %v1352
    %2121 = vmatpush.msra.mxu0 %v1350
    %2122 = vmatpush.msra.mxu0 %v1348
    %2123 = vmatpush.msra.mxu0 %v1346
    %2124 = vmatpush.msra.mxu0 %v1344
    %2125 = vmatmul.f32.gmra.mxu0 %v2107
    %v2126 = vpop.f32.mrf.mxu0
    %v2127 = vadd.f32 0.0, %v2126
    %2128 = vdwg.mxu0
    %2129 = vmatpush.msra.mxu0 0.0
    %2130 = vmatpush.msra.mxu0 0.0
    %2131 = vmatpush.msra.mxu0 0.0
    %2132 = vmatpush.msra.mxu0 0.0
    %2133 = vmatpush.msra.mxu0 0.0
    %2134 = vmatpush.msra.mxu0 0.0
    %2135 = vmatpush.msra.mxu0 0.0
    %2136 = vmatpush.msra.mxu0 0.0
    %2137 = vmatpush.msra.mxu0 %v1359
    %2138 = vmatpush.msra.mxu0 %v1357
    %2139 = vmatpush.msra.mxu0 %v1355
    %2140 = vmatpush.msra.mxu0 %v1353
    %2141 = vmatpush.msra.mxu0 %v1351
    %2142 = vmatpush.msra.mxu0 %v1349
    %2143 = vmatpush.msra.mxu0 %v1347
    %2144 = vmatpush.msra.mxu0 %v1345
    %2145 = vmatmul.f32.gmra.mxu0 %v2107
    %v2146 = vpop.f32.mrf.mxu0
    %v2147 = vadd.f32 0.0, %v2146
    %2148 = vdwg.mxu0
    %v2151 = vrot.slane %v2127, 6
    %v2152 = vrot.slane %v2147, 6
    %v2155 = vadd.f32 %v2104, %v2151
    %v2156 = vadd.f32 %v2105, %v2152
    %v2157 = vxor.u32 %v2155, 2147483648
    %v2158 = vxor.u32 %v2156, 2147483648
    %v2159 = vmul.f32 %v2157, 1.442695
    %v2160 = vpow.pop %v2159
    %v2161 = vmul.f32 %v2158, 1.442695
    %v2162 = vpow.pop %v2161
    %v2163 = vadd.f32 %v2160, 1.0
    %v2164 = vadd.f32 %v2162, 1.0
    %v2165 = vrcp.pop %v2163
    %v2166 = vmul.f32 %v2163, %v2165
    %v2167 = vsub.f32 1.0, %v2166
    %v2168 = vmul.f32 %v2165, %v2167
    %v2169 = vadd.f32 %v2165, %v2168
    %vm2170 = vweird.f32 %v2163
    %vm2171 = vweird.f32 %v2165
    %vm2172 = vmor %vm2170, %vm2171
    %v2173 = vsel %vm2172, %v2165, %v2169
    %v2174 = vand.u32 2147483647, %v2163
    %vm2175 = vcmp.eq.f32.partialorder %v2174, 8.507059e+37
    %v2176 = vand.u32 %v2163, 2147483648
    %v2177 = vor.u32 1.1754944e-38, %v2176
    %v2178 = vsel %vm2175, %v2177, %v2173
    %v2179 = vmul.f32 1.0, %v2178
    %v2180 = vrcp.pop %v2164
    %v2181 = vmul.f32 %v2164, %v2180
    %v2182 = vsub.f32 1.0, %v2181
    %v2183 = vmul.f32 %v2180, %v2182
    %v2184 = vadd.f32 %v2180, %v2183
    %vm2185 = vweird.f32 %v2164
    %vm2186 = vweird.f32 %v2180
    %vm2187 = vmor %vm2185, %vm2186
    %v2188 = vsel %vm2187, %v2180, %v2184
    %v2189 = vand.u32 2147483647, %v2164
    %vm2190 = vcmp.eq.f32.partialorder %v2189, 8.507059e+37
    %v2191 = vand.u32 %v2164, 2147483648
    %v2192 = vor.u32 1.1754944e-38, %v2191
    %v2193 = vsel %vm2190, %v2192, %v2188
    %v2194 = vmul.f32 1.0, %v2193
    %v2195 = vtanh.pop %v2156
    %v2197 = vrot.slane %v2087, 6
    %2198 = vrot.lane.b32.xlu0 %v2197, 64
    %v2199 = vpop.permute.xlu0 %2198
    %v2201 = vmul.f32 %v2179, %v2199
    %2203 = vrot.lane.b32.xlu0 %v2195, 64
    %v2204 = vpop.permute.xlu0 %2203
    %v2206 = vmul.f32 %v2179, %v2204
    %2208 = vrot.lane.b32.xlu0 %v2206, 64
    %v2209 = vpop.permute.xlu0 %2208
    %v2211 = vadd.f32 %v2201, %v2209
    %v2212 = vtanh.pop %v2211
    %2214 = vrot.lane.b32.xlu0 %v2212, 64
    %v2215 = vpop.permute.xlu0 %2214
    %v2217 = vmul.f32 %v2194, %v2215
    %v2218 = vrot.slane %v2080, 6
    %v2220 = vsub.f32 %v2217, %v2218
    %v2221 = vmul.f32 %v1032, %v2220
    %v2223 = vrot.slane %v2221, 2
    %v2225 = vadd.f32 %v2080, %v2223
    %v2226 = vsub.f32 %v2211, %v2199
    %2228 = vrot.lane.b32.xlu0 %v2226, 64
    %v2229 = vpop.permute.xlu0 %2228
    %v2231 = vmul.f32 %v1032, %v2229
    %v2233 = vrot.slane %v2231, 2
    %v2235 = vadd.f32 %v2087, %v2233
    %2236 = vst.msk [vmem:[#allocation3 + $0xa] sm:$0x3] %vm292, %v2225
    %2237 = vst.msk [vmem:[#allocation3 + $0x4] sm:$0x3] %vm294, %v2225
    %v2239 = vsel %vm164, %v2225, 0
    %2241 = vmatpush.msra.mxu0 0.0
    %2242 = vmatpush.msra.mxu0 0.0
    %2243 = vmatpush.msra.mxu0 0.0
    %2244 = vmatpush.msra.mxu0 0.0
    %2245 = vmatpush.msra.mxu0 0.0
    %2246 = vmatpush.msra.mxu0 0.0
    %2247 = vmatpush.msra.mxu0 0.0
    %2248 = vmatpush.msra.mxu0 0.0
    %2249 = vmatpush.msra.mxu0 %v1358
    %2250 = vmatpush.msra.mxu0 %v1356
    %2251 = vmatpush.msra.mxu0 %v1354
    %2252 = vmatpush.msra.mxu0 %v1352
    %2253 = vmatpush.msra.mxu0 %v1350
    %2254 = vmatpush.msra.mxu0 %v1348
    %2255 = vmatpush.msra.mxu0 %v1346
    %2256 = vmatpush.msra.mxu0 %v1344
    %2257 = vmatmul.f32.gmra.mxu0 %v2239
    %v2258 = vpop.f32.mrf.mxu0
    %v2259 = vadd.f32 0.0, %v2258
    %2260 = vdwg.mxu0
    %2261 = vmatpush.msra.mxu0 0.0
    %2262 = vmatpush.msra.mxu0 0.0
    %2263 = vmatpush.msra.mxu0 0.0
    %2264 = vmatpush.msra.mxu0 0.0
    %2265 = vmatpush.msra.mxu0 0.0
    %2266 = vmatpush.msra.mxu0 0.0
    %2267 = vmatpush.msra.mxu0 0.0
    %2268 = vmatpush.msra.mxu0 0.0
    %2269 = vmatpush.msra.mxu0 %v1359
    %2270 = vmatpush.msra.mxu0 %v1357
    %2271 = vmatpush.msra.mxu0 %v1355
    %2272 = vmatpush.msra.mxu0 %v1353
    %2273 = vmatpush.msra.mxu0 %v1351
    %2274 = vmatpush.msra.mxu0 %v1349
    %2275 = vmatpush.msra.mxu0 %v1347
    %2276 = vmatpush.msra.mxu0 %v1345
    %2277 = vmatmul.f32.gmra.mxu0 %v2239
    %v2278 = vpop.f32.mrf.mxu0
    %v2279 = vadd.f32 0.0, %v2278
    %2280 = vdwg.mxu0
    %v2283 = vrot.slane %v2259, 4
    %v2284 = vrot.slane %v2279, 4
    %v2287 = vadd.f32 %v1971, %v2283
    %v2288 = vadd.f32 %v1972, %v2284
    %v2289 = vxor.u32 %v2287, 2147483648
    %v2290 = vxor.u32 %v2288, 2147483648
    %v2291 = vmul.f32 %v2289, 1.442695
    %v2292 = vpow.pop %v2291
    %v2293 = vmul.f32 %v2290, 1.442695
    %v2294 = vpow.pop %v2293
    %v2295 = vadd.f32 %v2292, 1.0
    %v2296 = vadd.f32 %v2294, 1.0
    %v2297 = vrcp.pop %v2295
    %v2298 = vmul.f32 %v2295, %v2297
    %v2299 = vsub.f32 1.0, %v2298
    %v2300 = vmul.f32 %v2297, %v2299
    %v2301 = vadd.f32 %v2297, %v2300
    %vm2302 = vweird.f32 %v2295
    %vm2303 = vweird.f32 %v2297
    %vm2304 = vmor %vm2302, %vm2303
    %v2305 = vsel %vm2304, %v2297, %v2301
    %v2306 = vand.u32 2147483647, %v2295
    %vm2307 = vcmp.eq.f32.partialorder %v2306, 8.507059e+37
    %v2308 = vand.u32 %v2295, 2147483648
    %v2309 = vor.u32 1.1754944e-38, %v2308
    %v2310 = vsel %vm2307, %v2309, %v2305
    %v2311 = vmul.f32 1.0, %v2310
    %v2312 = vrcp.pop %v2296
    %v2313 = vmul.f32 %v2296, %v2312
    %v2314 = vsub.f32 1.0, %v2313
    %v2315 = vmul.f32 %v2312, %v2314
    %v2316 = vadd.f32 %v2312, %v2315
    %vm2317 = vweird.f32 %v2296
    %vm2318 = vweird.f32 %v2312
    %vm2319 = vmor %vm2317, %vm2318
    %v2320 = vsel %vm2319, %v2312, %v2316
    %v2321 = vand.u32 2147483647, %v2296
    %vm2322 = vcmp.eq.f32.partialorder %v2321, 8.507059e+37
    %v2323 = vand.u32 %v2296, 2147483648
    %v2324 = vor.u32 1.1754944e-38, %v2323
    %v2325 = vsel %vm2322, %v2324, %v2320
    %v2326 = vmul.f32 1.0, %v2325
    %v2327 = vtanh.pop %v2288
    %v2329 = vrot.slane %v2235, 4
    %2330 = vrot.lane.b32.xlu0 %v2329, 64
    %v2331 = vpop.permute.xlu0 %2330
    %v2333 = vmul.f32 %v2311, %v2331
    %2335 = vrot.lane.b32.xlu0 %v2327, 64
    %v2336 = vpop.permute.xlu0 %2335
    %v2338 = vmul.f32 %v2311, %v2336
    %2340 = vrot.lane.b32.xlu0 %v2338, 64
    %v2341 = vpop.permute.xlu0 %2340
    %v2343 = vadd.f32 %v2333, %v2341
    %v2344 = vtanh.pop %v2343
    %2346 = vrot.lane.b32.xlu0 %v2344, 64
    %v2347 = vpop.permute.xlu0 %2346
    %v2349 = vmul.f32 %v2326, %v2347
    %v2350 = vrot.slane %v2225, 4
    %v2352 = vsub.f32 %v2349, %v2350
    %v2353 = vmul.f32 %v1173, %v2352
    %v2355 = vrot.slane %v2353, 4
    %v2357 = vadd.f32 %v2225, %v2355
    %v2358 = vsub.f32 %v2343, %v2331
    %2360 = vrot.lane.b32.xlu0 %v2358, 64
    %v2361 = vpop.permute.xlu0 %2360
    %v2363 = vmul.f32 %v1173, %v2361
    %v2365 = vrot.slane %v2363, 4
    %v2367 = vadd.f32 %v2235, %v2365
    %2368 = vst.msk [vmem:[#allocation3 + $0xc] sm:$0x3] %vm292, %v2357
    %2369 = vst.msk [vmem:[#allocation3 + $0x2] sm:$0x3] %vm294, %v2357
    %v2371 = vsel %vm164, %v2357, 0
    %2373 = vmatpush.msra.mxu0 0.0
    %2374 = vmatpush.msra.mxu0 0.0
    %2375 = vmatpush.msra.mxu0 0.0
    %2376 = vmatpush.msra.mxu0 0.0
    %2377 = vmatpush.msra.mxu0 0.0
    %2378 = vmatpush.msra.mxu0 0.0
    %2379 = vmatpush.msra.mxu0 0.0
    %2380 = vmatpush.msra.mxu0 0.0
    %2381 = vmatpush.msra.mxu0 %v1358
    %2382 = vmatpush.msra.mxu0 %v1356
    %2383 = vmatpush.msra.mxu0 %v1354
    %2384 = vmatpush.msra.mxu0 %v1352
    %2385 = vmatpush.msra.mxu0 %v1350
    %2386 = vmatpush.msra.mxu0 %v1348
    %2387 = vmatpush.msra.mxu0 %v1346
    %2388 = vmatpush.msra.mxu0 %v1344
    %2389 = vmatmul.f32.gmra.mxu0 %v2371
    %v2390 = vpop.f32.mrf.mxu0
    %v2391 = vadd.f32 0.0, %v2390
    %2392 = vdwg.mxu0
    %2393 = vmatpush.msra.mxu0 0.0
    %2394 = vmatpush.msra.mxu0 0.0
    %2395 = vmatpush.msra.mxu0 0.0
    %2396 = vmatpush.msra.mxu0 0.0
    %2397 = vmatpush.msra.mxu0 0.0
    %2398 = vmatpush.msra.mxu0 0.0
    %2399 = vmatpush.msra.mxu0 0.0
    %2400 = vmatpush.msra.mxu0 0.0
    %2401 = vmatpush.msra.mxu0 %v1359
    %2402 = vmatpush.msra.mxu0 %v1357
    %2403 = vmatpush.msra.mxu0 %v1355
    %2404 = vmatpush.msra.mxu0 %v1353
    %2405 = vmatpush.msra.mxu0 %v1351
    %2406 = vmatpush.msra.mxu0 %v1349
    %2407 = vmatpush.msra.mxu0 %v1347
    %2408 = vmatpush.msra.mxu0 %v1345
    %2409 = vmatmul.f32.gmra.mxu0 %v2371
    %v2410 = vpop.f32.mrf.mxu0
    %v2411 = vadd.f32 0.0, %v2410
    %2412 = vdwg.mxu0
    %v2415 = vrot.slane %v2391, 2
    %v2416 = vrot.slane %v2411, 2
    %v2419 = vadd.f32 %v2104, %v2415
    %v2420 = vadd.f32 %v2105, %v2416
    %v2421 = vxor.u32 %v2419, 2147483648
    %v2422 = vxor.u32 %v2420, 2147483648
    %v2423 = vmul.f32 %v2421, 1.442695
    %v2424 = vpow.pop %v2423
    %v2425 = vmul.f32 %v2422, 1.442695
    %v2426 = vpow.pop %v2425
    %v2427 = vadd.f32 %v2424, 1.0
    %v2428 = vadd.f32 %v2426, 1.0
    %v2429 = vrcp.pop %v2427
    %v2430 = vmul.f32 %v2427, %v2429
    %v2431 = vsub.f32 1.0, %v2430
    %v2432 = vmul.f32 %v2429, %v2431
    %v2433 = vadd.f32 %v2429, %v2432
    %vm2434 = vweird.f32 %v2427
    %vm2435 = vweird.f32 %v2429
    %vm2436 = vmor %vm2434, %vm2435
    %v2437 = vsel %vm2436, %v2429, %v2433
    %v2438 = vand.u32 2147483647, %v2427
    %vm2439 = vcmp.eq.f32.partialorder %v2438, 8.507059e+37
    %v2440 = vand.u32 %v2427, 2147483648
    %v2441 = vor.u32 1.1754944e-38, %v2440
    %v2442 = vsel %vm2439, %v2441, %v2437
    %v2443 = vmul.f32 1.0, %v2442
    %v2444 = vrcp.pop %v2428
    %v2445 = vmul.f32 %v2428, %v2444
    %v2446 = vsub.f32 1.0, %v2445
    %v2447 = vmul.f32 %v2444, %v2446
    %v2448 = vadd.f32 %v2444, %v2447
    %vm2449 = vweird.f32 %v2428
    %vm2450 = vweird.f32 %v2444
    %vm2451 = vmor %vm2449, %vm2450
    %v2452 = vsel %vm2451, %v2444, %v2448
    %v2453 = vand.u32 2147483647, %v2428
    %vm2454 = vcmp.eq.f32.partialorder %v2453, 8.507059e+37
    %v2455 = vand.u32 %v2428, 2147483648
    %v2456 = vor.u32 1.1754944e-38, %v2455
    %v2457 = vsel %vm2454, %v2456, %v2452
    %v2458 = vmul.f32 1.0, %v2457
    %v2459 = vtanh.pop %v2420
    %v2461 = vrot.slane %v2367, 2
    %2462 = vrot.lane.b32.xlu0 %v2461, 64
    %v2463 = vpop.permute.xlu0 %2462
    %v2465 = vmul.f32 %v2443, %v2463
    %2467 = vrot.lane.b32.xlu0 %v2459, 64
    %v2468 = vpop.permute.xlu0 %2467
    %v2470 = vmul.f32 %v2443, %v2468
    %2472 = vrot.lane.b32.xlu0 %v2470, 64
    %v2473 = vpop.permute.xlu0 %2472
    %v2475 = vadd.f32 %v2465, %v2473
    %v2476 = vtanh.pop %v2475
    %2478 = vrot.lane.b32.xlu0 %v2476, 64
    %v2479 = vpop.permute.xlu0 %2478
    %v2481 = vmul.f32 %v2458, %v2479
    %v2482 = vrot.slane %v2357, 2
    %v2484 = vsub.f32 %v2481, %v2482
    %v2485 = vmul.f32 %v1314, %v2484
    %v2487 = vrot.slane %v2485, 6
    %v2489 = vadd.f32 %v2357, %v2487
    %2490 = vst.msk [vmem:[#allocation3 + $0xe] sm:$0x3] %vm292, %v2489
    %2491 = vst.msk [vmem:[#allocation3] sm:$0x3] %vm294, %v2489
    %v2492 = vld [vmem:[#allocation3] sm:$0xff]
    %v2493 = vld [vmem:[#allocation3 + $0x8] sm:$0xff]
    %v2494 = vld [vmem:[%s8] sm:$0xff]
    %v2495 = vld [vmem:[%s8 + $0x8] sm:$0xff]
    %v2496 = vld [vmem:[%s8 + $0x10] sm:$0xff]
    %v2497 = vld [vmem:[%s8 + $0x18] sm:$0xff]
    %v2498 = vld [vmem:[%s8 + $0x20] sm:$0xff]
    %v2499 = vld [vmem:[%s8 + $0x28] sm:$0xff]
    %v2500 = vld [vmem:[%s8 + $0x30] sm:$0xff]
    %v2501 = vld [vmem:[%s8 + $0x38] sm:$0xff]
    %v2502 = vld [vmem:[%s9] sm:$0x1]
    %v2504 = vperm.slane %v2502, 0
    %v2507 = vsel %vm164, %v2492, 0
    %v2510 = vsel %vm164, %v2493, 0
    %2512 = vmatpush.msra.mxu0 0.0
    %2513 = vmatpush.msra.mxu0 0.0
    %2514 = vmatpush.msra.mxu0 0.0
    %2515 = vmatpush.msra.mxu0 0.0
    %2516 = vmatpush.msra.mxu0 0.0
    %2517 = vmatpush.msra.mxu0 0.0
    %2518 = vmatpush.msra.mxu0 0.0
    %2519 = vmatpush.msra.mxu0 0.0
    %2520 = vmatpush.msra.mxu0 %v2501
    %2521 = vmatpush.msra.mxu0 %v2500
    %2522 = vmatpush.msra.mxu0 %v2499
    %2523 = vmatpush.msra.mxu0 %v2498
    %2524 = vmatpush.msra.mxu0 %v2497
    %2525 = vmatpush.msra.mxu0 %v2496
    %2526 = vmatpush.msra.mxu0 %v2495
    %2527 = vmatpush.msra.mxu0 %v2494
    %2528 = vmatmul.f32.gmra.mxu0 %v2507
    %v2529 = vpop.f32.mrf.mxu0
    %v2530 = vadd.f32 %v2504, %v2529
    %2531 = vmatmul.f32.gmra.mxu0 %v2510
    %v2532 = vpop.f32.mrf.mxu0
    %v2533 = vadd.f32 %v2504, %v2532
    %2534 = vdwg.mxu0
    %v2535 = vmul.f32 %v2530, %v278
    %v2536 = vmul.f32 %v2533, %v874
    %v2537 = vld [vmem:[%s10] sm:$0xff]
    %vm2538 = vcmp.eq.s32.totalorder %v51, 1
    %v2539 = vsel %vm2538, 0.0, -10000.0
    %v2541 = vrot.slane %v2539, 1
    %v2542 = vperm.slane %v2539, 0
    %v2543 = vperm.slane %v2541, 0
    %v2546 = vadd.f32 %v2542, %v2537
    %v2547 = vadd.f32 %v2543, %v2537
    %vm2548 = vcmask 64512
    %v2549 = vsel %vm2548, %v2546, -inf
    %2550 = vmax.xlane.f32.xlu0 %v2549
    %v2551 = vpop.xlane.xlu0 %2550
    %v2552 = vsel %vm2548, %v2547, -inf
    %2553 = vmax.xlane.f32.xlu0 %v2552
    %v2554 = vpop.xlane.xlu0 %2553
    %v2557 = vperm.slane %v2551, %v51
    %v2558 = vperm.slane %v2554, %v51
    %vm2559 = vcmask 1041409
    %v2560 = vsel %vm2559, %v2558, %v2557
    %v2562 = vadd.f32 %v2535, %v2560
    %v2563 = vsub.f32 %v2546, %v2551
    %v2564 = vsub.f32 %v2547, %v2554
    %v2565 = vmul.f32 %v2563, 1.442695
    %v2566 = vpow.pop %v2565
    %v2567 = vmul.f32 %v2564, 1.442695
    %v2568 = vpow.pop %v2567
    %v2569 = vsel %vm2548, %v2566, 0.0
    %2570 = vadd.xlane.f32.xlu0 %v2569
    %v2571 = vpop.xlane.xlu0 %2570
    %v2572 = vsel %vm2548, %v2568, 0.0
    %2573 = vadd.xlane.f32.xlu0 %v2572
    %v2574 = vpop.xlane.xlu0 %2573
    %v2575 = vlog2.pop %v2571
    %v2576 = vmul.f32 %v2575, 0.6931472
    %v2577 = vlog2.pop %v2574
    %v2578 = vmul.f32 %v2577, 0.6931472
    %v2581 = vperm.slane %v2576, %v51
    %v2582 = vperm.slane %v2578, %v51
    %v2583 = vsel %vm2559, %v2582, %v2581
    %v2585 = vadd.f32 %v2562, %v2583
    %v2586 = vsub.f32 %v2585, %v2539
    %v2587 = vmul.f32 %v278, %v2586
    %v2588 = vadd.f32 %v2539, %v2587
    %v2590 = vrot.slane %v2588, 1
    %v2591 = vperm.slane %v2588, 0
    %v2592 = vperm.slane %v2590, 0
    %v2595 = vadd.f32 %v2591, %v2537
    %v2596 = vadd.f32 %v2592, %v2537
    %v2597 = vsel %vm2548, %v2595, -inf
    %2598 = vmax.xlane.f32.xlu0 %v2597
    %v2599 = vpop.xlane.xlu0 %2598
    %v2600 = vsel %vm2548, %v2596, -inf
    %2601 = vmax.xlane.f32.xlu0 %v2600
    %v2602 = vpop.xlane.xlu0 %2601
    %v2605 = vperm.slane %v2599, %v51
    %v2606 = vperm.slane %v2602, %v51
    %vm2607 = vcmask 1043459
    %v2608 = vsel %vm2607, %v2606, %v2605
    %v2610 = vadd.f32 %v2535, %v2608
    %v2611 = vsub.f32 %v2595, %v2599
    %v2612 = vsub.f32 %v2596, %v2602
    %v2613 = vmul.f32 %v2611, 1.442695
    %v2614 = vpow.pop %v2613
    %v2615 = vmul.f32 %v2612, 1.442695
    %v2616 = vpow.pop %v2615
    %v2617 = vsel %vm2548, %v2614, 0.0
    %2618 = vadd.xlane.f32.xlu0 %v2617
    %v2619 = vpop.xlane.xlu0 %2618
    %v2620 = vsel %vm2548, %v2616, 0.0
    %2621 = vadd.xlane.f32.xlu0 %v2620
    %v2622 = vpop.xlane.xlu0 %2621
    %v2623 = vlog2.pop %v2619
    %v2624 = vmul.f32 %v2623, 0.6931472
    %v2625 = vlog2.pop %v2622
    %v2626 = vmul.f32 %v2625, 0.6931472
    %v2629 = vperm.slane %v2624, %v51
    %v2630 = vperm.slane %v2626, %v51
    %v2631 = vsel %vm2607, %v2630, %v2629
    %v2633 = vadd.f32 %v2610, %v2631
    %v2634 = vrot.slane %v2588, 6
    %v2636 = vsub.f32 %v2633, %v2634
    %v2637 = vmul.f32 %v278, %v2636
    %v2639 = vrot.slane %v2637, 2
    %v2641 = vadd.f32 %v2588, %v2639
    %v2643 = vrot.slane %v2641, 1
    %v2644 = vperm.slane %v2641, 0
    %v2645 = vperm.slane %v2643, 0
    %v2648 = vadd.f32 %v2644, %v2537
    %v2649 = vadd.f32 %v2645, %v2537
    %v2650 = vsel %vm2548, %v2648, -inf
    %2651 = vmax.xlane.f32.xlu0 %v2650
    %v2652 = vpop.xlane.xlu0 %2651
    %v2653 = vsel %vm2548, %v2649, -inf
    %2654 = vmax.xlane.f32.xlu0 %v2653
    %v2655 = vpop.xlane.xlu0 %2654
    %v2658 = vperm.slane %v2652, %v51
    %v2659 = vperm.slane %v2655, %v51
    %vm2660 = vcmask 1045509
    %v2661 = vsel %vm2660, %v2659, %v2658
    %v2663 = vadd.f32 %v2535, %v2661
    %v2664 = vsub.f32 %v2648, %v2652
    %v2665 = vsub.f32 %v2649, %v2655
    %v2666 = vmul.f32 %v2664, 1.442695
    %v2667 = vpow.pop %v2666
    %v2668 = vmul.f32 %v2665, 1.442695
    %v2669 = vpow.pop %v2668
    %v2670 = vsel %vm2548, %v2667, 0.0
    %2671 = vadd.xlane.f32.xlu0 %v2670
    %v2672 = vpop.xlane.xlu0 %2671
    %v2673 = vsel %vm2548, %v2669, 0.0
    %2674 = vadd.xlane.f32.xlu0 %v2673
    %v2675 = vpop.xlane.xlu0 %2674
    %v2676 = vlog2.pop %v2672
    %v2677 = vmul.f32 %v2676, 0.6931472
    %v2678 = vlog2.pop %v2675
    %v2679 = vmul.f32 %v2678, 0.6931472
    %v2682 = vperm.slane %v2677, %v51
    %v2683 = vperm.slane %v2679, %v51
    %v2684 = vsel %vm2660, %v2683, %v2682
    %v2686 = vadd.f32 %v2663, %v2684
    %v2687 = vrot.slane %v2641, 4
    %v2689 = vsub.f32 %v2686, %v2687
    %v2690 = vmul.f32 %v278, %v2689
    %v2692 = vrot.slane %v2690, 4
    %v2694 = vadd.f32 %v2641, %v2692
    %v2696 = vrot.slane %v2694, 1
    %v2697 = vperm.slane %v2694, 0
    %v2698 = vperm.slane %v2696, 0
    %v2701 = vadd.f32 %v2697, %v2537
    %v2702 = vadd.f32 %v2698, %v2537
    %v2703 = vsel %vm2548, %v2701, -inf
    %2704 = vmax.xlane.f32.xlu0 %v2703
    %v2705 = vpop.xlane.xlu0 %2704
    %v2706 = vsel %vm2548, %v2702, -inf
    %2707 = vmax.xlane.f32.xlu0 %v2706
    %v2708 = vpop.xlane.xlu0 %2707
    %v2711 = vperm.slane %v2705, %v51
    %v2712 = vperm.slane %v2708, %v51
    %vm2713 = vcmask 1047559
    %v2714 = vsel %vm2713, %v2712, %v2711
    %v2716 = vadd.f32 %v2535, %v2714
    %v2717 = vsub.f32 %v2701, %v2705
    %v2718 = vsub.f32 %v2702, %v2708
    %v2719 = vmul.f32 %v2717, 1.442695
    %v2720 = vpow.pop %v2719
    %v2721 = vmul.f32 %v2718, 1.442695
    %v2722 = vpow.pop %v2721
    %v2723 = vsel %vm2548, %v2720, 0.0
    %2724 = vadd.xlane.f32.xlu0 %v2723
    %v2725 = vpop.xlane.xlu0 %2724
    %v2726 = vsel %vm2548, %v2722, 0.0
    %2727 = vadd.xlane.f32.xlu0 %v2726
    %v2728 = vpop.xlane.xlu0 %2727
    %v2729 = vlog2.pop %v2725
    %v2730 = vmul.f32 %v2729, 0.6931472
    %v2731 = vlog2.pop %v2728
    %v2732 = vmul.f32 %v2731, 0.6931472
    %v2735 = vperm.slane %v2730, %v51
    %v2736 = vperm.slane %v2732, %v51
    %v2737 = vsel %vm2713, %v2736, %v2735
    %v2739 = vadd.f32 %v2716, %v2737
    %v2740 = vrot.slane %v2694, 2
    %v2742 = vsub.f32 %v2739, %v2740
    %v2743 = vmul.f32 %v278, %v2742
    %v2745 = vrot.slane %v2743, 6
    %v2747 = vadd.f32 %v2694, %v2745
    %v2749 = vrot.slane %v2747, 1
    %v2750 = vperm.slane %v2747, 0
    %v2751 = vperm.slane %v2749, 0
    %v2754 = vadd.f32 %v2750, %v2537
    %v2755 = vadd.f32 %v2751, %v2537
    %v2756 = vsel %vm2548, %v2754, -inf
    %2757 = vmax.xlane.f32.xlu0 %v2756
    %v2758 = vpop.xlane.xlu0 %2757
    %v2759 = vsel %vm2548, %v2755, -inf
    %2760 = vmax.xlane.f32.xlu0 %v2759
    %v2761 = vpop.xlane.xlu0 %2760
    %v2764 = vperm.slane %v2758, %v51
    %v2765 = vperm.slane %v2761, %v51
    %v2766 = vsel %vm2559, %v2765, %v2764
    %v2768 = vadd.f32 %v2536, %v2766
    %v2769 = vsub.f32 %v2754, %v2758
    %v2770 = vsub.f32 %v2755, %v2761
    %v2771 = vmul.f32 %v2769, 1.442695
    %v2772 = vpow.pop %v2771
    %v2773 = vmul.f32 %v2770, 1.442695
    %v2774 = vpow.pop %v2773
    %v2775 = vsel %vm2548, %v2772, 0.0
    %2776 = vadd.xlane.f32.xlu0 %v2775
    %v2777 = vpop.xlane.xlu0 %2776
    %v2778 = vsel %vm2548, %v2774, 0.0
    %2779 = vadd.xlane.f32.xlu0 %v2778
    %v2780 = vpop.xlane.xlu0 %2779
    %v2781 = vlog2.pop %v2777
    %v2782 = vmul.f32 %v2781, 0.6931472
    %v2783 = vlog2.pop %v2780
    %v2784 = vmul.f32 %v2783, 0.6931472
    %v2787 = vperm.slane %v2782, %v51
    %v2788 = vperm.slane %v2784, %v51
    %v2789 = vsel %vm2559, %v2788, %v2787
    %v2791 = vadd.f32 %v2768, %v2789
    %v2792 = vsub.f32 %v2791, %v2747
    %v2793 = vmul.f32 %v874, %v2792
    %v2794 = vadd.f32 %v2747, %v2793
    %v2796 = vrot.slane %v2794, 1
    %v2797 = vperm.slane %v2794, 0
    %v2798 = vperm.slane %v2796, 0
    %v2801 = vadd.f32 %v2797, %v2537
    %v2802 = vadd.f32 %v2798, %v2537
    %v2803 = vsel %vm2548, %v2801, -inf
    %2804 = vmax.xlane.f32.xlu0 %v2803
    %v2805 = vpop.xlane.xlu0 %2804
    %v2806 = vsel %vm2548, %v2802, -inf
    %2807 = vmax.xlane.f32.xlu0 %v2806
    %v2808 = vpop.xlane.xlu0 %2807
    %v2811 = vperm.slane %v2805, %v51
    %v2812 = vperm.slane %v2808, %v51
    %v2813 = vsel %vm2607, %v2812, %v2811
    %v2815 = vadd.f32 %v2536, %v2813
    %v2816 = vsub.f32 %v2801, %v2805
    %v2817 = vsub.f32 %v2802, %v2808
    %v2818 = vmul.f32 %v2816, 1.442695
    %v2819 = vpow.pop %v2818
    %v2820 = vmul.f32 %v2817, 1.442695
    %v2821 = vpow.pop %v2820
    %v2822 = vsel %vm2548, %v2819, 0.0
    %2823 = vadd.xlane.f32.xlu0 %v2822
    %v2824 = vpop.xlane.xlu0 %2823
    %v2825 = vsel %vm2548, %v2821, 0.0
    %2826 = vadd.xlane.f32.xlu0 %v2825
    %v2827 = vpop.xlane.xlu0 %2826
    %v2828 = vlog2.pop %v2824
    %v2829 = vmul.f32 %v2828, 0.6931472
    %v2830 = vlog2.pop %v2827
    %v2831 = vmul.f32 %v2830, 0.6931472
    %v2834 = vperm.slane %v2829, %v51
    %v2835 = vperm.slane %v2831, %v51
    %v2836 = vsel %vm2607, %v2835, %v2834
    %v2838 = vadd.f32 %v2815, %v2836
    %v2839 = vrot.slane %v2794, 6
    %v2841 = vsub.f32 %v2838, %v2839
    %v2842 = vmul.f32 %v874, %v2841
    %v2844 = vrot.slane %v2842, 2
    %v2846 = vadd.f32 %v2794, %v2844
    %v2848 = vrot.slane %v2846, 1
    %v2849 = vperm.slane %v2846, 0
    %v2850 = vperm.slane %v2848, 0
    %v2853 = vadd.f32 %v2849, %v2537
    %v2854 = vadd.f32 %v2850, %v2537
    %v2855 = vsel %vm2548, %v2853, -inf
    %2856 = vmax.xlane.f32.xlu0 %v2855
    %v2857 = vpop.xlane.xlu0 %2856
    %v2858 = vsel %vm2548, %v2854, -inf
    %2859 = vmax.xlane.f32.xlu0 %v2858
    %v2860 = vpop.xlane.xlu0 %2859
    %v2863 = vperm.slane %v2857, %v51
    %v2864 = vperm.slane %v2860, %v51
    %v2865 = vsel %vm2660, %v2864, %v2863
    %v2867 = vadd.f32 %v2536, %v2865
    %v2868 = vsub.f32 %v2853, %v2857
    %v2869 = vsub.f32 %v2854, %v2860
    %v2870 = vmul.f32 %v2868, 1.442695
    %v2871 = vpow.pop %v2870
    %v2872 = vmul.f32 %v2869, 1.442695
    %v2873 = vpow.pop %v2872
    %v2874 = vsel %vm2548, %v2871, 0.0
    %2875 = vadd.xlane.f32.xlu0 %v2874
    %v2876 = vpop.xlane.xlu0 %2875
    %v2877 = vsel %vm2548, %v2873, 0.0
    %2878 = vadd.xlane.f32.xlu0 %v2877
    %v2879 = vpop.xlane.xlu0 %2878
    %v2880 = vlog2.pop %v2876
    %v2881 = vmul.f32 %v2880, 0.6931472
    %v2882 = vlog2.pop %v2879
    %v2883 = vmul.f32 %v2882, 0.6931472
    %v2886 = vperm.slane %v2881, %v51
    %v2887 = vperm.slane %v2883, %v51
    %v2888 = vsel %vm2660, %v2887, %v2886
    %v2890 = vadd.f32 %v2867, %v2888
    %v2891 = vrot.slane %v2846, 4
    %v2893 = vsub.f32 %v2890, %v2891
    %v2894 = vmul.f32 %v874, %v2893
    %v2896 = vrot.slane %v2894, 4
    %v2898 = vadd.f32 %v2846, %v2896
    %v2900 = vrot.slane %v2898, 1
    %v2901 = vperm.slane %v2898, 0
    %v2902 = vperm.slane %v2900, 0
    %v2905 = vadd.f32 %v2901, %v2537
    %v2906 = vadd.f32 %v2902, %v2537
    %v2907 = vsel %vm2548, %v2905, -inf
    %2908 = vmax.xlane.f32.xlu0 %v2907
    %v2909 = vpop.xlane.xlu0 %2908
    %v2910 = vsel %vm2548, %v2906, -inf
    %2911 = vmax.xlane.f32.xlu0 %v2910
    %v2912 = vpop.xlane.xlu0 %2911
    %v2915 = vperm.slane %v2909, %v51
    %v2916 = vperm.slane %v2912, %v51
    %v2917 = vsel %vm2713, %v2916, %v2915
    %v2919 = vadd.f32 %v2536, %v2917
    %v2920 = vsub.f32 %v2905, %v2909
    %v2921 = vsub.f32 %v2906, %v2912
    %v2922 = vmul.f32 %v2920, 1.442695
    %v2923 = vpow.pop %v2922
    %v2924 = vmul.f32 %v2921, 1.442695
    %v2925 = vpow.pop %v2924
    %v2926 = vsel %vm2548, %v2923, 0.0
    %2927 = vadd.xlane.f32.xlu0 %v2926
    %v2928 = vpop.xlane.xlu0 %2927
    %v2929 = vsel %vm2548, %v2925, 0.0
    %2930 = vadd.xlane.f32.xlu0 %v2929
    %v2931 = vpop.xlane.xlu0 %2930
    %v2932 = vlog2.pop %v2928
    %v2933 = vmul.f32 %v2932, 0.6931472
    %v2934 = vlog2.pop %v2931
    %v2935 = vmul.f32 %v2934, 0.6931472
    %v2938 = vperm.slane %v2933, %v51
    %v2939 = vperm.slane %v2935, %v51
    %v2940 = vsel %vm2713, %v2939, %v2938
    %v2942 = vadd.f32 %v2919, %v2940
    %v2943 = vrot.slane %v2898, 2
    %v2945 = vsub.f32 %v2942, %v2943
    %v2946 = vmul.f32 %v874, %v2945
    %v2948 = vrot.slane %v2946, 6
    %v2950 = vadd.f32 %v2898, %v2948
    %v2951 = vperm.slane %v2537, 2
    %v2952 = vadd.f32 %v2950, %v2951
    %vm2953 = vcmask 58368
    %v2954 = vsel %vm2953, %v2952, -inf
    %2955 = vmax.xlane.f32.xlu0 %v2954
    %v2956 = vpop.xlane.xlu0 %2955
    %v2957 = vsub.f32 %v2952, %v2956
    %v2958 = vmul.f32 %v2957, 1.442695
    %v2959 = vpow.pop %v2958
    %v2960 = vsel %vm2953, %v2959, 0.0
    %2961 = vadd.xlane.f32.xlu0 %v2960
    %v2962 = vpop.xlane.xlu0 %2961
    %v2963 = vlog2.pop %v2962
    %v2964 = vmul.f32 %v2963, 0.6931472
    %v2965 = vadd.f32 %v2956, %v2964
    %v2966 = vld [vmem:[%s11] sm:$0xff]
    %v2967 = vld [vmem:[%s11 + $0x8] sm:$0xff]
    %v2968 = vld [vmem:[%s12] sm:$0xff]
    %v2969 = vld [vmem:[%s12 + $0x8] sm:$0xff]
    %v2970 = vmul.f32 %v2535, %v2966
    %v2971 = vmul.f32 %v2536, %v2967
    %v2972 = vsel %vm2548, %v2970, 0.0
    %2973 = vadd.xlane.f32.xlu0 %v2972
    %v2974 = vpop.xlane.xlu0 %2973
    %v2975 = vsel %vm2548, %v2971, 0.0
    %2976 = vadd.xlane.f32.xlu0 %v2975
    %v2977 = vpop.xlane.xlu0 %2976
    %v2979 = vsel %vm2548, %v2966, 0
    %v2982 = vsel %vm2548, %v2967, 0
    %2984 = vmatpush.msra.mxu0 0.0
    %2985 = vmatpush.msra.mxu0 0.0
    %2986 = vmatpush.msra.mxu0 0.0
    %2987 = vmatpush.msra.mxu0 0.0
    %2988 = vmatpush.msra.mxu0 0.0
    %2989 = vmatpush.msra.mxu0 0.0
    %2990 = vmatpush.msra.mxu0 0.0
    %2991 = vmatpush.msra.mxu0 0.0
    %2992 = vmatpush.msra.mxu0 0.0
    %2993 = vmatpush.msra.mxu0 0.0
    %2994 = vmatpush.msra.mxu0 0.0
    %2995 = vmatpush.msra.mxu0 0.0
    %2996 = vmatpush.msra.mxu0 0.0
    %2997 = vmatpush.msra.mxu0 0.0
    %2998 = vmatpush.msra.mxu0 0.0
    %2999 = vmatpush.msra.mxu0 %v2537
    %3000 = vmatmul.f32.gmra.mxu0 %v2979
    %v3001 = vpop.f32.mrf.mxu0
    %v3002 = vadd.f32 0.0, %v3001
    %3003 = vmatmul.f32.gmra.mxu0 %v2982
    %v3004 = vpop.f32.mrf.mxu0
    %v3005 = vadd.f32 0.0, %v3004
    %3006 = vdwg.mxu0
    %v3007 = vmul.f32 %v3002, %v2968
    %v3008 = vmul.f32 %v3005, %v2969
    %v3009 = vsel %vm2548, %v3007, 0.0
    %3010 = vadd.xlane.f32.xlu0 %v3009
    %v3011 = vpop.xlane.xlu0 %3010
    %v3012 = vsel %vm2548, %v3008, 0.0
    %3013 = vadd.xlane.f32.xlu0 %v3012
    %v3014 = vpop.xlane.xlu0 %3013
    %v3015 = vadd.f32 %v2974, %v3011
    %v3016 = vadd.f32 %v2977, %v3014
    %v3017 = vmul.f32 %v3015, %v48
    %v3018 = vmul.f32 %v3016, %v49
    %v3020 = vrot.slane %v3017, 2
    %v3022 = vadd.f32 %v3017, %v3020
    %v3023 = vrot.slane %v3017, 4
    %v3025 = vadd.f32 %v3022, %v3023
    %v3026 = vrot.slane %v3017, 6
    %v3028 = vadd.f32 %v3025, %v3026
    %v3029 = vadd.f32 %v3028, %v3018
    %v3031 = vrot.slane %v3018, 2
    %v3033 = vadd.f32 %v3029, %v3031
    %v3034 = vrot.slane %v3018, 4
    %v3036 = vadd.f32 %v3033, %v3034
    %v3037 = vrot.slane %v3018, 6
    %v3039 = vadd.f32 %v3036, %v3037
    %v3040 = vld [vmem:[%s13] sm:$0x3]
    %v3041 = vmul.f32 %v2951, %v3040
    %v3042 = vsel %vm2953, %v3041, 0.0
    %3043 = vadd.xlane.f32.xlu0 %v3042
    %v3044 = vpop.xlane.xlu0 %3043
    %v3045 = vadd.f32 %v3039, %v3044
    %v3046 = vsub.f32 %v2965, %v3045
    %vm3047 = vcmask 1024
    %v3048 = vsel %vm3047, %v3046, 0.0
    %v3049 = vrot.slane %v3048, 4
    %v3050 = vadd.f32 %v3048, %v3049
    %v3051 = vrot.slane %v3050, 2
    %v3052 = vadd.f32 %v3050, %v3051
    %v3053 = vrot.slane %v3052, 1
    %v3054 = vadd.f32 %v3052, %v3053
    %v3055 = vrcp.pop 2.0
    %v3056 = vmul.f32 2.0, %v3055
    %v3057 = vsub.f32 1.0, %v3056
    %v3058 = vmul.f32 %v3055, %v3057
    %v3059 = vadd.f32 %v3055, %v3058
    %vm3060 = vweird.f32 %v3055
    %v3061 = vsel %vm3060, %v3055, %v3059
    %v3062 = vmul.f32 %v3054, %v3061
    %vm3063 = vcmask 0
    %3064 = vst.msk [vmem:[#allocation4] sm:$0x1] %vm3063, %v3062
    // Predicated region
    $region58: #{rnn_crf_loss.1} parent=1 // pred_check
      _
    $region59: #{rnn_crf_loss.1} parent=1 // pred_check_branch
      %3066 = sbr.rel (0) target = $region61
    $region60: #{rnn_crf_loss.1} parent=1 // pred_region
      %3068 = vsyncadd [#allocation5], 0
      %s3070 = sshll.u32 [#allocation4], 4
      %s3071 = int_to_ptr.vmem [resolvable:$true] %s3070
      %s3072 = sshll.u32 %s14, 4
      %s3073 = int_to_ptr.hbm [resolvable:$true] %s3072
      %3075 = dma.vmem_to_hbm [thread:$0]  %s3071, 16, %s3073, [#allocation5]
    $region61: #{rnn_crf_loss.1} parent=1 // pred_fallthru
      _
    // Predicated region
    $region62: #{rnn_crf_loss.1} parent=1 // pred_check
      _
    $region63: #{rnn_crf_loss.1} parent=1 // pred_check_branch
      %3077 = sbr.rel (0) target = $region65
    $region64: #{rnn_crf_loss.1} parent=1 // pred_region
      %3079 = dma.done [#allocation5], 16
    $region65: #{rnn_crf_loss.1} parent=1 // pred_fallthru
      _
    %3080 = vsyncpa [#allocation5], 1

</llo_original>
